<compile_context>
chip_gen: v5e
topology: v5e:2x2
jax: 0.10.0
libtpu: 0.0.40
codegen_flags: <defaults>
</compile_context>

<pallas_src>
import functools

import jax
import jax.numpy as jnp
import numpy as np
from jax.experimental import pallas as pl
from jax.experimental.pallas import tpu as pltpu

LN_EPS = 1e-5


# --------------------------------------------------------------------------
# Fused ResNetBlock kernel: (Conv1d + LayerNorm) x {2,3} + ReLU + residual
# (+ fused mean-over-sequence pooling for the final block).
# --------------------------------------------------------------------------
def _make_block_kernel(K, pad, pad_rows, has_cnn1, emit_pooled, matmul_dtype):
    n_convs = 3 if has_cnn1 else 2
    n_in = 1 + 4 * n_convs
    n_out = 2 if emit_pooled else 1

    def mm(a, w):  # MXU matmul, f32 accumulation (bf16 inputs optional: v6e/v7x path)
        return jnp.dot(a.astype(matmul_dtype), w.astype(matmul_dtype),
                       preferred_element_type=jnp.float32)

    def conv_ln(x, xpad_ref, w_ref, b_ref, g_ref, be_ref, *, relu):
        # x: (B, L, C) f32 value.  xpad_ref: (B, L + 2*pad_rows, C) VMEM scratch whose
        # boundary rows are zero (pad_rows is a multiple of 8 -> tile-aligned store).
        # w_ref: (K, C, Cout).  b/g/be: (1, Cout).
        Bx, Lx, C = x.shape
        Cout = w_ref.shape[2]
        xpad_ref[:, pad_rows:pad_rows + Lx, :] = x          # interior; pads stay zero
        acc = jnp.zeros((Bx * Lx, Cout), jnp.float32)
        for k in range(K):                                  # K shifted taps -> MXU
            start = pad_rows + k - pad
            xk = xpad_ref[:, start:start + Lx, :].reshape(Bx * Lx, C)
            acc = acc + mm(xk, w_ref[k])
        acc = acc + b_ref[...]                              # conv bias
        # LayerNorm over channels, f32 stats; rsqrt lowers to the EUP slot.
        mean = jnp.mean(acc, axis=-1, keepdims=True)
        var = jnp.mean(jnp.square(acc - mean), axis=-1, keepdims=True)
        y = (acc - mean) * jax.lax.rsqrt(var + LN_EPS)
        y = y * g_ref[...] + be_ref[...]
        if relu:
            y = jnp.maximum(y, 0.0)
        return y.reshape(Bx, Lx, Cout)

    def kernel(*refs):
        in_refs = refs[:n_in]
        out_refs = refs[n_in:n_in + n_out]
        xpad1_ref, xpad2_ref = refs[n_in + n_out:]
        # Zero the padded scratch once (only the boundary rows matter; the interior
        # is overwritten by every conv).
        xpad1_ref[...] = jnp.zeros(xpad1_ref.shape, jnp.float32)
        xpad2_ref[...] = jnp.zeros(xpad2_ref.shape, jnp.float32)

        x = in_refs[0][...]                                 # (B, L, Cin)
        i = 1
        if has_cnn1:                                        # in_dim != out_dim path
            x = conv_ln(x, xpad1_ref, *in_refs[i:i + 4], relu=False)
            i += 4
            pad_a, pad_b = xpad2_ref, xpad2_ref
        else:
            pad_a, pad_b = xpad1_ref, xpad2_ref
        res = x                                             # residual held in VMEM regs
        x = conv_ln(x, pad_a, *in_refs[i:i + 4], relu=True)
        i += 4
        x = conv_ln(x, pad_b, *in_refs[i:i + 4], relu=False)
        x = jnp.maximum(x + res, 0.0)                       # residual add + relu3
        out_refs[0][...] = x
        if emit_pooled:
            out_refs[1][...] = jnp.mean(x, axis=1)          # fused mean-over-sequence

    return kernel


def resnet_block(x, blk, *, K, padding, emit_pooled, matmul_dtype):
    """One fused ResNetBlock forward for the WHOLE batch in a single pallas_call."""
    B, L, Cin = x.shape
    assert L + 2 * padding - K + 1 == L, "conv must preserve sequence length"
    has_cnn1 = "w1" in blk
    Cout = blk["w2"].shape[2]
    pad_rows = ((max(padding, 1) + 7) // 8) * 8             # tile-aligned zero margin
    Lp = L + 2 * pad_rows

    in_specs = [pl.BlockSpec((B, L, Cin), lambda i: (0, 0, 0))]
    args = [x]

    def add_conv(tag):
        w, b, g, be = blk["w" + tag], blk["b" + tag], blk["g" + tag], blk["be" + tag]
        co = w.shape[2]
        in_specs.append(pl.BlockSpec(w.shape, lambda i: (0, 0, 0)))
        for _ in range(3):
            in_specs.append(pl.BlockSpec((1, co), lambda i: (0, 0)))
        args.extend([w, b, g, be])

    if has_cnn1:
        add_conv("1")
    add_conv("2")
    add_conv("3")

    if emit_pooled:
        out_shape = (jax.ShapeDtypeStruct((B, L, Cout), jnp.float32),
                     jax.ShapeDtypeStruct((B, Cout), jnp.float32))
        out_specs = (pl.BlockSpec((B, L, Cout), lambda i: (0, 0, 0)),
                     pl.BlockSpec((B, Cout), lambda i: (0, 0)))
    else:
        out_shape = jax.ShapeDtypeStruct((B, L, Cout), jnp.float32)
        out_specs = pl.BlockSpec((B, L, Cout), lambda i: (0, 0, 0))

    kern = _make_block_kernel(K, padding, pad_rows, has_cnn1, emit_pooled, matmul_dtype)
    out = pl.pallas_call(
        kern,
        out_shape=out_shape,
        grid=(1,),                       # whole batch in one grid step (tiny tensors)
        in_specs=in_specs,
        out_specs=out_specs,
        scratch_shapes=[pltpu.VMEM((B, Lp, Cin), jnp.float32),
                        pltpu.VMEM((B, Lp, Cout), jnp.float32)],
        compiler_params=pltpu.CompilerParams(dimension_semantics=("arbitrary",)),
    )(*args)
    if emit_pooled:
        return out[0], out[1]
    return out, None


# --------------------------------------------------------------------------
# All hypernet MLP heads (every mainnet layer x {w_x, b_x, w_t, w_b_t}, every
# depth) in ONE kernel.  Grid over heads; weights are stacked per depth.
# --------------------------------------------------------------------------
def _make_heads_kernel(n_layers, matmul_dtype):
    def mm(a, w):
        return jnp.dot(a.astype(matmul_dtype), w.astype(matmul_dtype),
                       preferred_element_type=jnp.float32)

    def kernel(pooled_ref, *refs):
        out_ref = refs[-1]
        h = pooled_ref[...]                                 # (B, D)
        for d in range(n_layers):
            w_ref, b_ref = refs[2 * d], refs[2 * d + 1]
            h = mm(h, w_ref[0]) + b_ref[0]
            if d < n_layers - 1:
                h = jnp.maximum(h, 0.0)                     # ReLU on all but final layer
        out_ref[0] = h                                      # (B, OUT_PAD) lane-dense

    return kernel


def run_all_heads(pooled, head_stacks, matmul_dtype):
    """pooled: (B, D).  head_stacks: per depth (W (H, Din, Dout), b (H, 1, Dout))."""
    B, D = pooled.shape
    H = head_stacks[0][0].shape[0]
    out_pad = head_stacks[-1][0].shape[2]
    n_layers = len(head_stacks)

    in_specs = [pl.BlockSpec((B, D), lambda h: (0, 0))]
    args = [pooled]
    for W, b in head_stacks:
        din, dout = W.shape[1], W.shape[2]
        in_specs.append(pl.BlockSpec((1, din, dout), lambda h: (h, 0, 0)))
        in_specs.append(pl.BlockSpec((1, 1, dout), lambda h: (h, 0, 0)))
        args.extend([W, b])

    return pl.pallas_call(
        _make_heads_kernel(n_layers, matmul_dtype),
        out_shape=jax.ShapeDtypeStruct((H, B, out_pad), jnp.float32),
        grid=(H,),
        in_specs=in_specs,
        out_specs=pl.BlockSpec((1, B, out_pad), lambda h: (h, 0, 0)),
        compiler_params=pltpu.CompilerParams(dimension_semantics=("parallel",)),
    )(*args)


# --------------------------------------------------------------------------
# Model forward (Pallas-backed):  num_blocks + 1 pallas_calls total.
# --------------------------------------------------------------------------
def hyper_resnet_forward(packed, sequence, mainnet_config, K, padding,
                         matmul_dtype=jnp.float32):
    x = jnp.take(packed["embedding"], sequence, axis=0)     # (B, L, dims[0]) JAX glue
    n_blocks = len(packed["blocks"])
    pooled = None
    for bi, blk in enumerate(packed["blocks"]):
        x, pooled = resnet_block(x, blk, K=K, padding=padding,
                                 emit_pooled=(bi == n_blocks - 1),
                                 matmul_dtype=matmul_dtype)
    heads = run_all_heads(pooled, packed["head_stacks"], matmul_dtype)  # (H, B, OUT_PAD)
    B = pooled.shape[0]
    w_x, b_x, w_t, w_b_t = [], [], [], []
    for i, cfg in enumerate(mainnet_config):
        base = 4 * i
        w_x.append(heads[base + 0, :, :cfg[1] * cfg[2]].reshape(B, cfg[1], cfg[2]))
        b_x.append(heads[base + 1, :, :cfg[2]].reshape(B, cfg[2]))
        w_t.append(heads[base + 2, :, :cfg[2]].reshape(B, 1, cfg[2]))
        w_b_t.append(heads[base + 3, :, :cfg[2]].reshape(B, 1, cfg[2]))
    return w_x, b_x, w_t, w_b_t


# --------------------------------------------------------------------------
# Parameter init (shapes follow HyperResNet.__init__) + packing for the kernels.
# --------------------------------------------------------------------------
def init_params(key, dims, repeats, K, hidden_dims_output, mainnet_config):
    keys = iter(jax.random.split(key, 4096))
    nk = lambda: next(keys)
    params = {"embedding": jax.random.normal(nk(), (21, dims[0]), jnp.float32) * 0.5}

    def init_conv(cin, cout):
        w = jax.random.normal(nk(), (K, cin, cout), jnp.float32) / np.sqrt(cin * K)
        b = jax.random.normal(nk(), (cout,), jnp.float32) * 0.1
        return w, b

    def init_block(in_dim, out_dim):
        p = {}
        if in_dim != out_dim:
            p["cnn1_w"], p["cnn1_b"] = init_conv(in_dim, out_dim)
            p["ln1_g"] = jnp.ones((out_dim,), jnp.float32)
            p["ln1_b"] = jnp.zeros((out_dim,), jnp.float32)
        p["cnn2_w"], p["cnn2_b"] = init_conv(out_dim, out_dim)
        p["ln2_g"] = jnp.ones((out_dim,), jnp.float32)
        p["ln2_b"] = jnp.zeros((out_dim,), jnp.float32)
        p["cnn3_w"], p["cnn3_b"] = init_conv(out_dim, out_dim)
        p["ln3_g"] = jnp.ones((out_dim,), jnp.float32)
        p["ln3_b"] = jnp.zeros((out_dim,), jnp.float32)
        return p

    blocks = []
    for index, dim in enumerate(dims[:-1]):
        for _ in range(repeats):
            blocks.append(init_block(dim, dim))
        blocks.append(init_block(dim, dims[index + 1]))
    params["blocks"] = blocks

    def init_lin(din, dout):
        w = jax.random.normal(nk(), (din, dout), jnp.float32) / np.sqrt(din)
        b = jax.random.normal(nk(), (dout,), jnp.float32) * 0.1
        return w, b

    def init_head(final_out):
        layers = []
        w, b = init_lin(dims[-1], hidden_dims_output[0])
        layers.append((w, b, True))
        for idx, d in enumerate(hidden_dims_output[1:]):
            w, b = init_lin(hidden_dims_output[idx], d)
            layers.append((w, b, True))
        # TODO(synk): HyperLinear source is not provided in the reference; modeled as
        # a plain Linear whose output size is inferred from the forward's reshape.
        w, b = init_lin(hidden_dims_output[-1], final_out)
        layers.append((w, b, False))
        return layers

    params["w_x"], params["b_x"], params["w_t"], params["w_b_t"] = [], [], [], []
    for cfg in mainnet_config:
        params["w_x"].append(init_head(cfg[1] * cfg[2]))
        params["b_x"].append(init_head(cfg[2]))
        params["w_t"].append(init_head(1 * cfg[2]))
        params["w_b_t"].append(init_head(1 * cfg[2]))
    return params


def pack_params(params, mainnet_config):
    """Repack raw params into the layouts the fused Pallas kernels consume (one-time)."""
    packed = {"embedding": params["embedding"], "blocks": []}
    for p in params["blocks"]:
        d = {}

        def put(tag, cnn, ln):
            d["w" + tag] = p[cnn + "_w"]                    # (K, Cin, Cout)
            d["b" + tag] = p[cnn + "_b"].reshape(1, -1)
            d["g" + tag] = p[ln + "_g"].reshape(1, -1)
            d["be" + tag] = p[ln + "_b"].reshape(1, -1)

        if "cnn1_w" in p:
            put("1", "cnn1", "ln1")
        put("2", "cnn2", "ln2")
        put("3", "cnn3", "ln3")
        packed["blocks"].append(d)

    # Head ordering: [w_x_0, b_x_0, w_t_0, w_b_t_0, w_x_1, ...]
    head_lists = []
    for i in range(len(mainnet_config)):
        head_lists.append(params["w_x"][i])
        head_lists.append(params["b_x"][i])
        head_lists.append(params["w_t"][i])
        head_lists.append(params["w_b_t"][i])
    n_layers = len(head_lists[0])
    out_sizes = [layers[-1][0].shape[1] for layers in head_lists]
    out_pad = max(128, -(-max(out_sizes) // 128) * 128)     # lane-dense final width
    stacks = []
    for depth in range(n_layers):
        Ws, bs = [], []
        for layers in head_lists:
            w, b, _ = layers[depth]
            if depth == n_layers - 1:
                w = jnp.pad(w, ((0, 0), (0, out_pad - w.shape[1])))
                b = jnp.pad(b, ((0, out_pad - b.shape[0]),))
            Ws.append(w)
            bs.append(b)
        stacks.append((jnp.stack(Ws), jnp.stack(bs)[:, None, :]))
    packed["head_stacks"] = stacks
    return packed


# --------------------------------------------------------------------------
# Pure-JAX reference (correctness check only)
# --------------------------------------------------------------------------
def _ref_conv_ln(x, w, b, g, beta, residual, padding, apply_relu, add_residual):
    B, L, _ = x.shape
    K = w.shape[0]
    xp = jnp.pad(x, ((0, 0), (padding, padding), (0, 0)))
    acc = jnp.zeros((B, L, w.shape[2]), jnp.float32) + b
    for k in range(K):
        acc = acc + jnp.einsum("bli,io->blo", xp[:, k:k + L, :], w[k])
    mean = acc.mean(-1, keepdims=True)
    var = ((acc - mean) ** 2).mean(-1, keepdims=True)
    y = (acc - mean) / jnp.sqrt(var + LN_EPS) * g + beta
    if add_residual:
        y = y + residual
    if apply_relu:
        y = jnp.maximum(y, 0.0)
    return y


def _ref_forward(params, sequence, mainnet_config, padding):
    x = jnp.take(params["embedding"], sequence, axis=0)
    for p in params["blocks"]:
        if "cnn1_w" in p:
            x = _ref_conv_ln(x, p["cnn1_w"], p["cnn1_b"], p["ln1_g"], p["ln1_b"],
                             None, padding, False, False)
        res = x
        x = _ref_conv_ln(x, p["cnn2_w"], p["cnn2_b"], p["ln2_g"], p["ln2_b"],
                         None, padding, True, False)
        x = _ref_conv_ln(x, p["cnn3_w"], p["cnn3_b"], p["ln3_g"], p["ln3_b"],
                         res, padding, True, True)
    pooled = x.mean(axis=1)
    B = pooled.shape[0]

    def head(layers):
        h = pooled
        for (w, b, relu_flag) in layers:
            h = h @ w + b
            if relu_flag:
                h = jnp.maximum(h, 0.0)
        return h

    w_x = [head(params["w_x"][i]).reshape(B, c[1], c[2]) for i, c in enumerate(mainnet_config)]
    b_x = [head(params["b_x"][i]).reshape(B, c[2]) for i, c in enumerate(mainnet_config)]
    w_t = [head(params["w_t"][i]).reshape(B, 1, c[2]) for i, c in enumerate(mainnet_config)]
    w_b_t = [head(params["w_b_t"][i]).reshape(B, 1, c[2]) for i, c in enumerate(mainnet_config)]
    return w_x, b_x, w_t, w_b_t


# --------------------------------------------------------------------------
# Main
# --------------------------------------------------------------------------
if __name__ == "__main__":
    dims = [16, 32]                 # embedding dim -> final feature dim
    repeats = 1
    K = 3
    padding = 1
    hidden_dims_output = [32, 32]
    mainnet_config = [("linear", 6, 10), ("linear", 10, 4)]
    B, L = 2, 16

    key = jax.random.PRNGKey(0)
    key_p, key_s = jax.random.split(key)
    params = init_params(key_p, dims, repeats, K, hidden_dims_output, mainnet_config)
    sequence = jax.random.randint(key_s, (B, L), 0, 21, dtype=jnp.int32)
    packed = pack_params(params, mainnet_config)

    # f32 MXU path (reference-accurate).
    fwd_f32 = jax.jit(functools.partial(
        hyper_resnet_forward, mainnet_config=mainnet_config, K=K, padding=padding,
        matmul_dtype=jnp.float32))
    outs = jax.block_until_ready(fwd_f32(packed, sequence))

    refs = _ref_forward(params, sequence, mainnet_config, padding)
    for group_out, group_ref in zip(outs, refs):
        for o, r in zip(group_out, group_ref):
            assert o.shape == r.shape, (o.shape, r.shape)
            np.testing.assert_allclose(np.asarray(o), np.asarray(r),
                                       rtol=2e-2, atol=2e-2)

    # bf16-MXU fast path (v6e/v7x): bf16 matmul inputs, f32 accumulation + f32 LN math.
    fwd_bf16 = jax.jit(functools.partial(
        hyper_resnet_forward, mainnet_config=mainnet_config, K=K, padding=padding,
        matmul_dtype=jnp.bfloat16))
    outs_bf16 = jax.block_until_ready(fwd_bf16(packed, sequence))
    for group_out, group_ref in zip(outs_bf16, refs):
        for o, r in zip(group_out, group_ref):
            np.testing.assert_allclose(np.asarray(o), np.asarray(r),
                                       rtol=1e-1, atol=1e-1)

    print("KERNEL_OK")
</pallas_src>

<mosaic_0001>
module attributes {stable_mosaic.version = 11 : i64} {
  func.func @kernel(%arg0: i32, %arg1: memref<2x32xf32, #tpu.memory_space<vmem>>, %arg2: memref<1x32x32xf32, #tpu.memory_space<vmem>>, %arg3: memref<1x1x32xf32, #tpu.memory_space<vmem>>, %arg4: memref<1x32x32xf32, #tpu.memory_space<vmem>>, %arg5: memref<1x1x32xf32, #tpu.memory_space<vmem>>, %arg6: memref<1x32x128xf32, #tpu.memory_space<vmem>>, %arg7: memref<1x1x128xf32, #tpu.memory_space<vmem>>, %arg8: memref<1x2x128xf32, #tpu.memory_space<vmem>>) attributes {dimension_semantics = [#tpu.dimension_semantics<parallel>], iteration_bounds = array<i64: 8>, scalar_prefetch = 0 : i64, scratch_operands = 0 : i64, tpu.core_type = #tpu.core_type<tc>, window_params = [{pipeline_mode = #tpu.pipeline_mode<synchronous>, transform_indices = @transform_0, window_bounds = array<i64: 2, 32>}, {transform_indices = @transform_1, window_bounds = array<i64: 1, 32, 32>}, {transform_indices = @transform_2, window_bounds = array<i64: 1, 1, 32>}, {transform_indices = @transform_3, window_bounds = array<i64: 1, 32, 32>}, {transform_indices = @transform_4, window_bounds = array<i64: 1, 1, 32>}, {transform_indices = @transform_5, window_bounds = array<i64: 1, 32, 128>}, {transform_indices = @transform_6, window_bounds = array<i64: 1, 1, 128>}, {transform_indices = @transform_7, window_bounds = array<i64: 1, 2, 128>}]} {
    %c0 = arith.constant 0 : index
    %c0_0 = arith.constant 0 : index
    %0 = vector.load %arg1[%c0, %c0_0] : memref<2x32xf32, #tpu.memory_space<vmem>>, vector<2x32xf32>
    %c0_1 = arith.constant 0 : index
    %c0_2 = arith.constant 0 : index
    %c0_3 = arith.constant 0 : index
    %1 = vector.load %arg2[%c0_1, %c0_2, %c0_3] : memref<1x32x32xf32, #tpu.memory_space<vmem>>, vector<1x32x32xf32>
    %2 = vector.shape_cast %1 : vector<1x32x32xf32> to vector<32x32xf32>
    %cst = arith.constant dense<0.000000e+00> : vector<2x32xf32>
    %3 = tpu.matmul %0, %2, %cst {dimension_numbers = #tpu.dot_dimension_numbers<[1], [0], [0], [1], [0, 0, 1, 1], [], []>} : vector<2x32xf32>, vector<32x32xf32>, vector<2x32xf32> -> vector<2x32xf32>
    %c0_4 = arith.constant 0 : index
    %c0_5 = arith.constant 0 : index
    %c0_6 = arith.constant 0 : index
    %4 = vector.load %arg3[%c0_4, %c0_5, %c0_6] : memref<1x1x32xf32, #tpu.memory_space<vmem>>, vector<1x1x32xf32>
    %5 = vector.shape_cast %4 : vector<1x1x32xf32> to vector<1x32xf32>
    %6 = vector.broadcast %5 : vector<1x32xf32> to vector<2x32xf32>
    %7 = arith.addf %3, %6 : vector<2x32xf32>
    %cst_7 = arith.constant 0.000000e+00 : f32
    %8 = vector.broadcast %cst_7 : f32 to vector<2x32xf32>
    %9 = arith.maximumf %7, %8 : vector<2x32xf32>
    %c0_8 = arith.constant 0 : index
    %c0_9 = arith.constant 0 : index
    %c0_10 = arith.constant 0 : index
    %10 = vector.load %arg4[%c0_8, %c0_9, %c0_10] : memref<1x32x32xf32, #tpu.memory_space<vmem>>, vector<1x32x32xf32>
    %11 = vector.shape_cast %10 : vector<1x32x32xf32> to vector<32x32xf32>
    %cst_11 = arith.constant dense<0.000000e+00> : vector<2x32xf32>
    %12 = tpu.matmul %9, %11, %cst_11 {dimension_numbers = #tpu.dot_dimension_numbers<[1], [0], [0], [1], [0, 0, 1, 1], [], []>} : vector<2x32xf32>, vector<32x32xf32>, vector<2x32xf32> -> vector<2x32xf32>
    %c0_12 = arith.constant 0 : index
    %c0_13 = arith.constant 0 : index
    %c0_14 = arith.constant 0 : index
    %13 = vector.load %arg5[%c0_12, %c0_13, %c0_14] : memref<1x1x32xf32, #tpu.memory_space<vmem>>, vector<1x1x32xf32>
    %14 = vector.shape_cast %13 : vector<1x1x32xf32> to vector<1x32xf32>
    %15 = vector.broadcast %14 : vector<1x32xf32> to vector<2x32xf32>
    %16 = arith.addf %12, %15 : vector<2x32xf32>
    %cst_15 = arith.constant 0.000000e+00 : f32
    %17 = vector.broadcast %cst_15 : f32 to vector<2x32xf32>
    %18 = arith.maximumf %16, %17 : vector<2x32xf32>
    %c0_16 = arith.constant 0 : index
    %c0_17 = arith.constant 0 : index
    %c0_18 = arith.constant 0 : index
    %19 = vector.load %arg6[%c0_16, %c0_17, %c0_18] : memref<1x32x128xf32, #tpu.memory_space<vmem>>, vector<1x32x128xf32>
    %20 = vector.shape_cast %19 : vector<1x32x128xf32> to vector<32x128xf32>
    %cst_19 = arith.constant dense<0.000000e+00> : vector<2x128xf32>
    %21 = tpu.matmul %18, %20, %cst_19 {dimension_numbers = #tpu.dot_dimension_numbers<[1], [0], [0], [1], [0, 0, 1, 1], [], []>} : vector<2x32xf32>, vector<32x128xf32>, vector<2x128xf32> -> vector<2x128xf32>
    %c0_20 = arith.constant 0 : index
    %c0_21 = arith.constant 0 : index
    %c0_22 = arith.constant 0 : index
    %22 = vector.load %arg7[%c0_20, %c0_21, %c0_22] : memref<1x1x128xf32, #tpu.memory_space<vmem>>, vector<1x1x128xf32>
    %23 = vector.shape_cast %22 : vector<1x1x128xf32> to vector<1x128xf32>
    %24 = vector.broadcast %23 : vector<1x128xf32> to vector<2x128xf32>
    %25 = arith.addf %21, %24 : vector<2x128xf32>
    %c0_23 = arith.constant 0 : index
    %c0_24 = arith.constant 0 : index
    %c0_25 = arith.constant 0 : index
    %26 = vector.load %arg8[%c0_23, %c0_24, %c0_25] : memref<1x2x128xf32, #tpu.memory_space<vmem>>, vector<1x2x128xf32>
    %27 = vector.shape_cast %26 : vector<1x2x128xf32> to vector<2x128xf32>
    %28 = vector.shape_cast %25 : vector<2x128xf32> to vector<1x2x128xf32>
    tpu.vector_store %arg8[%c0_23, %c0_24, %c0_25], %28 {strides = array<i32>} : memref<1x2x128xf32, #tpu.memory_space<vmem>>, vector<1x2x128xf32>,
    return
  }
  func.func @transform_0(%arg0: i32) -> (i32, i32) {
    %c0_i32 = arith.constant 0 : i32
    %c0_i32_0 = arith.constant 0 : i32
    %c0_i32_1 = arith.constant 0 : i32
    return %c0_i32, %c0_i32_0 : i32, i32
  }
  func.func @transform_1(%arg0: i32) -> (i32, i32, i32) {
    %c0_i32 = arith.constant 0 : i32
    %c0_i32_0 = arith.constant 0 : i32
    %c0_i32_1 = arith.constant 0 : i32
    return %arg0, %c0_i32, %c0_i32_0 : i32, i32, i32
  }
  func.func @transform_2(%arg0: i32) -> (i32, i32, i32) {
    %c0_i32 = arith.constant 0 : i32
    %c0_i32_0 = arith.constant 0 : i32
    %c0_i32_1 = arith.constant 0 : i32
    return %arg0, %c0_i32, %c0_i32_0 : i32, i32, i32
  }
  func.func @transform_3(%arg0: i32) -> (i32, i32, i32) {
    %c0_i32 = arith.constant 0 : i32
    %c0_i32_0 = arith.constant 0 : i32
    %c0_i32_1 = arith.constant 0 : i32
    return %arg0, %c0_i32, %c0_i32_0 : i32, i32, i32
  }
  func.func @transform_4(%arg0: i32) -> (i32, i32, i32) {
    %c0_i32 = arith.constant 0 : i32
    %c0_i32_0 = arith.constant 0 : i32
    %c0_i32_1 = arith.constant 0 : i32
    return %arg0, %c0_i32, %c0_i32_0 : i32, i32, i32
  }
  func.func @transform_5(%arg0: i32) -> (i32, i32, i32) {
    %c0_i32 = arith.constant 0 : i32
    %c0_i32_0 = arith.constant 0 : i32
    %c0_i32_1 = arith.constant 0 : i32
    return %arg0, %c0_i32, %c0_i32_0 : i32, i32, i32
  }
  func.func @transform_6(%arg0: i32) -> (i32, i32, i32) {
    %c0_i32 = arith.constant 0 : i32
    %c0_i32_0 = arith.constant 0 : i32
    %c0_i32_1 = arith.constant 0 : i32
    return %arg0, %c0_i32, %c0_i32_0 : i32, i32, i32
  }
  func.func @transform_7(%arg0: i32) -> (i32, i32, i32) {
    %c0_i32 = arith.constant 0 : i32
    %c0_i32_0 = arith.constant 0 : i32
    %c0_i32_1 = arith.constant 0 : i32
    return %arg0, %c0_i32, %c0_i32_0 : i32, i32, i32
  }
}

module attributes {stable_mosaic.version = 11 : i64} {
  func.func @kernel(%arg0: i32, %arg1: memref<2x16x16xf32, #tpu.memory_space<vmem>>, %arg2: memref<3x16x16xf32, #tpu.memory_space<vmem>>, %arg3: memref<1x16xf32, #tpu.memory_space<vmem>>, %arg4: memref<1x16xf32, #tpu.memory_space<vmem>>, %arg5: memref<1x16xf32, #tpu.memory_space<vmem>>, %arg6: memref<3x16x16xf32, #tpu.memory_space<vmem>>, %arg7: memref<1x16xf32, #tpu.memory_space<vmem>>, %arg8: memref<1x16xf32, #tpu.memory_space<vmem>>, %arg9: memref<1x16xf32, #tpu.memory_space<vmem>>, %arg10: memref<2x16x16xf32, #tpu.memory_space<vmem>>, %arg11: memref<2x32x16xf32, #tpu.memory_space<vmem>>, %arg12: memref<2x32x16xf32, #tpu.memory_space<vmem>>) attributes {dimension_semantics = [#tpu.dimension_semantics<arbitrary>], iteration_bounds = array<i64: 1>, scalar_prefetch = 0 : i64, scratch_operands = 2 : i64, tpu.core_type = #tpu.core_type<tc>, window_params = [{pipeline_mode = #tpu.pipeline_mode<synchronous>, transform_indices = @transform_0, window_bounds = array<i64: 2, 16, 16>}, {pipeline_mode = #tpu.pipeline_mode<synchronous>, transform_indices = @transform_1, window_bounds = array<i64: 3, 16, 16>}, {pipeline_mode = #tpu.pipeline_mode<synchronous>, transform_indices = @transform_2, window_bounds = array<i64: 1, 16>}, {pipeline_mode = #tpu.pipeline_mode<synchronous>, transform_indices = @transform_3, window_bounds = array<i64: 1, 16>}, {pipeline_mode = #tpu.pipeline_mode<synchronous>, transform_indices = @transform_4, window_bounds = array<i64: 1, 16>}, {pipeline_mode = #tpu.pipeline_mode<synchronous>, transform_indices = @transform_5, window_bounds = array<i64: 3, 16, 16>}, {pipeline_mode = #tpu.pipeline_mode<synchronous>, transform_indices = @transform_6, window_bounds = array<i64: 1, 16>}, {pipeline_mode = #tpu.pipeline_mode<synchronous>, transform_indices = @transform_7, window_bounds = array<i64: 1, 16>}, {pipeline_mode = #tpu.pipeline_mode<synchronous>, transform_indices = @transform_8, window_bounds = array<i64: 1, 16>}, {pipeline_mode = #tpu.pipeline_mode<synchronous>, transform_indices = @transform_9, window_bounds = array<i64: 2, 16, 16>}]} {
    %cst = arith.constant 0.000000e+00 : f32
    %0 = vector.broadcast %cst : f32 to vector<2x32x16xf32>
    %c0 = arith.constant 0 : index
    %c0_0 = arith.constant 0 : index
    %c0_1 = arith.constant 0 : index
    %1 = vector.load %arg11[%c0, %c0_0, %c0_1] : memref<2x32x16xf32, #tpu.memory_space<vmem>>, vector<2x32x16xf32>
    tpu.vector_store %arg11[%c0, %c0_0, %c0_1], %0 {strides = array<i32>} : memref<2x32x16xf32, #tpu.memory_space<vmem>>, vector<2x32x16xf32>,
    %cst_2 = arith.constant 0.000000e+00 : f32
    %2 = vector.broadcast %cst_2 : f32 to vector<2x32x16xf32>
    %c0_3 = arith.constant 0 : index
    %c0_4 = arith.constant 0 : index
    %c0_5 = arith.constant 0 : index
    %3 = vector.load %arg12[%c0_3, %c0_4, %c0_5] : memref<2x32x16xf32, #tpu.memory_space<vmem>>, vector<2x32x16xf32>
    tpu.vector_store %arg12[%c0_3, %c0_4, %c0_5], %2 {strides = array<i32>} : memref<2x32x16xf32, #tpu.memory_space<vmem>>, vector<2x32x16xf32>,
    %c0_6 = arith.constant 0 : index
    %c0_7 = arith.constant 0 : index
    %c0_8 = arith.constant 0 : index
    %4 = vector.load %arg1[%c0_6, %c0_7, %c0_8] : memref<2x16x16xf32, #tpu.memory_space<vmem>>, vector<2x16x16xf32>
    %c0_9 = arith.constant 0 : index
    %c8 = arith.constant 8 : index
    %c0_10 = arith.constant 0 : index
    %5 = vector.load %arg11[%c0_9, %c8, %c0_10] : memref<2x32x16xf32, #tpu.memory_space<vmem>>, vector<2x16x16xf32>
    tpu.vector_store %arg11[%c0_9, %c8, %c0_10], %4 {strides = array<i32>} : memref<2x32x16xf32, #tpu.memory_space<vmem>>, vector<2x16x16xf32>,
    %cst_11 = arith.constant 0.000000e+00 : f32
    %6 = vector.broadcast %cst_11 : f32 to vector<32x16xf32>
    %c0_12 = arith.constant 0 : index
    %c7 = arith.constant 7 : index
    %c0_13 = arith.constant 0 : index
    %7 = vector.load %arg11[%c0_12, %c7, %c0_13] : memref<2x32x16xf32, #tpu.memory_space<vmem>>, vector<2x16x16xf32>
    %8 = vector.shape_cast %7 : vector<2x16x16xf32> to vector<32x16xf32>
    %c0_14 = arith.constant 0 : index
    %c0_15 = arith.constant 0 : index
    %c0_16 = arith.constant 0 : index
    %9 = vector.load %arg2[%c0_14, %c0_15, %c0_16] : memref<3x16x16xf32, #tpu.memory_space<vmem>>, vector<1x16x16xf32>
    %10 = vector.shape_cast %9 : vector<1x16x16xf32> to vector<16x16xf32>
    %cst_17 = arith.constant dense<0.000000e+00> : vector<32x16xf32>
    %11 = tpu.matmul %8, %10, %cst_17 {dimension_numbers = #tpu.dot_dimension_numbers<[1], [0], [0], [1], [0, 0, 1, 1], [], []>} : vector<32x16xf32>, vector<16x16xf32>, vector<32x16xf32> -> vector<32x16xf32>
    %12 = arith.addf %6, %11 : vector<32x16xf32>
    %c0_18 = arith.constant 0 : index
    %c8_19 = arith.constant 8 : index
    %c0_20 = arith.constant 0 : index
    %13 = vector.load %arg11[%c0_18, %c8_19, %c0_20] : memref<2x32x16xf32, #tpu.memory_space<vmem>>, vector<2x16x16xf32>
    %14 = vector.shape_cast %13 : vector<2x16x16xf32> to vector<32x16xf32>
    %c1 = arith.constant 1 : index
    %c0_21 = arith.constant 0 : index
    %c0_22 = arith.constant 0 : index
    %15 = vector.load %arg2[%c1, %c0_21, %c0_22] : memref<3x16x16xf32, #tpu.memory_space<vmem>>, vector<1x16x16xf32>
    %16 = vector.shape_cast %15 : vector<1x16x16xf32> to vector<16x16xf32>
    %cst_23 = arith.constant dense<0.000000e+00> : vector<32x16xf32>
    %17 = tpu.matmul %14, %16, %cst_23 {dimension_numbers = #tpu.dot_dimension_numbers<[1], [0], [0], [1], [0, 0, 1, 1], [], []>} : vector<32x16xf32>, vector<16x16xf32>, vector<32x16xf32> -> vector<32x16xf32>
    %18 = arith.addf %12, %17 : vector<32x16xf32>
    %c0_24 = arith.constant 0 : index
    %c9 = arith.constant 9 : index
    %c0_25 = arith.constant 0 : index
    %19 = vector.load %arg11[%c0_24, %c9, %c0_25] : memref<2x32x16xf32, #tpu.memory_space<vmem>>, vector<2x16x16xf32>
    %20 = vector.shape_cast %19 : vector<2x16x16xf32> to vector<32x16xf32>
    %c2 = arith.constant 2 : index
    %c0_26 = arith.constant 0 : index
    %c0_27 = arith.constant 0 : index
    %21 = vector.load %arg2[%c2, %c0_26, %c0_27] : memref<3x16x16xf32, #tpu.memory_space<vmem>>, vector<1x16x16xf32>
    %22 = vector.shape_cast %21 : vector<1x16x16xf32> to vector<16x16xf32>
    %cst_28 = arith.constant dense<0.000000e+00> : vector<32x16xf32>
    %23 = tpu.matmul %20, %22, %cst_28 {dimension_numbers = #tpu.dot_dimension_numbers<[1], [0], [0], [1], [0, 0, 1, 1], [], []>} : vector<32x16xf32>, vector<16x16xf32>, vector<32x16xf32> -> vector<32x16xf32>
    %24 = arith.addf %18, %23 : vector<32x16xf32>
    %c0_29 = arith.constant 0 : index
    %c0_30 = arith.constant 0 : index
    %25 = vector.load %arg3[%c0_29, %c0_30] : memref<1x16xf32, #tpu.memory_space<vmem>>, vector<1x16xf32>
    %26 = vector.broadcast %25 : vector<1x16xf32> to vector<32x16xf32>
    %27 = arith.addf %24, %26 : vector<32x16xf32>
    %cst_31 = arith.constant dense<0.000000e+00> : vector<32xf32>
    %28 = vector.multi_reduction <add>, %27, %cst_31 [1] : vector<32x16xf32> to vector<32xf32>
    %29 = vector.shape_cast %28 : vector<32xf32> to vector<32x1xf32>
    %cst_32 = arith.constant 1.600000e+01 : f32
    %30 = vector.broadcast %cst_32 : f32 to vector<32x1xf32>
    %31 = arith.divf %29, %30 : vector<32x1xf32>
    %32 = vector.broadcast %31 : vector<32x1xf32> to vector<32x16xf32>
    %33 = arith.subf %27, %32 : vector<32x16xf32>
    %34 = arith.mulf %33, %33 : vector<32x16xf32>
    %cst_33 = arith.constant dense<0.000000e+00> : vector<32xf32>
    %35 = vector.multi_reduction <add>, %34, %cst_33 [1] : vector<32x16xf32> to vector<32xf32>
    %36 = vector.shape_cast %35 : vector<32xf32> to vector<32x1xf32>
    %cst_34 = arith.constant 1.600000e+01 : f32
    %37 = vector.broadcast %cst_34 : f32 to vector<32x1xf32>
    %38 = arith.divf %36, %37 : vector<32x1xf32>
    %39 = vector.broadcast %31 : vector<32x1xf32> to vector<32x16xf32>
    %40 = arith.subf %27, %39 : vector<32x16xf32>
    %cst_35 = arith.constant 9.99999974E-6 : f32
    %41 = vector.broadcast %cst_35 : f32 to vector<32x1xf32>
    %42 = arith.addf %38, %41 : vector<32x1xf32>
    %43 = math.rsqrt %42 : vector<32x1xf32>
    %44 = vector.broadcast %43 : vector<32x1xf32> to vector<32x16xf32>
    %45 = arith.mulf %40, %44 : vector<32x16xf32>
    %c0_36 = arith.constant 0 : index
    %c0_37 = arith.constant 0 : index
    %46 = vector.load %arg4[%c0_36, %c0_37] : memref<1x16xf32, #tpu.memory_space<vmem>>, vector<1x16xf32>
    %47 = vector.broadcast %46 : vector<1x16xf32> to vector<32x16xf32>
    %48 = arith.mulf %45, %47 : vector<32x16xf32>
    %c0_38 = arith.constant 0 : index
    %c0_39 = arith.constant 0 : index
    %49 = vector.load %arg5[%c0_38, %c0_39] : memref<1x16xf32, #tpu.memory_space<vmem>>, vector<1x16xf32>
    %50 = vector.broadcast %49 : vector<1x16xf32> to vector<32x16xf32>
    %51 = arith.addf %48, %50 : vector<32x16xf32>
    %cst_40 = arith.constant 0.000000e+00 : f32
    %52 = vector.broadcast %cst_40 : f32 to vector<32x16xf32>
    %53 = arith.maximumf %51, %52 : vector<32x16xf32>
    %54 = vector.shape_cast %53 : vector<32x16xf32> to vector<2x16x16xf32>
    %c0_41 = arith.constant 0 : index
    %c8_42 = arith.constant 8 : index
    %c0_43 = arith.constant 0 : index
    %55 = vector.load %arg12[%c0_41, %c8_42, %c0_43] : memref<2x32x16xf32, #tpu.memory_space<vmem>>, vector<2x16x16xf32>
    tpu.vector_store %arg12[%c0_41, %c8_42, %c0_43], %54 {strides = array<i32>} : memref<2x32x16xf32, #tpu.memory_space<vmem>>, vector<2x16x16xf32>,
    %cst_44 = arith.constant 0.000000e+00 : f32
    %56 = vector.broadcast %cst_44 : f32 to vector<32x16xf32>
    %c0_45 = arith.constant 0 : index
    %c7_46 = arith.constant 7 : index
    %c0_47 = arith.constant 0 : index
    %57 = vector.load %arg12[%c0_45, %c7_46, %c0_47] : memref<2x32x16xf32, #tpu.memory_space<vmem>>, vector<2x16x16xf32>
    %58 = vector.shape_cast %57 : vector<2x16x16xf32> to vector<32x16xf32>
    %c0_48 = arith.constant 0 : index
    %c0_49 = arith.constant 0 : index
    %c0_50 = arith.constant 0 : index
    %59 = vector.load %arg6[%c0_48, %c0_49, %c0_50] : memref<3x16x16xf32, #tpu.memory_space<vmem>>, vector<1x16x16xf32>
    %60 = vector.shape_cast %59 : vector<1x16x16xf32> to vector<16x16xf32>
    %cst_51 = arith.constant dense<0.000000e+00> : vector<32x16xf32>
    %61 = tpu.matmul %58, %60, %cst_51 {dimension_numbers = #tpu.dot_dimension_numbers<[1], [0], [0], [1], [0, 0, 1, 1], [], []>} : vector<32x16xf32>, vector<16x16xf32>, vector<32x16xf32> -> vector<32x16xf32>
    %62 = arith.addf %56, %61 : vector<32x16xf32>
    %c0_52 = arith.constant 0 : index
    %c8_53 = arith.constant 8 : index
    %c0_54 = arith.constant 0 : index
    %63 = vector.load %arg12[%c0_52, %c8_53, %c0_54] : memref<2x32x16xf32, #tpu.memory_space<vmem>>, vector<2x16x16xf32>
    %64 = vector.shape_cast %63 : vector<2x16x16xf32> to vector<32x16xf32>
    %c1_55 = arith.constant 1 : index
    %c0_56 = arith.constant 0 : index
    %c0_57 = arith.constant 0 : index
    %65 = vector.load %arg6[%c1_55, %c0_56, %c0_57] : memref<3x16x16xf32, #tpu.memory_space<vmem>>, vector<1x16x16xf32>
    %66 = vector.shape_cast %65 : vector<1x16x16xf32> to vector<16x16xf32>
    %cst_58 = arith.constant dense<0.000000e+00> : vector<32x16xf32>
    %67 = tpu.matmul %64, %66, %cst_58 {dimension_numbers = #tpu.dot_dimension_numbers<[1], [0], [0], [1], [0, 0, 1, 1], [], []>} : vector<32x16xf32>, vector<16x16xf32>, vector<32x16xf32> -> vector<32x16xf32>
    %68 = arith.addf %62, %67 : vector<32x16xf32>
    %c0_59 = arith.constant 0 : index
    %c9_60 = arith.constant 9 : index
    %c0_61 = arith.constant 0 : index
    %69 = vector.load %arg12[%c0_59, %c9_60, %c0_61] : memref<2x32x16xf32, #tpu.memory_space<vmem>>, vector<2x16x16xf32>
    %70 = vector.shape_cast %69 : vector<2x16x16xf32> to vector<32x16xf32>
    %c2_62 = arith.constant 2 : index
    %c0_63 = arith.constant 0 : index
    %c0_64 = arith.constant 0 : index
    %71 = vector.load %arg6[%c2_62, %c0_63, %c0_64] : memref<3x16x16xf32, #tpu.memory_space<vmem>>, vector<1x16x16xf32>
    %72 = vector.shape_cast %71 : vector<1x16x16xf32> to vector<16x16xf32>
    %cst_65 = arith.constant dense<0.000000e+00> : vector<32x16xf32>
    %73 = tpu.matmul %70, %72, %cst_65 {dimension_numbers = #tpu.dot_dimension_numbers<[1], [0], [0], [1], [0, 0, 1, 1], [], []>} : vector<32x16xf32>, vector<16x16xf32>, vector<32x16xf32> -> vector<32x16xf32>
    %74 = arith.addf %68, %73 : vector<32x16xf32>
    %c0_66 = arith.constant 0 : index
    %c0_67 = arith.constant 0 : index
    %75 = vector.load %arg7[%c0_66, %c0_67] : memref<1x16xf32, #tpu.memory_space<vmem>>, vector<1x16xf32>
    %76 = vector.broadcast %75 : vector<1x16xf32> to vector<32x16xf32>
    %77 = arith.addf %74, %76 : vector<32x16xf32>
    %cst_68 = arith.constant dense<0.000000e+00> : vector<32xf32>
    %78 = vector.multi_reduction <add>, %77, %cst_68 [1] : vector<32x16xf32> to vector<32xf32>
    %79 = vector.shape_cast %78 : vector<32xf32> to vector<32x1xf32>
    %cst_69 = arith.constant 1.600000e+01 : f32
    %80 = vector.broadcast %cst_69 : f32 to vector<32x1xf32>
    %81 = arith.divf %79, %80 : vector<32x1xf32>
    %82 = vector.broadcast %81 : vector<32x1xf32> to vector<32x16xf32>
    %83 = arith.subf %77, %82 : vector<32x16xf32>
    %84 = arith.mulf %83, %83 : vector<32x16xf32>
    %cst_70 = arith.constant dense<0.000000e+00> : vector<32xf32>
    %85 = vector.multi_reduction <add>, %84, %cst_70 [1] : vector<32x16xf32> to vector<32xf32>
    %86 = vector.shape_cast %85 : vector<32xf32> to vector<32x1xf32>
    %cst_71 = arith.constant 1.600000e+01 : f32
    %87 = vector.broadcast %cst_71 : f32 to vector<32x1xf32>
    %88 = arith.divf %86, %87 : vector<32x1xf32>
    %89 = vector.broadcast %81 : vector<32x1xf32> to vector<32x16xf32>
    %90 = arith.subf %77, %89 : vector<32x16xf32>
    %cst_72 = arith.constant 9.99999974E-6 : f32
    %91 = vector.broadcast %cst_72 : f32 to vector<32x1xf32>
    %92 = arith.addf %88, %91 : vector<32x1xf32>
    %93 = math.rsqrt %92 : vector<32x1xf32>
    %94 = vector.broadcast %93 : vector<32x1xf32> to vector<32x16xf32>
    %95 = arith.mulf %90, %94 : vector<32x16xf32>
    %c0_73 = arith.constant 0 : index
    %c0_74 = arith.constant 0 : index
    %96 = vector.load %arg8[%c0_73, %c0_74] : memref<1x16xf32, #tpu.memory_space<vmem>>, vector<1x16xf32>
    %97 = vector.broadcast %96 : vector<1x16xf32> to vector<32x16xf32>
    %98 = arith.mulf %95, %97 : vector<32x16xf32>
    %c0_75 = arith.constant 0 : index
    %c0_76 = arith.constant 0 : index
    %99 = vector.load %arg9[%c0_75, %c0_76] : memref<1x16xf32, #tpu.memory_space<vmem>>, vector<1x16xf32>
    %100 = vector.broadcast %99 : vector<1x16xf32> to vector<32x16xf32>
    %101 = arith.addf %98, %100 : vector<32x16xf32>
    %102 = vector.shape_cast %101 : vector<32x16xf32> to vector<2x16x16xf32>
    %103 = arith.addf %102, %4 : vector<2x16x16xf32>
    %cst_77 = arith.constant 0.000000e+00 : f32
    %104 = vector.broadcast %cst_77 : f32 to vector<2x16x16xf32>
    %105 = arith.maximumf %103, %104 : vector<2x16x16xf32>
    %c0_78 = arith.constant 0 : index
    %c0_79 = arith.constant 0 : index
    %c0_80 = arith.constant 0 : index
    %106 = vector.load %arg10[%c0_78, %c0_79, %c0_80] : memref<2x16x16xf32, #tpu.memory_space<vmem>>, vector<2x16x16xf32>
    tpu.vector_store %arg10[%c0_78, %c0_79, %c0_80], %105 {strides = array<i32>} : memref<2x16x16xf32, #tpu.memory_space<vmem>>, vector<2x16x16xf32>,
    return
  }
  func.func @transform_0(%arg0: i32) -> (i32, i32, i32) {
    %c0_i32 = arith.constant 0 : i32
    %c0_i32_0 = arith.constant 0 : i32
    %c0_i32_1 = arith.constant 0 : i32
    %c0_i32_2 = arith.constant 0 : i32
    return %c0_i32, %c0_i32_0, %c0_i32_1 : i32, i32, i32
  }
  func.func @transform_1(%arg0: i32) -> (i32, i32, i32) {
    %c0_i32 = arith.constant 0 : i32
    %c0_i32_0 = arith.constant 0 : i32
    %c0_i32_1 = arith.constant 0 : i32
    %c0_i32_2 = arith.constant 0 : i32
    return %c0_i32, %c0_i32_0, %c0_i32_1 : i32, i32, i32
  }
  func.func @transform_2(%arg0: i32) -> (i32, i32) {
    %c0_i32 = arith.constant 0 : i32
    %c0_i32_0 = arith.constant 0 : i32
    %c0_i32_1 = arith.constant 0 : i32
    return %c0_i32, %c0_i32_0 : i32, i32
  }
  func.func @transform_3(%arg0: i32) -> (i32, i32) {
    %c0_i32 = arith.constant 0 : i32
    %c0_i32_0 = arith.constant 0 : i32
    %c0_i32_1 = arith.constant 0 : i32
    return %c0_i32, %c0_i32_0 : i32, i32
  }
  func.func @transform_4(%arg0: i32) -> (i32, i32) {
    %c0_i32 = arith.constant 0 : i32
    %c0_i32_0 = arith.constant 0 : i32
    %c0_i32_1 = arith.constant 0 : i32
    return %c0_i32, %c0_i32_0 : i32, i32
  }
  func.func @transform_5(%arg0: i32) -> (i32, i32, i32) {
    %c0_i32 = arith.constant 0 : i32
    %c0_i32_0 = arith.constant 0 : i32
    %c0_i32_1 = arith.constant 0 : i32
    %c0_i32_2 = arith.constant 0 : i32
    return %c0_i32, %c0_i32_0, %c0_i32_1 : i32, i32, i32
  }
  func.func @transform_6(%arg0: i32) -> (i32, i32) {
    %c0_i32 = arith.constant 0 : i32
    %c0_i32_0 = arith.constant 0 : i32
    %c0_i32_1 = arith.constant 0 : i32
    return %c0_i32, %c0_i32_0 : i32, i32
  }
  func.func @transform_7(%arg0: i32) -> (i32, i32) {
    %c0_i32 = arith.constant 0 : i32
    %c0_i32_0 = arith.constant 0 : i32
    %c0_i32_1 = arith.constant 0 : i32
    return %c0_i32, %c0_i32_0 : i32, i32
  }
  func.func @transform_8(%arg0: i32) -> (i32, i32) {
    %c0_i32 = arith.constant 0 : i32
    %c0_i32_0 = arith.constant 0 : i32
    %c0_i32_1 = arith.constant 0 : i32
    return %c0_i32, %c0_i32_0 : i32, i32
  }
  func.func @transform_9(%arg0: i32) -> (i32, i32, i32) {
    %c0_i32 = arith.constant 0 : i32
    %c0_i32_0 = arith.constant 0 : i32
    %c0_i32_1 = arith.constant 0 : i32
    %c0_i32_2 = arith.constant 0 : i32
    return %c0_i32, %c0_i32_0, %c0_i32_1 : i32, i32, i32
  }
}

module attributes {stable_mosaic.version = 11 : i64} {
  func.func @kernel(%arg0: i32, %arg1: memref<2x16x16xf32, #tpu.memory_space<vmem>>, %arg2: memref<3x16x32xf32, #tpu.memory_space<vmem>>, %arg3: memref<1x32xf32, #tpu.memory_space<vmem>>, %arg4: memref<1x32xf32, #tpu.memory_space<vmem>>, %arg5: memref<1x32xf32, #tpu.memory_space<vmem>>, %arg6: memref<3x32x32xf32, #tpu.memory_space<vmem>>, %arg7: memref<1x32xf32, #tpu.memory_space<vmem>>, %arg8: memref<1x32xf32, #tpu.memory_space<vmem>>, %arg9: memref<1x32xf32, #tpu.memory_space<vmem>>, %arg10: memref<3x32x32xf32, #tpu.memory_space<vmem>>, %arg11: memref<1x32xf32, #tpu.memory_space<vmem>>, %arg12: memref<1x32xf32, #tpu.memory_space<vmem>>, %arg13: memref<1x32xf32, #tpu.memory_space<vmem>>, %arg14: memref<2x16x32xf32, #tpu.memory_space<vmem>>, %arg15: memref<2x32xf32, #tpu.memory_space<vmem>>, %arg16: memref<2x32x16xf32, #tpu.memory_space<vmem>>, %arg17: memref<2x32x32xf32, #tpu.memory_space<vmem>>) attributes {dimension_semantics = [#tpu.dimension_semantics<arbitrary>], iteration_bounds = array<i64: 1>, scalar_prefetch = 0 : i64, scratch_operands = 2 : i64, tpu.core_type = #tpu.core_type<tc>, window_params = [{pipeline_mode = #tpu.pipeline_mode<synchronous>, transform_indices = @transform_0, window_bounds = array<i64: 2, 16, 16>}, {pipeline_mode = #tpu.pipeline_mode<synchronous>, transform_indices = @transform_1, window_bounds = array<i64: 3, 16, 32>}, {pipeline_mode = #tpu.pipeline_mode<synchronous>, transform_indices = @transform_2, window_bounds = array<i64: 1, 32>}, {pipeline_mode = #tpu.pipeline_mode<synchronous>, transform_indices = @transform_3, window_bounds = array<i64: 1, 32>}, {pipeline_mode = #tpu.pipeline_mode<synchronous>, transform_indices = @transform_4, window_bounds = array<i64: 1, 32>}, {pipeline_mode = #tpu.pipeline_mode<synchronous>, transform_indices = @transform_5, window_bounds = array<i64: 3, 32, 32>}, {pipeline_mode = #tpu.pipeline_mode<synchronous>, transform_indices = @transform_6, window_bounds = array<i64: 1, 32>}, {pipeline_mode = #tpu.pipeline_mode<synchronous>, transform_indices = @transform_7, window_bounds = array<i64: 1, 32>}, {pipeline_mode = #tpu.pipeline_mode<synchronous>, transform_indices = @transform_8, window_bounds = array<i64: 1, 32>}, {pipeline_mode = #tpu.pipeline_mode<synchronous>, transform_indices = @transform_9, window_bounds = array<i64: 3, 32, 32>}, {pipeline_mode = #tpu.pipeline_mode<synchronous>, transform_indices = @transform_10, window_bounds = array<i64: 1, 32>}, {pipeline_mode = #tpu.pipeline_mode<synchronous>, transform_indices = @transform_11, window_bounds = array<i64: 1, 32>}, {pipeline_mode = #tpu.pipeline_mode<synchronous>, transform_indices = @transform_12, window_bounds = array<i64: 1, 32>}, {pipeline_mode = #tpu.pipeline_mode<synchronous>, transform_indices = @transform_13, window_bounds = array<i64: 2, 16, 32>}, {pipeline_mode = #tpu.pipeline_mode<synchronous>, transform_indices = @transform_14, window_bounds = array<i64: 2, 32>}]} {
    %cst = arith.constant 0.000000e+00 : f32
    %0 = vector.broadcast %cst : f32 to vector<2x32x16xf32>
    %c0 = arith.constant 0 : index
    %c0_0 = arith.constant 0 : index
    %c0_1 = arith.constant 0 : index
    %1 = vector.load %arg16[%c0, %c0_0, %c0_1] : memref<2x32x16xf32, #tpu.memory_space<vmem>>, vector<2x32x16xf32>
    tpu.vector_store %arg16[%c0, %c0_0, %c0_1], %0 {strides = array<i32>} : memref<2x32x16xf32, #tpu.memory_space<vmem>>, vector<2x32x16xf32>,
    %cst_2 = arith.constant 0.000000e+00 : f32
    %2 = vector.broadcast %cst_2 : f32 to vector<2x32x32xf32>
    %c0_3 = arith.constant 0 : index
    %c0_4 = arith.constant 0 : index
    %c0_5 = arith.constant 0 : index
    %3 = vector.load %arg17[%c0_3, %c0_4, %c0_5] : memref<2x32x32xf32, #tpu.memory_space<vmem>>, vector<2x32x32xf32>
    tpu.vector_store %arg17[%c0_3, %c0_4, %c0_5], %2 {strides = array<i32>} : memref<2x32x32xf32, #tpu.memory_space<vmem>>, vector<2x32x32xf32>,
    %c0_6 = arith.constant 0 : index
    %c0_7 = arith.constant 0 : index
    %c0_8 = arith.constant 0 : index
    %4 = vector.load %arg1[%c0_6, %c0_7, %c0_8] : memref<2x16x16xf32, #tpu.memory_space<vmem>>, vector<2x16x16xf32>
    %c0_9 = arith.constant 0 : index
    %c8 = arith.constant 8 : index
    %c0_10 = arith.constant 0 : index
    %5 = vector.load %arg16[%c0_9, %c8, %c0_10] : memref<2x32x16xf32, #tpu.memory_space<vmem>>, vector<2x16x16xf32>
    tpu.vector_store %arg16[%c0_9, %c8, %c0_10], %4 {strides = array<i32>} : memref<2x32x16xf32, #tpu.memory_space<vmem>>, vector<2x16x16xf32>,
    %cst_11 = arith.constant 0.000000e+00 : f32
    %6 = vector.broadcast %cst_11 : f32 to vector<32x32xf32>
    %c0_12 = arith.constant 0 : index
    %c7 = arith.constant 7 : index
    %c0_13 = arith.constant 0 : index
    %7 = vector.load %arg16[%c0_12, %c7, %c0_13] : memref<2x32x16xf32, #tpu.memory_space<vmem>>, vector<2x16x16xf32>
    %8 = vector.shape_cast %7 : vector<2x16x16xf32> to vector<32x16xf32>
    %c0_14 = arith.constant 0 : index
    %c0_15 = arith.constant 0 : index
    %c0_16 = arith.constant 0 : index
    %9 = vector.load %arg2[%c0_14, %c0_15, %c0_16] : memref<3x16x32xf32, #tpu.memory_space<vmem>>, vector<1x16x32xf32>
    %10 = vector.shape_cast %9 : vector<1x16x32xf32> to vector<16x32xf32>
    %cst_17 = arith.constant dense<0.000000e+00> : vector<32x32xf32>
    %11 = tpu.matmul %8, %10, %cst_17 {dimension_numbers = #tpu.dot_dimension_numbers<[1], [0], [0], [1], [0, 0, 1, 1], [], []>} : vector<32x16xf32>, vector<16x32xf32>, vector<32x32xf32> -> vector<32x32xf32>
    %12 = arith.addf %6, %11 : vector<32x32xf32>
    %c0_18 = arith.constant 0 : index
    %c8_19 = arith.constant 8 : index
    %c0_20 = arith.constant 0 : index
    %13 = vector.load %arg16[%c0_18, %c8_19, %c0_20] : memref<2x32x16xf32, #tpu.memory_space<vmem>>, vector<2x16x16xf32>
    %14 = vector.shape_cast %13 : vector<2x16x16xf32> to vector<32x16xf32>
    %c1 = arith.constant 1 : index
    %c0_21 = arith.constant 0 : index
    %c0_22 = arith.constant 0 : index
    %15 = vector.load %arg2[%c1, %c0_21, %c0_22] : memref<3x16x32xf32, #tpu.memory_space<vmem>>, vector<1x16x32xf32>
    %16 = vector.shape_cast %15 : vector<1x16x32xf32> to vector<16x32xf32>
    %cst_23 = arith.constant dense<0.000000e+00> : vector<32x32xf32>
    %17 = tpu.matmul %14, %16, %cst_23 {dimension_numbers = #tpu.dot_dimension_numbers<[1], [0], [0], [1], [0, 0, 1, 1], [], []>} : vector<32x16xf32>, vector<16x32xf32>, vector<32x32xf32> -> vector<32x32xf32>
    %18 = arith.addf %12, %17 : vector<32x32xf32>
    %c0_24 = arith.constant 0 : index
    %c9 = arith.constant 9 : index
    %c0_25 = arith.constant 0 : index
    %19 = vector.load %arg16[%c0_24, %c9, %c0_25] : memref<2x32x16xf32, #tpu.memory_space<vmem>>, vector<2x16x16xf32>
    %20 = vector.shape_cast %19 : vector<2x16x16xf32> to vector<32x16xf32>
    %c2 = arith.constant 2 : index
    %c0_26 = arith.constant 0 : index
    %c0_27 = arith.constant 0 : index
    %21 = vector.load %arg2[%c2, %c0_26, %c0_27] : memref<3x16x32xf32, #tpu.memory_space<vmem>>, vector<1x16x32xf32>
    %22 = vector.shape_cast %21 : vector<1x16x32xf32> to vector<16x32xf32>
    %cst_28 = arith.constant dense<0.000000e+00> : vector<32x32xf32>
    %23 = tpu.matmul %20, %22, %cst_28 {dimension_numbers = #tpu.dot_dimension_numbers<[1], [0], [0], [1], [0, 0, 1, 1], [], []>} : vector<32x16xf32>, vector<16x32xf32>, vector<32x32xf32> -> vector<32x32xf32>
    %24 = arith.addf %18, %23 : vector<32x32xf32>
    %c0_29 = arith.constant 0 : index
    %c0_30 = arith.constant 0 : index
    %25 = vector.load %arg3[%c0_29, %c0_30] : memref<1x32xf32, #tpu.memory_space<vmem>>, vector<1x32xf32>
    %26 = vector.broadcast %25 : vector<1x32xf32> to vector<32x32xf32>
    %27 = arith.addf %24, %26 : vector<32x32xf32>
    %cst_31 = arith.constant dense<0.000000e+00> : vector<32xf32>
    %28 = vector.multi_reduction <add>, %27, %cst_31 [1] : vector<32x32xf32> to vector<32xf32>
    %29 = vector.shape_cast %28 : vector<32xf32> to vector<32x1xf32>
    %cst_32 = arith.constant 3.200000e+01 : f32
    %30 = vector.broadcast %cst_32 : f32 to vector<32x1xf32>
    %31 = arith.divf %29, %30 : vector<32x1xf32>
    %32 = vector.broadcast %31 : vector<32x1xf32> to vector<32x32xf32>
    %33 = arith.subf %27, %32 : vector<32x32xf32>
    %34 = arith.mulf %33, %33 : vector<32x32xf32>
    %cst_33 = arith.constant dense<0.000000e+00> : vector<32xf32>
    %35 = vector.multi_reduction <add>, %34, %cst_33 [1] : vector<32x32xf32> to vector<32xf32>
    %36 = vector.shape_cast %35 : vector<32xf32> to vector<32x1xf32>
    %cst_34 = arith.constant 3.200000e+01 : f32
    %37 = vector.broadcast %cst_34 : f32 to vector<32x1xf32>
    %38 = arith.divf %36, %37 : vector<32x1xf32>
    %39 = vector.broadcast %31 : vector<32x1xf32> to vector<32x32xf32>
    %40 = arith.subf %27, %39 : vector<32x32xf32>
    %cst_35 = arith.constant 9.99999974E-6 : f32
    %41 = vector.broadcast %cst_35 : f32 to vector<32x1xf32>
    %42 = arith.addf %38, %41 : vector<32x1xf32>
    %43 = math.rsqrt %42 : vector<32x1xf32>
    %44 = vector.broadcast %43 : vector<32x1xf32> to vector<32x32xf32>
    %45 = arith.mulf %40, %44 : vector<32x32xf32>
    %c0_36 = arith.constant 0 : index
    %c0_37 = arith.constant 0 : index
    %46 = vector.load %arg4[%c0_36, %c0_37] : memref<1x32xf32, #tpu.memory_space<vmem>>, vector<1x32xf32>
    %47 = vector.broadcast %46 : vector<1x32xf32> to vector<32x32xf32>
    %48 = arith.mulf %45, %47 : vector<32x32xf32>
    %c0_38 = arith.constant 0 : index
    %c0_39 = arith.constant 0 : index
    %49 = vector.load %arg5[%c0_38, %c0_39] : memref<1x32xf32, #tpu.memory_space<vmem>>, vector<1x32xf32>
    %50 = vector.broadcast %49 : vector<1x32xf32> to vector<32x32xf32>
    %51 = arith.addf %48, %50 : vector<32x32xf32>
    %52 = vector.shape_cast %51 : vector<32x32xf32> to vector<2x16x32xf32>
    %c0_40 = arith.constant 0 : index
    %c8_41 = arith.constant 8 : index
    %c0_42 = arith.constant 0 : index
    %53 = vector.load %arg17[%c0_40, %c8_41, %c0_42] : memref<2x32x32xf32, #tpu.memory_space<vmem>>, vector<2x16x32xf32>
    tpu.vector_store %arg17[%c0_40, %c8_41, %c0_42], %52 {strides = array<i32>} : memref<2x32x32xf32, #tpu.memory_space<vmem>>, vector<2x16x32xf32>,
    %cst_43 = arith.constant 0.000000e+00 : f32
    %54 = vector.broadcast %cst_43 : f32 to vector<32x32xf32>
    %c0_44 = arith.constant 0 : index
    %c7_45 = arith.constant 7 : index
    %c0_46 = arith.constant 0 : index
    %55 = vector.load %arg17[%c0_44, %c7_45, %c0_46] : memref<2x32x32xf32, #tpu.memory_space<vmem>>, vector<2x16x32xf32>
    %56 = vector.shape_cast %55 : vector<2x16x32xf32> to vector<32x32xf32>
    %c0_47 = arith.constant 0 : index
    %c0_48 = arith.constant 0 : index
    %c0_49 = arith.constant 0 : index
    %57 = vector.load %arg6[%c0_47, %c0_48, %c0_49] : memref<3x32x32xf32, #tpu.memory_space<vmem>>, vector<1x32x32xf32>
    %58 = vector.shape_cast %57 : vector<1x32x32xf32> to vector<32x32xf32>
    %cst_50 = arith.constant dense<0.000000e+00> : vector<32x32xf32>
    %59 = tpu.matmul %56, %58, %cst_50 {dimension_numbers = #tpu.dot_dimension_numbers<[1], [0], [0], [1], [0, 0, 1, 1], [], []>} : vector<32x32xf32>, vector<32x32xf32>, vector<32x32xf32> -> vector<32x32xf32>
    %60 = arith.addf %54, %59 : vector<32x32xf32>
    %c0_51 = arith.constant 0 : index
    %c8_52 = arith.constant 8 : index
    %c0_53 = arith.constant 0 : index
    %61 = vector.load %arg17[%c0_51, %c8_52, %c0_53] : memref<2x32x32xf32, #tpu.memory_space<vmem>>, vector<2x16x32xf32>
    %62 = vector.shape_cast %61 : vector<2x16x32xf32> to vector<32x32xf32>
    %c1_54 = arith.constant 1 : index
    %c0_55 = arith.constant 0 : index
    %c0_56 = arith.constant 0 : index
    %63 = vector.load %arg6[%c1_54, %c0_55, %c0_56] : memref<3x32x32xf32, #tpu.memory_space<vmem>>, vector<1x32x32xf32>
    %64 = vector.shape_cast %63 : vector<1x32x32xf32> to vector<32x32xf32>
    %cst_57 = arith.constant dense<0.000000e+00> : vector<32x32xf32>
    %65 = tpu.matmul %62, %64, %cst_57 {dimension_numbers = #tpu.dot_dimension_numbers<[1], [0], [0], [1], [0, 0, 1, 1], [], []>} : vector<32x32xf32>, vector<32x32xf32>, vector<32x32xf32> -> vector<32x32xf32>
    %66 = arith.addf %60, %65 : vector<32x32xf32>
    %c0_58 = arith.constant 0 : index
    %c9_59 = arith.constant 9 : index
    %c0_60 = arith.constant 0 : index
    %67 = vector.load %arg17[%c0_58, %c9_59, %c0_60] : memref<2x32x32xf32, #tpu.memory_space<vmem>>, vector<2x16x32xf32>
    %68 = vector.shape_cast %67 : vector<2x16x32xf32> to vector<32x32xf32>
    %c2_61 = arith.constant 2 : index
    %c0_62 = arith.constant 0 : index
    %c0_63 = arith.constant 0 : index
    %69 = vector.load %arg6[%c2_61, %c0_62, %c0_63] : memref<3x32x32xf32, #tpu.memory_space<vmem>>, vector<1x32x32xf32>
    %70 = vector.shape_cast %69 : vector<1x32x32xf32> to vector<32x32xf32>
    %cst_64 = arith.constant dense<0.000000e+00> : vector<32x32xf32>
    %71 = tpu.matmul %68, %70, %cst_64 {dimension_numbers = #tpu.dot_dimension_numbers<[1], [0], [0], [1], [0, 0, 1, 1], [], []>} : vector<32x32xf32>, vector<32x32xf32>, vector<32x32xf32> -> vector<32x32xf32>
    %72 = arith.addf %66, %71 : vector<32x32xf32>
    %c0_65 = arith.constant 0 : index
    %c0_66 = arith.constant 0 : index
    %73 = vector.load %arg7[%c0_65, %c0_66] : memref<1x32xf32, #tpu.memory_space<vmem>>, vector<1x32xf32>
    %74 = vector.broadcast %73 : vector<1x32xf32> to vector<32x32xf32>
    %75 = arith.addf %72, %74 : vector<32x32xf32>
    %cst_67 = arith.constant dense<0.000000e+00> : vector<32xf32>
    %76 = vector.multi_reduction <add>, %75, %cst_67 [1] : vector<32x32xf32> to vector<32xf32>
    %77 = vector.shape_cast %76 : vector<32xf32> to vector<32x1xf32>
    %cst_68 = arith.constant 3.200000e+01 : f32
    %78 = vector.broadcast %cst_68 : f32 to vector<32x1xf32>
    %79 = arith.divf %77, %78 : vector<32x1xf32>
    %80 = vector.broadcast %79 : vector<32x1xf32> to vector<32x32xf32>
    %81 = arith.subf %75, %80 : vector<32x32xf32>
    %82 = arith.mulf %81, %81 : vector<32x32xf32>
    %cst_69 = arith.constant dense<0.000000e+00> : vector<32xf32>
    %83 = vector.multi_reduction <add>, %82, %cst_69 [1] : vector<32x32xf32> to vector<32xf32>
    %84 = vector.shape_cast %83 : vector<32xf32> to vector<32x1xf32>
    %cst_70 = arith.constant 3.200000e+01 : f32
    %85 = vector.broadcast %cst_70 : f32 to vector<32x1xf32>
    %86 = arith.divf %84, %85 : vector<32x1xf32>
    %87 = vector.broadcast %79 : vector<32x1xf32> to vector<32x32xf32>
    %88 = arith.subf %75, %87 : vector<32x32xf32>
    %cst_71 = arith.constant 9.99999974E-6 : f32
    %89 = vector.broadcast %cst_71 : f32 to vector<32x1xf32>
    %90 = arith.addf %86, %89 : vector<32x1xf32>
    %91 = math.rsqrt %90 : vector<32x1xf32>
    %92 = vector.broadcast %91 : vector<32x1xf32> to vector<32x32xf32>
    %93 = arith.mulf %88, %92 : vector<32x32xf32>
    %c0_72 = arith.constant 0 : index
    %c0_73 = arith.constant 0 : index
    %94 = vector.load %arg8[%c0_72, %c0_73] : memref<1x32xf32, #tpu.memory_space<vmem>>, vector<1x32xf32>
    %95 = vector.broadcast %94 : vector<1x32xf32> to vector<32x32xf32>
    %96 = arith.mulf %93, %95 : vector<32x32xf32>
    %c0_74 = arith.constant 0 : index
    %c0_75 = arith.constant 0 : index
    %97 = vector.load %arg9[%c0_74, %c0_75] : memref<1x32xf32, #tpu.memory_space<vmem>>, vector<1x32xf32>
    %98 = vector.broadcast %97 : vector<1x32xf32> to vector<32x32xf32>
    %99 = arith.addf %96, %98 : vector<32x32xf32>
    %cst_76 = arith.constant 0.000000e+00 : f32
    %100 = vector.broadcast %cst_76 : f32 to vector<32x32xf32>
    %101 = arith.maximumf %99, %100 : vector<32x32xf32>
    %102 = vector.shape_cast %101 : vector<32x32xf32> to vector<2x16x32xf32>
    %c0_77 = arith.constant 0 : index
    %c8_78 = arith.constant 8 : index
    %c0_79 = arith.constant 0 : index
    %103 = vector.load %arg17[%c0_77, %c8_78, %c0_79] : memref<2x32x32xf32, #tpu.memory_space<vmem>>, vector<2x16x32xf32>
    tpu.vector_store %arg17[%c0_77, %c8_78, %c0_79], %102 {strides = array<i32>} : memref<2x32x32xf32, #tpu.memory_space<vmem>>, vector<2x16x32xf32>,
    %cst_80 = arith.constant 0.000000e+00 : f32
    %104 = vector.broadcast %cst_80 : f32 to vector<32x32xf32>
    %c0_81 = arith.constant 0 : index
    %c7_82 = arith.constant 7 : index
    %c0_83 = arith.constant 0 : index
    %105 = vector.load %arg17[%c0_81, %c7_82, %c0_83] : memref<2x32x32xf32, #tpu.memory_space<vmem>>, vector<2x16x32xf32>
    %106 = vector.shape_cast %105 : vector<2x16x32xf32> to vector<32x32xf32>
    %c0_84 = arith.constant 0 : index
    %c0_85 = arith.constant 0 : index
    %c0_86 = arith.constant 0 : index
    %107 = vector.load %arg10[%c0_84, %c0_85, %c0_86] : memref<3x32x32xf32, #tpu.memory_space<vmem>>, vector<1x32x32xf32>
    %108 = vector.shape_cast %107 : vector<1x32x32xf32> to vector<32x32xf32>
    %cst_87 = arith.constant dense<0.000000e+00> : vector<32x32xf32>
    %109 = tpu.matmul %106, %108, %cst_87 {dimension_numbers = #tpu.dot_dimension_numbers<[1], [0], [0], [1], [0, 0, 1, 1], [], []>} : vector<32x32xf32>, vector<32x32xf32>, vector<32x32xf32> -> vector<32x32xf32>
    %110 = arith.addf %104, %109 : vector<32x32xf32>
    %c0_88 = arith.constant 0 : index
    %c8_89 = arith.constant 8 : index
    %c0_90 = arith.constant 0 : index
    %111 = vector.load %arg17[%c0_88, %c8_89, %c0_90] : memref<2x32x32xf32, #tpu.memory_space<vmem>>, vector<2x16x32xf32>
    %112 = vector.shape_cast %111 : vector<2x16x32xf32> to vector<32x32xf32>
    %c1_91 = arith.constant 1 : index
    %c0_92 = arith.constant 0 : index
    %c0_93 = arith.constant 0 : index
    %113 = vector.load %arg10[%c1_91, %c0_92, %c0_93] : memref<3x32x32xf32, #tpu.memory_space<vmem>>, vector<1x32x32xf32>
    %114 = vector.shape_cast %113 : vector<1x32x32xf32> to vector<32x32xf32>
    %cst_94 = arith.constant dense<0.000000e+00> : vector<32x32xf32>
    %115 = tpu.matmul %112, %114, %cst_94 {dimension_numbers = #tpu.dot_dimension_numbers<[1], [0], [0], [1], [0, 0, 1, 1], [], []>} : vector<32x32xf32>, vector<32x32xf32>, vector<32x32xf32> -> vector<32x32xf32>
    %116 = arith.addf %110, %115 : vector<32x32xf32>
    %c0_95 = arith.constant 0 : index
    %c9_96 = arith.constant 9 : index
    %c0_97 = arith.constant 0 : index
    %117 = vector.load %arg17[%c0_95, %c9_96, %c0_97] : memref<2x32x32xf32, #tpu.memory_space<vmem>>, vector<2x16x32xf32>
    %118 = vector.shape_cast %117 : vector<2x16x32xf32> to vector<32x32xf32>
    %c2_98 = arith.constant 2 : index
    %c0_99 = arith.constant 0 : index
    %c0_100 = arith.constant 0 : index
    %119 = vector.load %arg10[%c2_98, %c0_99, %c0_100] : memref<3x32x32xf32, #tpu.memory_space<vmem>>, vector<1x32x32xf32>
    %120 = vector.shape_cast %119 : vector<1x32x32xf32> to vector<32x32xf32>
    %cst_101 = arith.constant dense<0.000000e+00> : vector<32x32xf32>
    %121 = tpu.matmul %118, %120, %cst_101 {dimension_numbers = #tpu.dot_dimension_numbers<[1], [0], [0], [1], [0, 0, 1, 1], [], []>} : vector<32x32xf32>, vector<32x32xf32>, vector<32x32xf32> -> vector<32x32xf32>
    %122 = arith.addf %116, %121 : vector<32x32xf32>
    %c0_102 = arith.constant 0 : index
    %c0_103 = arith.constant 0 : index
    %123 = vector.load %arg11[%c0_102, %c0_103] : memref<1x32xf32, #tpu.memory_space<vmem>>, vector<1x32xf32>
    %124 = vector.broadcast %123 : vector<1x32xf32> to vector<32x32xf32>
    %125 = arith.addf %122, %124 : vector<32x32xf32>
    %cst_104 = arith.constant dense<0.000000e+00> : vector<32xf32>
    %126 = vector.multi_reduction <add>, %125, %cst_104 [1] : vector<32x32xf32> to vector<32xf32>
    %127 = vector.shape_cast %126 : vector<32xf32> to vector<32x1xf32>
    %cst_105 = arith.constant 3.200000e+01 : f32
    %128 = vector.broadcast %cst_105 : f32 to vector<32x1xf32>
    %129 = arith.divf %127, %128 : vector<32x1xf32>
    %130 = vector.broadcast %129 : vector<32x1xf32> to vector<32x32xf32>
    %131 = arith.subf %125, %130 : vector<32x32xf32>
    %132 = arith.mulf %131, %131 : vector<32x32xf32>
    %cst_106 = arith.constant dense<0.000000e+00> : vector<32xf32>
    %133 = vector.multi_reduction <add>, %132, %cst_106 [1] : vector<32x32xf32> to vector<32xf32>
    %134 = vector.shape_cast %133 : vector<32xf32> to vector<32x1xf32>
    %cst_107 = arith.constant 3.200000e+01 : f32
    %135 = vector.broadcast %cst_107 : f32 to vector<32x1xf32>
    %136 = arith.divf %134, %135 : vector<32x1xf32>
    %137 = vector.broadcast %129 : vector<32x1xf32> to vector<32x32xf32>
    %138 = arith.subf %125, %137 : vector<32x32xf32>
    %cst_108 = arith.constant 9.99999974E-6 : f32
    %139 = vector.broadcast %cst_108 : f32 to vector<32x1xf32>
    %140 = arith.addf %136, %139 : vector<32x1xf32>
    %141 = math.rsqrt %140 : vector<32x1xf32>
    %142 = vector.broadcast %141 : vector<32x1xf32> to vector<32x32xf32>
    %143 = arith.mulf %138, %142 : vector<32x32xf32>
    %c0_109 = arith.constant 0 : index
    %c0_110 = arith.constant 0 : index
    %144 = vector.load %arg12[%c0_109, %c0_110] : memref<1x32xf32, #tpu.memory_space<vmem>>, vector<1x32xf32>
    %145 = vector.broadcast %144 : vector<1x32xf32> to vector<32x32xf32>
    %146 = arith.mulf %143, %145 : vector<32x32xf32>
    %c0_111 = arith.constant 0 : index
    %c0_112 = arith.constant 0 : index
    %147 = vector.load %arg13[%c0_111, %c0_112] : memref<1x32xf32, #tpu.memory_space<vmem>>, vector<1x32xf32>
    %148 = vector.broadcast %147 : vector<1x32xf32> to vector<32x32xf32>
    %149 = arith.addf %146, %148 : vector<32x32xf32>
    %150 = vector.shape_cast %149 : vector<32x32xf32> to vector<2x16x32xf32>
    %151 = arith.addf %150, %52 : vector<2x16x32xf32>
    %cst_113 = arith.constant 0.000000e+00 : f32
    %152 = vector.broadcast %cst_113 : f32 to vector<2x16x32xf32>
    %153 = arith.maximumf %151, %152 : vector<2x16x32xf32>
    %c0_114 = arith.constant 0 : index
    %c0_115 = arith.constant 0 : index
    %c0_116 = arith.constant 0 : index
    %154 = vector.load %arg14[%c0_114, %c0_115, %c0_116] : memref<2x16x32xf32, #tpu.memory_space<vmem>>, vector<2x16x32xf32>
    tpu.vector_store %arg14[%c0_114, %c0_115, %c0_116], %153 {strides = array<i32>} : memref<2x16x32xf32, #tpu.memory_space<vmem>>, vector<2x16x32xf32>,
    %cst_117 = arith.constant dense<0.000000e+00> : vector<2x32xf32>
    %155 = vector.multi_reduction <add>, %153, %cst_117 [1] : vector<2x16x32xf32> to vector<2x32xf32>
    %cst_118 = arith.constant 1.600000e+01 : f32
    %156 = vector.broadcast %cst_118 : f32 to vector<2x32xf32>
    %157 = arith.divf %155, %156 : vector<2x32xf32>
    %c0_119 = arith.constant 0 : index
    %c0_120 = arith.constant 0 : index
    %158 = vector.load %arg15[%c0_119, %c0_120] : memref<2x32xf32, #tpu.memory_space<vmem>>, vector<2x32xf32>
    tpu.vector_store %arg15[%c0_119, %c0_120], %157 {strides = array<i32>} : memref<2x32xf32, #tpu.memory_space<vmem>>, vector<2x32xf32>,
    return
  }
  func.func @transform_0(%arg0: i32) -> (i32, i32, i32) {
    %c0_i32 = arith.constant 0 : i32
    %c0_i32_0 = arith.constant 0 : i32
    %c0_i32_1 = arith.constant 0 : i32
    %c0_i32_2 = arith.constant 0 : i32
    return %c0_i32, %c0_i32_0, %c0_i32_1 : i32, i32, i32
  }
  func.func @transform_1(%arg0: i32) -> (i32, i32, i32) {
    %c0_i32 = arith.constant 0 : i32
    %c0_i32_0 = arith.constant 0 : i32
    %c0_i32_1 = arith.constant 0 : i32
    %c0_i32_2 = arith.constant 0 : i32
    return %c0_i32, %c0_i32_0, %c0_i32_1 : i32, i32, i32
  }
  func.func @transform_2(%arg0: i32) -> (i32, i32) {
    %c0_i32 = arith.constant 0 : i32
    %c0_i32_0 = arith.constant 0 : i32
    %c0_i32_1 = arith.constant 0 : i32
    return %c0_i32, %c0_i32_0 : i32, i32
  }
  func.func @transform_3(%arg0: i32) -> (i32, i32) {
    %c0_i32 = arith.constant 0 : i32
    %c0_i32_0 = arith.constant 0 : i32
    %c0_i32_1 = arith.constant 0 : i32
    return %c0_i32, %c0_i32_0 : i32, i32
  }
  func.func @transform_4(%arg0: i32) -> (i32, i32) {
    %c0_i32 = arith.constant 0 : i32
    %c0_i32_0 = arith.constant 0 : i32
    %c0_i32_1 = arith.constant 0 : i32
    return %c0_i32, %c0_i32_0 : i32, i32
  }
  func.func @transform_5(%arg0: i32) -> (i32, i32, i32) {
    %c0_i32 = arith.constant 0 : i32
    %c0_i32_0 = arith.constant 0 : i32
    %c0_i32_1 = arith.constant 0 : i32
    %c0_i32_2 = arith.constant 0 : i32
    return %c0_i32, %c0_i32_0, %c0_i32_1 : i32, i32, i32
  }
  func.func @transform_6(%arg0: i32) -> (i32, i32) {
    %c0_i32 = arith.constant 0 : i32
    %c0_i32_0 = arith.constant 0 : i32
    %c0_i32_1 = arith.constant 0 : i32
    return %c0_i32, %c0_i32_0 : i32, i32
  }
  func.func @transform_7(%arg0: i32) -> (i32, i32) {
    %c0_i32 = arith.constant 0 : i32
    %c0_i32_0 = arith.constant 0 : i32
    %c0_i32_1 = arith.constant 0 : i32
    return %c0_i32, %c0_i32_0 : i32, i32
  }
  func.func @transform_8(%arg0: i32) -> (i32, i32) {
    %c0_i32 = arith.constant 0 : i32
    %c0_i32_0 = arith.constant 0 : i32
    %c0_i32_1 = arith.constant 0 : i32
    return %c0_i32, %c0_i32_0 : i32, i32
  }
  func.func @transform_9(%arg0: i32) -> (i32, i32, i32) {
    %c0_i32 = arith.constant 0 : i32
    %c0_i32_0 = arith.constant 0 : i32
    %c0_i32_1 = arith.constant 0 : i32
    %c0_i32_2 = arith.constant 0 : i32
    return %c0_i32, %c0_i32_0, %c0_i32_1 : i32, i32, i32
  }
  func.func @transform_10(%arg0: i32) -> (i32, i32) {
    %c0_i32 = arith.constant 0 : i32
    %c0_i32_0 = arith.constant 0 : i32
    %c0_i32_1 = arith.constant 0 : i32
    return %c0_i32, %c0_i32_0 : i32, i32
  }
  func.func @transform_11(%arg0: i32) -> (i32, i32) {
    %c0_i32 = arith.constant 0 : i32
    %c0_i32_0 = arith.constant 0 : i32
    %c0_i32_1 = arith.constant 0 : i32
    return %c0_i32, %c0_i32_0 : i32, i32
  }
  func.func @transform_12(%arg0: i32) -> (i32, i32) {
    %c0_i32 = arith.constant 0 : i32
    %c0_i32_0 = arith.constant 0 : i32
    %c0_i32_1 = arith.constant 0 : i32
    return %c0_i32, %c0_i32_0 : i32, i32
  }
  func.func @transform_13(%arg0: i32) -> (i32, i32, i32) {
    %c0_i32 = arith.constant 0 : i32
    %c0_i32_0 = arith.constant 0 : i32
    %c0_i32_1 = arith.constant 0 : i32
    %c0_i32_2 = arith.constant 0 : i32
    return %c0_i32, %c0_i32_0, %c0_i32_1 : i32, i32, i32
  }
  func.func @transform_14(%arg0: i32) -> (i32, i32) {
    %c0_i32 = arith.constant 0 : i32
    %c0_i32_0 = arith.constant 0 : i32
    %c0_i32_1 = arith.constant 0 : i32
    return %c0_i32, %c0_i32_0 : i32, i32
  }
}

</mosaic_0001>

<llo_original>
// kernel: squeeze.8
$region0: #{squeeze.8}
  %s0 = inlined_call_operand.vmem [shape: f32[1,2,60], index: 0, kind: input, shape index: {}]
  %s1 = inlined_call_operand.vmem [shape: f32[2,6,10], index: 1, kind: output, shape index: {}]
  $region1: #{squeeze.8} parent=0
    #allocation0 [shape = 'u8[4096]{0}', space=vmem, size = 0x1000, scoped, tag = 'scoped mem for input reshape']
    %s3 = ssub.s32 4, 1
    %v4 = vld [vmem:[%s0] sm:%s3]
    %5 = vst [vmem:[#allocation0] sm:%s3] %v4
    %v6 = vld [vmem:[#allocation0] sm:$0x3]
    %vm7 = vcmask 80896
    %8 = vst.msk [vmem:[%s1] ss:$8 sm:$0x3] %vm7, %v6
    %v9 = vld [vmem:[#allocation0] sm:$0x3]
    %10 = vrot.lane.b32.xlu0 %v9, 118
    %v11 = vpop.permute.xlu0 %10
    %vm12 = vcmask 80896
    %s13 = scalar_lea.vmem %s1, 1
    %14 = vst.msk [vmem:[%s13] ss:$8 sm:$0x3] %vm12, %v11
    %v15 = vld [vmem:[#allocation0] sm:$0x3]
    %16 = vrot.lane.b32.xlu0 %v15, 108
    %v17 = vpop.permute.xlu0 %16
    %vm18 = vcmask 80896
    %s19 = scalar_lea.vmem %s1, 2
    %20 = vst.msk [vmem:[%s19] ss:$8 sm:$0x3] %vm18, %v17
    %v21 = vld [vmem:[#allocation0] sm:$0x3]
    %22 = vrot.lane.b32.xlu0 %v21, 98
    %v23 = vpop.permute.xlu0 %22
    %vm24 = vcmask 80896
    %s25 = scalar_lea.vmem %s1, 3
    %26 = vst.msk [vmem:[%s25] ss:$8 sm:$0x3] %vm24, %v23
    %v27 = vld [vmem:[#allocation0] sm:$0x3]
    %28 = vrot.lane.b32.xlu0 %v27, 88
    %v29 = vpop.permute.xlu0 %28
    %vm30 = vcmask 80896
    %s31 = scalar_lea.vmem %s1, 4
    %32 = vst.msk [vmem:[%s31] ss:$8 sm:$0x3] %vm30, %v29
    %v33 = vld [vmem:[#allocation0] sm:$0x3]
    %34 = vrot.lane.b32.xlu0 %v33, 78
    %v35 = vpop.permute.xlu0 %34
    %vm36 = vcmask 80896
    %s37 = scalar_lea.vmem %s1, 5
    %38 = vst.msk [vmem:[%s37] ss:$8 sm:$0x3] %vm36, %v35

// kernel: squeeze.12
$region0: #{squeeze.12}
  %s0 = inlined_call_operand.vmem [shape: f32[1,2,40], index: 0, kind: input, shape index: {}]
  %s1 = inlined_call_operand.vmem [shape: f32[2,10,4], index: 1, kind: output, shape index: {}]
  $region1: #{squeeze.12} parent=0
    #allocation0 [shape = 'u8[4096]{0}', space=vmem, size = 0x1000, scoped, tag = 'scoped mem for input reshape']
    %s3 = ssub.s32 4, 1
    %v4 = vld [vmem:[%s0] sm:%s3]
    %5 = vst [vmem:[#allocation0] sm:%s3] %v4
    %v6 = vld [vmem:[#allocation0] sm:$0x3]
    %vm7 = vcmask 31744
    %8 = vst.msk [vmem:[%s1] ss:$16 sm:$0x3] %vm7, %v6
    %v9 = vld [vmem:[#allocation0] sm:$0x3]
    %10 = vrot.lane.b32.xlu0 %v9, 124
    %v11 = vpop.permute.xlu0 %10
    %vm12 = vcmask 31744
    %s13 = scalar_lea.vmem %s1, 1
    %14 = vst.msk [vmem:[%s13] ss:$16 sm:$0x3] %vm12, %v11
    %v15 = vld [vmem:[#allocation0] sm:$0x3]
    %16 = vrot.lane.b32.xlu0 %v15, 120
    %v17 = vpop.permute.xlu0 %16
    %vm18 = vcmask 31744
    %s19 = scalar_lea.vmem %s1, 2
    %20 = vst.msk [vmem:[%s19] ss:$16 sm:$0x3] %vm18, %v17
    %v21 = vld [vmem:[#allocation0] sm:$0x3]
    %22 = vrot.lane.b32.xlu0 %v21, 116
    %v23 = vpop.permute.xlu0 %22
    %vm24 = vcmask 31744
    %s25 = scalar_lea.vmem %s1, 3
    %26 = vst.msk [vmem:[%s25] ss:$16 sm:$0x3] %vm24, %v23
    %v27 = vld [vmem:[#allocation0] sm:$0x3]
    %28 = vrot.lane.b32.xlu0 %v27, 112
    %v29 = vpop.permute.xlu0 %28
    %vm30 = vcmask 31744
    %s31 = scalar_lea.vmem %s1, 4
    %32 = vst.msk [vmem:[%s31] ss:$16 sm:$0x3] %vm30, %v29
    %v33 = vld [vmem:[#allocation0] sm:$0x3]
    %34 = vrot.lane.b32.xlu0 %v33, 108
    %v35 = vpop.permute.xlu0 %34
    %vm36 = vcmask 31744
    %s37 = scalar_lea.vmem %s1, 5
    %38 = vst.msk [vmem:[%s37] ss:$16 sm:$0x3] %vm36, %v35
    %v39 = vld [vmem:[#allocation0] sm:$0x3]
    %40 = vrot.lane.b32.xlu0 %v39, 104
    %v41 = vpop.permute.xlu0 %40
    %vm42 = vcmask 31744
    %s43 = scalar_lea.vmem %s1, 6
    %44 = vst.msk [vmem:[%s43] ss:$16 sm:$0x3] %vm42, %v41
    %v45 = vld [vmem:[#allocation0] sm:$0x3]
    %46 = vrot.lane.b32.xlu0 %v45, 100
    %v47 = vpop.permute.xlu0 %46
    %vm48 = vcmask 31744
    %s49 = scalar_lea.vmem %s1, 7
    %50 = vst.msk [vmem:[%s49] ss:$16 sm:$0x3] %vm48, %v47
    %v51 = vld [vmem:[#allocation0] sm:$0x3]
    %52 = vrot.lane.b32.xlu0 %v51, 96
    %v53 = vpop.permute.xlu0 %52
    %vm54 = vcmask 31744
    %s55 = scalar_lea.vmem %s1, 8
    %56 = vst.msk [vmem:[%s55] ss:$16 sm:$0x3] %vm54, %v53
    %v57 = vld [vmem:[#allocation0] sm:$0x3]
    %58 = vrot.lane.b32.xlu0 %v57, 92
    %v59 = vpop.permute.xlu0 %58
    %vm60 = vcmask 31744
    %s61 = scalar_lea.vmem %s1, 9
    %62 = vst.msk [vmem:[%s61] ss:$16 sm:$0x3] %vm60, %v59

// kernel: hyper_resnet_forward.5
$region0: #{hyper_resnet_forward.5}
  #allocation0 [shape = 'u32[]', space=smem, size = 0x4, offset = 0x4, fixed_abs, tag = 'smem constant byte address 0x4 - core index']
  #allocation1 [shape = 'u32[72,128]{1,0:T(1,128)}', space=vmem, size = 0x9000, scoped, tag = 'internal scratch']
  %s0 = inlined_call_operand.vmem [shape: f32[2,32], index: 0, kind: input, shape index: {}]
  %s1 = inlined_call_operand.vmem [shape: f32[8,32,32], index: 1, kind: input, shape index: {}]
  %s2 = inlined_call_operand.vmem [shape: f32[8,1,32], index: 2, kind: input, shape index: {}]
  %s3 = inlined_call_operand.hbm [shape: f32[8,32,32], index: 3, kind: input, shape index: {}]
  %s4 = inlined_call_operand.vmem [shape: f32[8,1,32], index: 4, kind: input, shape index: {}]
  %s5 = inlined_call_operand.hbm [shape: f32[8,32,128], index: 5, kind: input, shape index: {}]
  %s6 = inlined_call_operand.hbm [shape: f32[8,1,128], index: 6, kind: input, shape index: {}]
  %s7 = inlined_call_operand.vmem [shape: f32[8,2,128], index: 7, kind: output, shape index: {}]
  %s8 = sld [smem:[#allocation0]]
  $region73: #{hyper_resnet_forward.5} parent=0
    _
  %s10 = ssub.s32 1, %s8
  %s11 = scalar_select 0, %s10, %s8
  $region1: #{hyper_resnet_forward.5} parent=0
    #allocation2 [shape = 'u8[32768]{0}', space=vmem, size = 0x8000, scoped, tag = 'input window, operand 3']
    #allocation3 [shape = 's32[2]{0}', space=sflag, size = 0x8, scoped, tag = 'scoped memory for hyper_resnet_forward.5']
    #allocation4 [shape = 'u8[32768]{0}', space=vmem, size = 0x8000, scoped, tag = 'input window, operand 5']
    #allocation5 [shape = 's32[2]{0}', space=sflag, size = 0x8, scoped, tag = 'scoped memory for hyper_resnet_forward.5']
    #allocation6 [shape = 'u8[1024]{0}', space=vmem, size = 0x400, scoped, tag = 'input window, operand 6']
    %12 = vsyncpa [#allocation3], 0
    %s13 = scalar_lea.sflag [#allocation3], 1
    %14 = vsyncpa %s13, 0
    %15 = vsyncpa [#allocation5], 0
    %s16 = scalar_lea.sflag [#allocation5], 1
    %17 = vsyncpa %s16, 0
    loop: start=0, step=1, limit=10
    $region2: #{hyper_resnet_forward.5} parent=1 // loop_pre_header
      _
    $region3: #{hyper_resnet_forward.5} parent=1 // loop_header
      %s19 = sphi 0, %s23
      %p20 = scmp.ge.s32.totalorder %s19, 10
      %s27 = sphi 0, %s27
      %s29 = sphi 0, %s27
      %s30 = sphi 0, %s29
      %s44 = sphi 0, %s30
      %s50 = sphi 0, %s52
      %s53 = sphi 0, %s50
      %s54 = sphi 0, %s53
      %s70 = sphi 0, %s54
      %s76 = sphi 0, %s78
      %s79 = sphi 0, %s76
      %s80 = sphi 0, %s79
      %s96 = sphi 0, %s80
      %s102 = sphi 0, %s104
      %s105 = sphi 0, %s102
      %s106 = sphi 0, %s105
      %s122 = sphi 0, %s106
      %s128 = sphi 0, %s130
      %s131 = sphi 0, %s128
      %s132 = sphi 0, %s131
      %s148 = sphi 0, %s132
      %s154 = sphi 0, %s156
      %s157 = sphi 0, %s154
      %s158 = sphi 0, %s157
      %s174 = sphi 0, %s158
      %s180 = sphi 0, %s182
      %s183 = sphi 0, %s180
      %s184 = sphi 0, %s183
      %s200 = sphi 0, %s184
      %s206 = sphi 0, %s208
      %s209 = sphi 0, %s206
      %s210 = sphi 0, %s209
      %s226 = sphi 0, %s210
    $region4: #{hyper_resnet_forward.5} parent=1 // loop_header_branch
      %22 = sbr.rel (%p20) target = $region8
    $region5: #{hyper_resnet_forward.5} parent=1 // loop_body
      %s24 = ssub.s32 %s19, 1
      %s25 = ssub.s32 %s19, 2
      %s26 = sadd.s32 %s19, 1
      %s28 = sadd.s32 %s27, 1
      %p31 = scmp.eq.s32.totalorder %s19, 7
      %p32 = scmp.ne.s32.totalorder %s27, %s29
      %p33 = scmp.eq.s32.totalorder %s19, 0
      %p34 = por %p32, %p33
      %p35 = scmp.ne.s32.totalorder %s27, %s29
      %p36 = scmp.eq.s32.totalorder %s24, 7
      %p37 = por %p35, %p36
      %p38 = scmp.ne.s32.totalorder %s29, %s30
      %p39 = scmp.eq.s32.totalorder %s24, 0
      %p40 = por %p38, %p39
      %p41 = scmp.ne.s32.totalorder %s29, %s30
      %p42 = scmp.eq.s32.totalorder %s25, 7
      %p43 = por %p41, %p42
      %p45 = scmp.ne.s32.totalorder %s30, %s44
      %p46 = scmp.eq.s32.totalorder %s25, 0
      %p47 = por %p45, %p46
      %s48 = ssub.s32 %s19, %s26
      %p49 = scmp.eq.s32.totalorder %s48, 0
      %s51 = sadd.s32 %s50, 1
      %s52 = scalar_select %p49, %s50, %s51
      %p55 = pneg %p49
      %p56 = scmp.eq.s32.totalorder %s19, 7
      %p57 = por %p55, %p56
      %p58 = scmp.ne.s32.totalorder %s50, %s53
      %p59 = scmp.eq.s32.totalorder %s19, 0
      %p60 = por %p58, %p59
      %p61 = scmp.ne.s32.totalorder %s50, %s53
      %p62 = scmp.eq.s32.totalorder %s24, 7
      %p63 = por %p61, %p62
      %p64 = scmp.ne.s32.totalorder %s53, %s54
      %p65 = scmp.eq.s32.totalorder %s24, 0
      %p66 = por %p64, %p65
      %p67 = scmp.ne.s32.totalorder %s53, %s54
      %p68 = scmp.eq.s32.totalorder %s25, 7
      %p69 = por %p67, %p68
      %p71 = scmp.ne.s32.totalorder %s54, %s70
      %p72 = scmp.eq.s32.totalorder %s25, 0
      %p73 = por %p71, %p72
      %s74 = ssub.s32 %s19, %s26
      %p75 = scmp.eq.s32.totalorder %s74, 0
      %s77 = sadd.s32 %s76, 1
      %s78 = scalar_select %p75, %s76, %s77
      %p81 = pneg %p75
      %p82 = scmp.eq.s32.totalorder %s19, 7
      %p83 = por %p81, %p82
      %p84 = scmp.ne.s32.totalorder %s76, %s79
      %p85 = scmp.eq.s32.totalorder %s19, 0
      %p86 = por %p84, %p85
      %p87 = scmp.ne.s32.totalorder %s76, %s79
      %p88 = scmp.eq.s32.totalorder %s24, 7
      %p89 = por %p87, %p88
      %p90 = scmp.ne.s32.totalorder %s79, %s80
      %p91 = scmp.eq.s32.totalorder %s24, 0
      %p92 = por %p90, %p91
      %p93 = scmp.ne.s32.totalorder %s79, %s80
      %p94 = scmp.eq.s32.totalorder %s25, 7
      %p95 = por %p93, %p94
      %p97 = scmp.ne.s32.totalorder %s80, %s96
      %p98 = scmp.eq.s32.totalorder %s25, 0
      %p99 = por %p97, %p98
      %s100 = ssub.s32 %s19, %s26
      %p101 = scmp.eq.s32.totalorder %s100, 0
      %s103 = sadd.s32 %s102, 1
      %s104 = scalar_select %p101, %s102, %s103
      %p107 = pneg %p101
      %p108 = scmp.eq.s32.totalorder %s19, 7
      %p109 = por %p107, %p108
      %p110 = scmp.ne.s32.totalorder %s102, %s105
      %p111 = scmp.eq.s32.totalorder %s19, 0
      %p112 = por %p110, %p111
      %p113 = scmp.ne.s32.totalorder %s102, %s105
      %p114 = scmp.eq.s32.totalorder %s24, 7
      %p115 = por %p113, %p114
      %p116 = scmp.ne.s32.totalorder %s105, %s106
      %p117 = scmp.eq.s32.totalorder %s24, 0
      %p118 = por %p116, %p117
      %p119 = scmp.ne.s32.totalorder %s105, %s106
      %p120 = scmp.eq.s32.totalorder %s25, 7
      %p121 = por %p119, %p120
      %p123 = scmp.ne.s32.totalorder %s106, %s122
      %p124 = scmp.eq.s32.totalorder %s25, 0
      %p125 = por %p123, %p124
      %s126 = ssub.s32 %s19, %s26
      %p127 = scmp.eq.s32.totalorder %s126, 0
      %s129 = sadd.s32 %s128, 1
      %s130 = scalar_select %p127, %s128, %s129
      %p133 = pneg %p127
      %p134 = scmp.eq.s32.totalorder %s19, 7
      %p135 = por %p133, %p134
      %p136 = scmp.ne.s32.totalorder %s128, %s131
      %p137 = scmp.eq.s32.totalorder %s19, 0
      %p138 = por %p136, %p137
      %p139 = scmp.ne.s32.totalorder %s128, %s131
      %p140 = scmp.eq.s32.totalorder %s24, 7
      %p141 = por %p139, %p140
      %p142 = scmp.ne.s32.totalorder %s131, %s132
      %p143 = scmp.eq.s32.totalorder %s24, 0
      %p144 = por %p142, %p143
      %p145 = scmp.ne.s32.totalorder %s131, %s132
      %p146 = scmp.eq.s32.totalorder %s25, 7
      %p147 = por %p145, %p146
      %p149 = scmp.ne.s32.totalorder %s132, %s148
      %p150 = scmp.eq.s32.totalorder %s25, 0
      %p151 = por %p149, %p150
      %s152 = ssub.s32 %s19, %s26
      %p153 = scmp.eq.s32.totalorder %s152, 0
      %s155 = sadd.s32 %s154, 1
      %s156 = scalar_select %p153, %s154, %s155
      %p159 = pneg %p153
      %p160 = scmp.eq.s32.totalorder %s19, 7
      %p161 = por %p159, %p160
      %p162 = scmp.ne.s32.totalorder %s154, %s157
      %p163 = scmp.eq.s32.totalorder %s19, 0
      %p164 = por %p162, %p163
      %p165 = scmp.ne.s32.totalorder %s154, %s157
      %p166 = scmp.eq.s32.totalorder %s24, 7
      %p167 = por %p165, %p166
      %p168 = scmp.ne.s32.totalorder %s157, %s158
      %p169 = scmp.eq.s32.totalorder %s24, 0
      %p170 = por %p168, %p169
      %p171 = scmp.ne.s32.totalorder %s157, %s158
      %p172 = scmp.eq.s32.totalorder %s25, 7
      %p173 = por %p171, %p172
      %p175 = scmp.ne.s32.totalorder %s158, %s174
      %p176 = scmp.eq.s32.totalorder %s25, 0
      %p177 = por %p175, %p176
      %s178 = ssub.s32 %s19, %s26
      %p179 = scmp.eq.s32.totalorder %s178, 0
      %s181 = sadd.s32 %s180, 1
      %s182 = scalar_select %p179, %s180, %s181
      %p185 = pneg %p179
      %p186 = scmp.eq.s32.totalorder %s19, 7
      %p187 = por %p185, %p186
      %p188 = scmp.ne.s32.totalorder %s180, %s183
      %p189 = scmp.eq.s32.totalorder %s19, 0
      %p190 = por %p188, %p189
      %p191 = scmp.ne.s32.totalorder %s180, %s183
      %p192 = scmp.eq.s32.totalorder %s24, 7
      %p193 = por %p191, %p192
      %p194 = scmp.ne.s32.totalorder %s183, %s184
      %p195 = scmp.eq.s32.totalorder %s24, 0
      %p196 = por %p194, %p195
      %p197 = scmp.ne.s32.totalorder %s183, %s184
      %p198 = scmp.eq.s32.totalorder %s25, 7
      %p199 = por %p197, %p198
      %p201 = scmp.ne.s32.totalorder %s184, %s200
      %p202 = scmp.eq.s32.totalorder %s25, 0
      %p203 = por %p201, %p202
      %s204 = ssub.s32 %s19, %s26
      %p205 = scmp.eq.s32.totalorder %s204, 0
      %s207 = sadd.s32 %s206, 1
      %s208 = scalar_select %p205, %s206, %s207
      %p211 = pneg %p205
      %p212 = scmp.eq.s32.totalorder %s19, 7
      %p213 = por %p211, %p212
      %p214 = scmp.ne.s32.totalorder %s206, %s209
      %p215 = scmp.eq.s32.totalorder %s19, 0
      %p216 = por %p214, %p215
      %p217 = scmp.ne.s32.totalorder %s206, %s209
      %p218 = scmp.eq.s32.totalorder %s24, 7
      %p219 = por %p217, %p218
      %p220 = scmp.ne.s32.totalorder %s209, %s210
      %p221 = scmp.eq.s32.totalorder %s24, 0
      %p222 = por %p220, %p221
      %p223 = scmp.ne.s32.totalorder %s209, %s210
      %p224 = scmp.eq.s32.totalorder %s25, 7
      %p225 = por %p223, %p224
      %p227 = scmp.ne.s32.totalorder %s210, %s226
      %p228 = scmp.eq.s32.totalorder %s25, 0
      %p229 = por %p227, %p228
      %p230 = scmp.le.s32.totalorder 1, %s19
      %p231 = scmp.lt.s32.totalorder %s19, 9
      %p232 = pnand %p230, %p231
      %p233 = pneg %p232
      // Predicated region
      $region9: #{hyper_resnet_forward.5} parent=5 // pred_check
        _
      $region10: #{hyper_resnet_forward.5} parent=5 // pred_check_branch
        %235 = sbr.rel (%p232) target = $region12
      $region11: #{hyper_resnet_forward.5} parent=5 // pred_region
        %s236 = ssub.s32 %s19, 1
        // Predicated region
        $region13: #{hyper_resnet_forward.5} parent=11 // pred_check
          %p237 = pneg %p40
        $region14: #{hyper_resnet_forward.5} parent=11 // pred_check_branch
          %239 = sbr.rel (%p237) target = $region16
        $region15: #{hyper_resnet_forward.5} parent=11 // pred_region
          _
        $region16: #{hyper_resnet_forward.5} parent=11 // pred_fallthru
          _
      $region12: #{hyper_resnet_forward.5} parent=5 // pred_fallthru
        _
      %p240 = scmp.lt.s32.totalorder %s19, 8
      // Predicated region
      $region17: #{hyper_resnet_forward.5} parent=5 // pred_check
        %p241 = pneg %p240
      $region18: #{hyper_resnet_forward.5} parent=5 // pred_check_branch
        %243 = sbr.rel (%p241) target = $region20
      $region19: #{hyper_resnet_forward.5} parent=5 // pred_region
        // Predicated region
        $region21: #{hyper_resnet_forward.5} parent=19 // pred_check
          %p244 = pneg %p60
        $region22: #{hyper_resnet_forward.5} parent=19 // pred_check_branch
          %246 = sbr.rel (%p244) target = $region24
        $region23: #{hyper_resnet_forward.5} parent=19 // pred_region
          %p247 = scmp.lt.s32.totalorder %s19, 7
          %s248 = scalar_select %p247, %s19, 7
          %s249 = smul.addr %s248, 4
          %s250 = smul.addr %s249, 8
          %s251 = scalar_lea.vmem %s1, %s250
        $region24: #{hyper_resnet_forward.5} parent=19 // pred_fallthru
          _
        // Predicated region
        $region25: #{hyper_resnet_forward.5} parent=19 // pred_check
          %p252 = pneg %p86
        $region26: #{hyper_resnet_forward.5} parent=19 // pred_check_branch
          %254 = sbr.rel (%p252) target = $region28
        $region27: #{hyper_resnet_forward.5} parent=19 // pred_region
          %p255 = scmp.lt.s32.totalorder %s19, 7
          %s256 = scalar_select %p255, %s19, 7
          %s257 = scalar_lea.vmem %s2, %s256
        $region28: #{hyper_resnet_forward.5} parent=19 // pred_fallthru
          _
        // Predicated region
        $region29: #{hyper_resnet_forward.5} parent=19 // pred_check
          %p258 = pneg %p112
        $region30: #{hyper_resnet_forward.5} parent=19 // pred_check_branch
          %260 = sbr.rel (%p258) target = $region32
        $region31: #{hyper_resnet_forward.5} parent=19 // pred_region
          %s261 = sand.u32 %s102, 1
          %s262 = scalar_lea.sflag [#allocation3], %s261
          %s263 = sand.u32 %s102, 1
          %s264 = smul.addr %s263, 32
          %s265 = scalar_lea.vmem [#allocation2], %s264
          %267 = vsyncadd %s262, 0
          %s268 = smul.addr %s19, 4
          %s269 = smul.addr %s268, 8
          %s270 = scalar_lea.hbm %s3, %s269
          %s271 = sshll.u32 %s270, 4
          %s272 = int_to_ptr.hbm [resolvable:$true] %s271
          %s273 = sshll.u32 %s265, 4
          %s274 = int_to_ptr.vmem [resolvable:$true] %s273
          %279 = dma.hbm_to_vmem [thread:$0]  %s272, 512, %s274, %s262, 128, 128, 8
        $region32: #{hyper_resnet_forward.5} parent=19 // pred_fallthru
          _
        // Predicated region
        $region33: #{hyper_resnet_forward.5} parent=19 // pred_check
          %p280 = pneg %p138
        $region34: #{hyper_resnet_forward.5} parent=19 // pred_check_branch
          %282 = sbr.rel (%p280) target = $region36
        $region35: #{hyper_resnet_forward.5} parent=19 // pred_region
          %p283 = scmp.lt.s32.totalorder %s19, 7
          %s284 = scalar_select %p283, %s19, 7
          %s285 = scalar_lea.vmem %s4, %s284
        $region36: #{hyper_resnet_forward.5} parent=19 // pred_fallthru
          _
        // Predicated region
        $region37: #{hyper_resnet_forward.5} parent=19 // pred_check
          %p286 = pneg %p164
        $region38: #{hyper_resnet_forward.5} parent=19 // pred_check_branch
          %288 = sbr.rel (%p286) target = $region40
        $region39: #{hyper_resnet_forward.5} parent=19 // pred_region
          %s289 = sand.u32 %s19, 1
          %s290 = scalar_lea.sflag [#allocation5], %s289
          %s291 = sand.u32 %s154, 1
          %s292 = smul.addr %s291, 32
          %s293 = scalar_lea.vmem [#allocation4], %s292
          %295 = vsyncadd %s290, 0
          %s296 = smul.addr %s19, 4
          %s297 = smul.addr %s296, 8
          %s298 = scalar_lea.hbm %s5, %s297
          %s299 = sshll.u32 %s298, 4
          %s300 = int_to_ptr.hbm [resolvable:$true] %s299
          %s301 = sshll.u32 %s293, 4
          %s302 = int_to_ptr.vmem [resolvable:$true] %s301
          %307 = dma.hbm_to_vmem [thread:$0]  %s300, 512, %s302, %s290, 128, 128, 8
        $region40: #{hyper_resnet_forward.5} parent=19 // pred_fallthru
          _
        // Predicated region
        $region41: #{hyper_resnet_forward.5} parent=19 // pred_check
          %p308 = pneg %p190
        $region42: #{hyper_resnet_forward.5} parent=19 // pred_check_branch
          %310 = sbr.rel (%p308) target = $region44
        $region43: #{hyper_resnet_forward.5} parent=19 // pred_region
          %s311 = sand.u32 %s19, 1
          %s312 = scalar_lea.sflag [#allocation5], %s311
          %s313 = sand.u32 %s180, 1
          %s314 = scalar_lea.vmem [#allocation6], %s313
          %316 = vsyncadd %s312, 0
          %s317 = scalar_lea.hbm %s6, %s19
          %s319 = sshll.u32 %s317, 4
          %s320 = int_to_ptr.hbm [resolvable:$true] %s319
          %s321 = sshll.u32 %s314, 4
          %s322 = int_to_ptr.vmem [resolvable:$true] %s321
          %324 = dma.hbm_to_vmem [thread:$0]  %s320, 16, %s322, %s312
        $region44: #{hyper_resnet_forward.5} parent=19 // pred_fallthru
          _
      $region20: #{hyper_resnet_forward.5} parent=5 // pred_fallthru
        _
      %p325 = scmp.le.s32.totalorder 1, %s19
      %p326 = scmp.lt.s32.totalorder %s19, 9
      %p327 = pnand %p325, %p326
      %p328 = pneg %p327
      // Predicated region
      $region45: #{hyper_resnet_forward.5} parent=5 // pred_check
        _
      $region46: #{hyper_resnet_forward.5} parent=5 // pred_check_branch
        %330 = sbr.rel (%p327) target = $region48
      $region47: #{hyper_resnet_forward.5} parent=5 // pred_region
        %s331 = ssub.s32 %s19, 1
        %s332 = sand.u32 %s105, 1
        %s333 = scalar_lea.sflag [#allocation3], %s332
        %s334 = sand.u32 %s105, 1
        %s335 = smul.addr %s334, 32
        %s336 = scalar_lea.vmem [#allocation2], %s335
        // Predicated region
        $region49: #{hyper_resnet_forward.5} parent=47 // pred_check
          %p337 = pneg %p118
        $region50: #{hyper_resnet_forward.5} parent=47 // pred_check_branch
          %339 = sbr.rel (%p337) target = $region52
        $region51: #{hyper_resnet_forward.5} parent=47 // pred_region
          %341 = dma.done %s333, 512
        $region52: #{hyper_resnet_forward.5} parent=47 // pred_fallthru
          _
        %s342 = sand.u32 %s24, 1
        %s343 = scalar_lea.sflag [#allocation5], %s342
        %s344 = sand.u32 %s157, 1
        %s345 = smul.addr %s344, 32
        %s346 = scalar_lea.vmem [#allocation4], %s345
        // Predicated region
        $region53: #{hyper_resnet_forward.5} parent=47 // pred_check
          %p347 = pneg %p170
        $region54: #{hyper_resnet_forward.5} parent=47 // pred_check_branch
          %349 = sbr.rel (%p347) target = $region56
        $region55: #{hyper_resnet_forward.5} parent=47 // pred_region
          %351 = dma.done %s343, 512
        $region56: #{hyper_resnet_forward.5} parent=47 // pred_fallthru
          _
        %s352 = sand.u32 %s24, 1
        %s353 = scalar_lea.sflag [#allocation5], %s352
        %s354 = sand.u32 %s183, 1
        %s355 = scalar_lea.vmem [#allocation6], %s354
        // Predicated region
        $region57: #{hyper_resnet_forward.5} parent=47 // pred_check
          %p356 = pneg %p196
        $region58: #{hyper_resnet_forward.5} parent=47 // pred_check_branch
          %358 = sbr.rel (%p356) target = $region60
        $region59: #{hyper_resnet_forward.5} parent=47 // pred_region
          %360 = dma.done %s353, 16
        $region60: #{hyper_resnet_forward.5} parent=47 // pred_fallthru
          _
        %p361 = pneg %p40
        %p362 = pneg %p37
        %p363 = scmp.lt.s32.totalorder %s24, 7
        %s364 = scalar_select %p363, %s24, 7
        %s365 = smul.addr %s364, 4
        %s366 = smul.addr %s365, 8
        %s367 = scalar_lea.vmem %s1, %s366
        %p368 = pneg %p66
        %p369 = pneg %p63
        %p370 = scmp.lt.s32.totalorder %s24, 7
        %s371 = scalar_select %p370, %s24, 7
        %s372 = scalar_lea.vmem %s2, %s371
        %p373 = pneg %p92
        %p374 = pneg %p89
        %s375 = sand.u32 %s105, 1
        %s376 = scalar_lea.sflag [#allocation3], %s375
        %s377 = sand.u32 %s105, 1
        %s378 = smul.addr %s377, 32
        %s379 = scalar_lea.vmem [#allocation2], %s378
        %p380 = pneg %p118
        %p381 = pneg %p115
        %p382 = scmp.lt.s32.totalorder %s24, 7
        %s383 = scalar_select %p382, %s24, 7
        %s384 = scalar_lea.vmem %s4, %s383
        %p385 = pneg %p144
        %p386 = pneg %p141
        %s387 = sand.u32 %s24, 1
        %s388 = scalar_lea.sflag [#allocation5], %s387
        %s389 = sand.u32 %s157, 1
        %s390 = smul.addr %s389, 32
        %s391 = scalar_lea.vmem [#allocation4], %s390
        %p392 = pneg %p170
        %p393 = pneg %p167
        %s394 = sand.u32 %s24, 1
        %s395 = scalar_lea.sflag [#allocation5], %s394
        %s396 = sand.u32 %s183, 1
        %s397 = scalar_lea.vmem [#allocation6], %s396
        %p398 = pneg %p196
        %p399 = pneg %p193
        %p400 = pneg %p222
        %p401 = pneg %p219
        %p402 = scmp.lt.s32.totalorder %s24, 7
        %s403 = scalar_select %p402, %s24, 7
        %s404 = smul.addr %s403, 2
        %s405 = scalar_lea.vmem %s7, %s404
        %p406 = scmp.lt.s32.totalorder %s24, 7
        %s407 = scalar_select %p406, %s24, 7
        %s408 = smul.addr %s407, 4
        %s409 = smul.addr %s408, 8
        %s410 = scalar_lea.vmem %s1, %s409
        %p411 = scmp.lt.s32.totalorder %s24, 7
        %s412 = scalar_select %p411, %s24, 7
        %s413 = scalar_lea.vmem %s2, %s412
        %p414 = scmp.lt.s32.totalorder %s24, 7
        %s415 = scalar_select %p414, %s24, 7
        %s416 = scalar_lea.vmem %s4, %s415
        %p417 = scmp.lt.s32.totalorder %s24, 7
        %s418 = scalar_select %p417, %s24, 7
        %s419 = smul.addr %s418, 2
        %s420 = scalar_lea.vmem %s7, %s419
        %v421 = vld [vmem:[%s0] sm:$0x3]
        %v422 = vld [vmem:[%s410] sm:$0xff]
        %v423 = vld [vmem:[%s410 + $0x8] sm:$0xff]
        %v424 = vld [vmem:[%s410 + $0x10] sm:$0xff]
        %v425 = vld [vmem:[%s410 + $0x18] sm:$0xff]
        %v426 = vld [vmem:[%s413] sm:$0x1]
        %v428 = vperm.slane %v426, 0
        %vm430 = vcmask 261120
        %v432 = vsel %vm430, %v421, 0
        %434 = vmatpush.msra.mxu0 0.0
        %435 = vmatpush.msra.mxu0 0.0
        %436 = vmatpush.msra.mxu0 0.0
        %437 = vmatpush.msra.mxu0 0.0
        %438 = vmatpush.msra.mxu0 0.0
        %439 = vmatpush.msra.mxu0 0.0
        %440 = vmatpush.msra.mxu0 0.0
        %441 = vmatpush.msra.mxu0 0.0
        %442 = vmatpush.msra.mxu0 0.0
        %443 = vmatpush.msra.mxu0 0.0
        %444 = vmatpush.msra.mxu0 0.0
        %445 = vmatpush.msra.mxu0 0.0
        %446 = vmatpush.msra.mxu0 %v425
        %447 = vmatpush.msra.mxu0 %v424
        %448 = vmatpush.msra.mxu0 %v423
        %449 = vmatpush.msra.mxu0 %v422
        %450 = vmatmul.f32.gmra.mxu0 %v432
        %v451 = vpop.f32.mrf.mxu0
        %v452 = vadd.f32 %v428, %v451
        %453 = vdwg.mxu0
        %v454 = vmax.f32 %v452, 0.0
        %v455 = vld [vmem:[%s336] sm:$0xff]
        %v456 = vld [vmem:[%s336 + $0x8] sm:$0xff]
        %v457 = vld [vmem:[%s336 + $0x10] sm:$0xff]
        %v458 = vld [vmem:[%s336 + $0x18] sm:$0xff]
        %v459 = vld [vmem:[%s416] sm:$0x1]
        %v461 = vperm.slane %v459, 0
        %v464 = vsel %vm430, %v454, 0
        %466 = vmatpush.msra.mxu0 0.0
        %467 = vmatpush.msra.mxu0 0.0
        %468 = vmatpush.msra.mxu0 0.0
        %469 = vmatpush.msra.mxu0 0.0
        %470 = vmatpush.msra.mxu0 0.0
        %471 = vmatpush.msra.mxu0 0.0
        %472 = vmatpush.msra.mxu0 0.0
        %473 = vmatpush.msra.mxu0 0.0
        %474 = vmatpush.msra.mxu0 0.0
        %475 = vmatpush.msra.mxu0 0.0
        %476 = vmatpush.msra.mxu0 0.0
        %477 = vmatpush.msra.mxu0 0.0
        %478 = vmatpush.msra.mxu0 %v458
        %479 = vmatpush.msra.mxu0 %v457
        %480 = vmatpush.msra.mxu0 %v456
        %481 = vmatpush.msra.mxu0 %v455
        %482 = vmatmul.f32.gmra.mxu0 %v464
        %v483 = vpop.f32.mrf.mxu0
        %v484 = vadd.f32 %v461, %v483
        %485 = vdwg.mxu0
        %v486 = vmax.f32 %v484, 0.0
        %v487 = vld [vmem:[%s346] sm:$0xff]
        %v488 = vld [vmem:[%s346 + $0x8] sm:$0xff]
        %v489 = vld [vmem:[%s346 + $0x10] sm:$0xff]
        %v490 = vld [vmem:[%s346 + $0x18] sm:$0xff]
        %v491 = vld [vmem:[%s355] sm:$0x1]
        %v493 = vperm.slane %v491, 0
        %v496 = vsel %vm430, %v486, 0
        %498 = vmatpush.msra.mxu0 0.0
        %499 = vmatpush.msra.mxu0 0.0
        %500 = vmatpush.msra.mxu0 0.0
        %501 = vmatpush.msra.mxu0 0.0
        %502 = vmatpush.msra.mxu0 0.0
        %503 = vmatpush.msra.mxu0 0.0
        %504 = vmatpush.msra.mxu0 0.0
        %505 = vmatpush.msra.mxu0 0.0
        %506 = vmatpush.msra.mxu0 0.0
        %507 = vmatpush.msra.mxu0 0.0
        %508 = vmatpush.msra.mxu0 0.0
        %509 = vmatpush.msra.mxu0 0.0
        %510 = vmatpush.msra.mxu0 %v490
        %511 = vmatpush.msra.mxu0 %v489
        %512 = vmatpush.msra.mxu0 %v488
        %513 = vmatpush.msra.mxu0 %v487
        %514 = vmatmul.f32.gmra.mxu0 %v496
        %v515 = vpop.f32.mrf.mxu0
        %v516 = vadd.f32 %v493, %v515
        %517 = vdwg.mxu0
        %518 = vst [vmem:[%s420] sm:$0x3] %v516
        %p519 = scmp.lt.s32.totalorder %s24, 7
        %s520 = scalar_select %p519, %s24, 7
        %s521 = smul.addr %s520, 2
        %s522 = scalar_lea.vmem %s7, %s521
        // Predicated region
        $region61: #{hyper_resnet_forward.5} parent=47 // pred_check
          %p523 = pneg %p219
        $region62: #{hyper_resnet_forward.5} parent=47 // pred_check_branch
          %525 = sbr.rel (%p523) target = $region64
        $region63: #{hyper_resnet_forward.5} parent=47 // pred_region
          _
        $region64: #{hyper_resnet_forward.5} parent=47 // pred_fallthru
          _
      $region48: #{hyper_resnet_forward.5} parent=5 // pred_fallthru
        _
      %p526 = scmp.le.s32.totalorder 2, %s19
      // Predicated region
      $region65: #{hyper_resnet_forward.5} parent=5 // pred_check
        %p527 = pneg %p526
      $region66: #{hyper_resnet_forward.5} parent=5 // pred_check_branch
        %529 = sbr.rel (%p527) target = $region68
      $region67: #{hyper_resnet_forward.5} parent=5 // pred_region
        %s530 = ssub.s32 %s19, 2
        // Predicated region
        $region69: #{hyper_resnet_forward.5} parent=67 // pred_check
          %p531 = pneg %p225
        $region70: #{hyper_resnet_forward.5} parent=67 // pred_check_branch
          %533 = sbr.rel (%p531) target = $region72
        $region71: #{hyper_resnet_forward.5} parent=67 // pred_region
          %p534 = scmp.lt.s32.totalorder %s25, 7
          %s535 = scalar_select %p534, %s25, 7
          %s536 = smul.addr %s535, 2
          %s537 = scalar_lea.vmem %s7, %s536
        $region72: #{hyper_resnet_forward.5} parent=67 // pred_fallthru
          _
      $region68: #{hyper_resnet_forward.5} parent=5 // pred_fallthru
        _
    $region6: #{hyper_resnet_forward.5} parent=1 // loop_footer
      %s23 = sadd.s32 1, %s19
    $region7: #{hyper_resnet_forward.5} parent=1 // loop_footer_branch
      %18 = sbr.rel target = $region3
    $region8: #{hyper_resnet_forward.5} parent=1 // loop_exit
      _
    %538 = vsyncpa [#allocation3], 1
    %s539 = scalar_lea.sflag [#allocation3], 1
    %540 = vsyncpa %s539, 1
    %541 = vsyncpa [#allocation5], 1
    %s542 = scalar_lea.sflag [#allocation5], 1
    %543 = vsyncpa %s542, 1

// kernel: hyper_resnet_forward.3
$region0: #{hyper_resnet_forward.3}
  #allocation0 [shape = 'u32[]', space=smem, size = 0x4, offset = 0x4, fixed_abs, tag = 'smem constant byte address 0x4 - core index']
  #allocation1 [shape = 'u32[72,128]{1,0:T(1,128)}', space=vmem, size = 0x9000, scoped, tag = 'internal scratch']
  #allocation2 [shape = 'f32[2,32,16]{2,1,0:T(8,128)}', space=vmem, size = 0x8000, scoped, tag = 'scratch operand']
  #allocation3 [shape = 'f32[2,32,16]{2,1,0:T(8,128)}', space=vmem, size = 0x8000, scoped, tag = 'scratch operand']
  %s0 = inlined_call_operand.vmem [shape: f32[2,16,16], index: 0, kind: input, shape index: {}]
  %s1 = inlined_call_operand.vmem [shape: f32[3,16,16], index: 1, kind: input, shape index: {}]
  %s2 = inlined_call_operand.hbm [shape: f32[1,16], index: 2, kind: input, shape index: {}]
  %s3 = inlined_call_operand.hbm [shape: f32[1,16], index: 3, kind: input, shape index: {}]
  %s4 = inlined_call_operand.hbm [shape: f32[1,16], index: 4, kind: input, shape index: {}]
  %s5 = inlined_call_operand.hbm [shape: f32[3,16,16], index: 5, kind: input, shape index: {}]
  %s6 = inlined_call_operand.hbm [shape: f32[1,16], index: 6, kind: input, shape index: {}]
  %s7 = inlined_call_operand.hbm [shape: f32[1,16], index: 7, kind: input, shape index: {}]
  %s8 = inlined_call_operand.hbm [shape: f32[1,16], index: 8, kind: input, shape index: {}]
  %s9 = inlined_call_operand.vmem [shape: f32[2,16,16], index: 9, kind: output, shape index: {}]
  %s10 = sld [smem:[#allocation0]]
  $region74: #{hyper_resnet_forward.3} parent=0
    _
  %s12 = ssub.s32 1, %s10
  %s13 = scalar_select 0, %s12, %s10
  $region1: #{hyper_resnet_forward.3} parent=0
    #allocation4 [shape = 'u8[512]{0}', space=vmem, size = 0x400, scoped, tag = 'input window, operand 2, single buffered']
    #allocation5 [shape = 's32[1]{0}', space=sflag, size = 0x4, scoped, tag = 'scoped memory for hyper_resnet_forward.3']
    #allocation6 [shape = 'u8[512]{0}', space=vmem, size = 0x400, scoped, tag = 'input window, operand 3, single buffered']
    #allocation7 [shape = 's32[1]{0}', space=sflag, size = 0x4, scoped, tag = 'scoped memory for hyper_resnet_forward.3']
    #allocation8 [shape = 'u8[512]{0}', space=vmem, size = 0x400, scoped, tag = 'input window, operand 4, single buffered']
    #allocation9 [shape = 'u8[24576]{0}', space=vmem, size = 0x6000, scoped, tag = 'input window, operand 5, single buffered']
    #allocation10 [shape = 's32[1]{0}', space=sflag, size = 0x4, scoped, tag = 'scoped memory for hyper_resnet_forward.3']
    #allocation11 [shape = 'u8[512]{0}', space=vmem, size = 0x400, scoped, tag = 'input window, operand 6, single buffered']
    #allocation12 [shape = 'u8[512]{0}', space=vmem, size = 0x400, scoped, tag = 'input window, operand 7, single buffered']
    #allocation13 [shape = 's32[1]{0}', space=sflag, size = 0x4, scoped, tag = 'scoped memory for hyper_resnet_forward.3']
    #allocation14 [shape = 'u8[512]{0}', space=vmem, size = 0x400, scoped, tag = 'input window, operand 8, single buffered']
    %14 = vsyncpa [#allocation5], 0
    %15 = vsyncpa [#allocation7], 0
    %16 = vsyncpa [#allocation10], 0
    %17 = vsyncpa [#allocation13], 0
    // Predicated region
    $region2: #{hyper_resnet_forward.3} parent=1 // pred_check
      _
    $region3: #{hyper_resnet_forward.3} parent=1 // pred_check_branch
      %19 = sbr.rel (0) target = $region5
    $region4: #{hyper_resnet_forward.3} parent=1 // pred_region
      _
    $region5: #{hyper_resnet_forward.3} parent=1 // pred_fallthru
      _
    // Predicated region
    $region6: #{hyper_resnet_forward.3} parent=1 // pred_check
      _
    $region7: #{hyper_resnet_forward.3} parent=1 // pred_check_branch
      %21 = sbr.rel (0) target = $region9
    $region8: #{hyper_resnet_forward.3} parent=1 // pred_region
      _
    $region9: #{hyper_resnet_forward.3} parent=1 // pred_fallthru
      _
    // Predicated region
    $region10: #{hyper_resnet_forward.3} parent=1 // pred_check
      _
    $region11: #{hyper_resnet_forward.3} parent=1 // pred_check_branch
      %23 = sbr.rel (0) target = $region13
    $region12: #{hyper_resnet_forward.3} parent=1 // pred_region
      %25 = vsyncadd [#allocation5], 0
      %s27 = sshll.u32 %s2, 4
      %s28 = int_to_ptr.hbm [resolvable:$true] %s27
      %s29 = sshll.u32 [#allocation4], 4
      %s30 = int_to_ptr.vmem [resolvable:$true] %s29
      %32 = dma.hbm_to_vmem [thread:$0]  %s28, 16, %s30, [#allocation5]
    $region13: #{hyper_resnet_forward.3} parent=1 // pred_fallthru
      _
    // Predicated region
    $region14: #{hyper_resnet_forward.3} parent=1 // pred_check
      _
    $region15: #{hyper_resnet_forward.3} parent=1 // pred_check_branch
      %34 = sbr.rel (0) target = $region17
    $region16: #{hyper_resnet_forward.3} parent=1 // pred_region
      %36 = vsyncadd [#allocation7], 0
      %s38 = sshll.u32 %s3, 4
      %s39 = int_to_ptr.hbm [resolvable:$true] %s38
      %s40 = sshll.u32 [#allocation6], 4
      %s41 = int_to_ptr.vmem [resolvable:$true] %s40
      %43 = dma.hbm_to_vmem [thread:$0]  %s39, 16, %s41, [#allocation7]
    $region17: #{hyper_resnet_forward.3} parent=1 // pred_fallthru
      _
    // Predicated region
    $region18: #{hyper_resnet_forward.3} parent=1 // pred_check
      _
    $region19: #{hyper_resnet_forward.3} parent=1 // pred_check_branch
      %45 = sbr.rel (0) target = $region21
    $region20: #{hyper_resnet_forward.3} parent=1 // pred_region
      %47 = vsyncadd [#allocation7], 0
      %s49 = sshll.u32 %s4, 4
      %s50 = int_to_ptr.hbm [resolvable:$true] %s49
      %s51 = sshll.u32 [#allocation8], 4
      %s52 = int_to_ptr.vmem [resolvable:$true] %s51
      %54 = dma.hbm_to_vmem [thread:$0]  %s50, 16, %s52, [#allocation7]
    $region21: #{hyper_resnet_forward.3} parent=1 // pred_fallthru
      _
    // Predicated region
    $region22: #{hyper_resnet_forward.3} parent=1 // pred_check
      _
    $region23: #{hyper_resnet_forward.3} parent=1 // pred_check_branch
      %56 = sbr.rel (0) target = $region25
    $region24: #{hyper_resnet_forward.3} parent=1 // pred_region
      %58 = vsyncadd [#allocation10], 0
      %s59 = sshll.u32 %s5, 4
      %s60 = int_to_ptr.hbm [resolvable:$true] %s59
      %s61 = sshll.u32 [#allocation9], 4
      %s62 = int_to_ptr.vmem [resolvable:$true] %s61
      %67 = dma.hbm_to_vmem [thread:$0]  %s60, 768, %s62, [#allocation10], 128, 128, 8
    $region25: #{hyper_resnet_forward.3} parent=1 // pred_fallthru
      _
    // Predicated region
    $region26: #{hyper_resnet_forward.3} parent=1 // pred_check
      _
    $region27: #{hyper_resnet_forward.3} parent=1 // pred_check_branch
      %69 = sbr.rel (0) target = $region29
    $region28: #{hyper_resnet_forward.3} parent=1 // pred_region
      %71 = vsyncadd [#allocation10], 0
      %s73 = sshll.u32 %s6, 4
      %s74 = int_to_ptr.hbm [resolvable:$true] %s73
      %s75 = sshll.u32 [#allocation11], 4
      %s76 = int_to_ptr.vmem [resolvable:$true] %s75
      %78 = dma.hbm_to_vmem [thread:$0]  %s74, 16, %s76, [#allocation10]
    $region29: #{hyper_resnet_forward.3} parent=1 // pred_fallthru
      _
    // Predicated region
    $region30: #{hyper_resnet_forward.3} parent=1 // pred_check
      _
    $region31: #{hyper_resnet_forward.3} parent=1 // pred_check_branch
      %80 = sbr.rel (0) target = $region33
    $region32: #{hyper_resnet_forward.3} parent=1 // pred_region
      %82 = vsyncadd [#allocation13], 0
      %s84 = sshll.u32 %s7, 4
      %s85 = int_to_ptr.hbm [resolvable:$true] %s84
      %s86 = sshll.u32 [#allocation12], 4
      %s87 = int_to_ptr.vmem [resolvable:$true] %s86
      %89 = dma.hbm_to_vmem [thread:$0]  %s85, 16, %s87, [#allocation13]
    $region33: #{hyper_resnet_forward.3} parent=1 // pred_fallthru
      _
    // Predicated region
    $region34: #{hyper_resnet_forward.3} parent=1 // pred_check
      _
    $region35: #{hyper_resnet_forward.3} parent=1 // pred_check_branch
      %91 = sbr.rel (0) target = $region37
    $region36: #{hyper_resnet_forward.3} parent=1 // pred_region
      %93 = vsyncadd [#allocation13], 0
      %s95 = sshll.u32 %s8, 4
      %s96 = int_to_ptr.hbm [resolvable:$true] %s95
      %s97 = sshll.u32 [#allocation14], 4
      %s98 = int_to_ptr.vmem [resolvable:$true] %s97
      %100 = dma.hbm_to_vmem [thread:$0]  %s96, 16, %s98, [#allocation13]
    $region37: #{hyper_resnet_forward.3} parent=1 // pred_fallthru
      _
    // Predicated region
    $region38: #{hyper_resnet_forward.3} parent=1 // pred_check
      _
    $region39: #{hyper_resnet_forward.3} parent=1 // pred_check_branch
      %102 = sbr.rel (0) target = $region41
    $region40: #{hyper_resnet_forward.3} parent=1 // pred_region
      %104 = dma.done [#allocation5], 16
    $region41: #{hyper_resnet_forward.3} parent=1 // pred_fallthru
      _
    // Predicated region
    $region42: #{hyper_resnet_forward.3} parent=1 // pred_check
      _
    $region43: #{hyper_resnet_forward.3} parent=1 // pred_check_branch
      %106 = sbr.rel (0) target = $region45
    $region44: #{hyper_resnet_forward.3} parent=1 // pred_region
      %108 = dma.done [#allocation7], 16
    $region45: #{hyper_resnet_forward.3} parent=1 // pred_fallthru
      _
    // Predicated region
    $region46: #{hyper_resnet_forward.3} parent=1 // pred_check
      _
    $region47: #{hyper_resnet_forward.3} parent=1 // pred_check_branch
      %110 = sbr.rel (0) target = $region49
    $region48: #{hyper_resnet_forward.3} parent=1 // pred_region
      %112 = dma.done [#allocation7], 16
    $region49: #{hyper_resnet_forward.3} parent=1 // pred_fallthru
      _
    // Predicated region
    $region50: #{hyper_resnet_forward.3} parent=1 // pred_check
      _
    $region51: #{hyper_resnet_forward.3} parent=1 // pred_check_branch
      %114 = sbr.rel (0) target = $region53
    $region52: #{hyper_resnet_forward.3} parent=1 // pred_region
      %116 = dma.done [#allocation10], 768
    $region53: #{hyper_resnet_forward.3} parent=1 // pred_fallthru
      _
    // Predicated region
    $region54: #{hyper_resnet_forward.3} parent=1 // pred_check
      _
    $region55: #{hyper_resnet_forward.3} parent=1 // pred_check_branch
      %118 = sbr.rel (0) target = $region57
    $region56: #{hyper_resnet_forward.3} parent=1 // pred_region
      %120 = dma.done [#allocation10], 16
    $region57: #{hyper_resnet_forward.3} parent=1 // pred_fallthru
      _
    // Predicated region
    $region58: #{hyper_resnet_forward.3} parent=1 // pred_check
      _
    $region59: #{hyper_resnet_forward.3} parent=1 // pred_check_branch
      %122 = sbr.rel (0) target = $region61
    $region60: #{hyper_resnet_forward.3} parent=1 // pred_region
      %124 = dma.done [#allocation13], 16
    $region61: #{hyper_resnet_forward.3} parent=1 // pred_fallthru
      _
    // Predicated region
    $region62: #{hyper_resnet_forward.3} parent=1 // pred_check
      _
    $region63: #{hyper_resnet_forward.3} parent=1 // pred_check_branch
      %126 = sbr.rel (0) target = $region65
    $region64: #{hyper_resnet_forward.3} parent=1 // pred_region
      %128 = dma.done [#allocation13], 16
    $region65: #{hyper_resnet_forward.3} parent=1 // pred_fallthru
      _
    %vm129 = vcmask 130048
    %130 = vst.msk [vmem:[#allocation2] sm:$0xff] %vm129, 0.0
    %131 = vst.msk [vmem:[#allocation2 + $0x8] sm:$0xff] %vm129, 0.0
    %132 = vst.msk [vmem:[#allocation2 + $0x10] sm:$0xff] %vm129, 0.0
    %133 = vst.msk [vmem:[#allocation2 + $0x18] sm:$0xff] %vm129, 0.0
    %134 = vst.msk [vmem:[#allocation2 + $0x20] sm:$0xff] %vm129, 0.0
    %135 = vst.msk [vmem:[#allocation2 + $0x28] sm:$0xff] %vm129, 0.0
    %136 = vst.msk [vmem:[#allocation2 + $0x30] sm:$0xff] %vm129, 0.0
    %137 = vst.msk [vmem:[#allocation2 + $0x38] sm:$0xff] %vm129, 0.0
    %138 = vst.msk [vmem:[#allocation3] sm:$0xff] %vm129, 0.0
    %139 = vst.msk [vmem:[#allocation3 + $0x8] sm:$0xff] %vm129, 0.0
    %140 = vst.msk [vmem:[#allocation3 + $0x10] sm:$0xff] %vm129, 0.0
    %141 = vst.msk [vmem:[#allocation3 + $0x18] sm:$0xff] %vm129, 0.0
    %142 = vst.msk [vmem:[#allocation3 + $0x20] sm:$0xff] %vm129, 0.0
    %143 = vst.msk [vmem:[#allocation3 + $0x28] sm:$0xff] %vm129, 0.0
    %144 = vst.msk [vmem:[#allocation3 + $0x30] sm:$0xff] %vm129, 0.0
    %145 = vst.msk [vmem:[#allocation3 + $0x38] sm:$0xff] %vm129, 0.0
    %v146 = vld [vmem:[%s0] sm:$0xff]
    %v147 = vld [vmem:[%s0 + $0x8] sm:$0xff]
    %v148 = vld [vmem:[%s0 + $0x10] sm:$0xff]
    %v149 = vld [vmem:[%s0 + $0x18] sm:$0xff]
    %150 = vst.msk [vmem:[#allocation2 + $0x8] sm:$0xff] %vm129, %v146
    %151 = vst.msk [vmem:[#allocation2 + $0x10] sm:$0xff] %vm129, %v147
    %152 = vst.msk [vmem:[#allocation2 + $0x28] sm:$0xff] %vm129, %v148
    %153 = vst.msk [vmem:[#allocation2 + $0x30] sm:$0xff] %vm129, %v149
    %v154 = vld [vmem:[#allocation2 + $0x7] sm:$0xff]
    %v155 = vld [vmem:[#allocation2 + $0xf] sm:$0xff]
    %v156 = vld [vmem:[#allocation2 + $0x27] sm:$0xff]
    %v157 = vld [vmem:[#allocation2 + $0x2f] sm:$0xff]
    %v158 = vld [vmem:[%s1] sm:$0xff]
    %v159 = vld [vmem:[%s1 + $0x8] sm:$0xff]
    %v160 = vld [vmem:[#allocation2 + $0x8] sm:$0xff]
    %v161 = vld [vmem:[#allocation2 + $0x10] sm:$0xff]
    %v162 = vld [vmem:[#allocation2 + $0x28] sm:$0xff]
    %v163 = vld [vmem:[#allocation2 + $0x30] sm:$0xff]
    %s164 = scalar_lea.vmem %s1, 16
    %v165 = vld [vmem:[%s164] sm:$0xff]
    %v166 = vld [vmem:[%s164 + $0x8] sm:$0xff]
    %v168 = vsel %vm129, %v160, 0
    %v171 = vsel %vm129, %v161, 0
    %v174 = vsel %vm129, %v162, 0
    %v177 = vsel %vm129, %v163, 0
    %179 = vmatpush.msra.mxu0 0.0
    %180 = vmatpush.msra.mxu0 0.0
    %181 = vmatpush.msra.mxu0 0.0
    %182 = vmatpush.msra.mxu0 0.0
    %183 = vmatpush.msra.mxu0 0.0
    %184 = vmatpush.msra.mxu0 0.0
    %185 = vmatpush.msra.mxu0 0.0
    %186 = vmatpush.msra.mxu0 0.0
    %187 = vmatpush.msra.mxu0 0.0
    %188 = vmatpush.msra.mxu0 0.0
    %189 = vmatpush.msra.mxu0 0.0
    %190 = vmatpush.msra.mxu0 0.0
    %191 = vmatpush.msra.mxu0 0.0
    %192 = vmatpush.msra.mxu0 0.0
    %193 = vmatpush.msra.mxu0 %v166
    %194 = vmatpush.msra.mxu0 %v165
    %195 = vmatmul.f32.gmra.mxu0 %v168
    %v196 = vpop.f32.mrf.mxu0
    %v197 = vadd.f32 0.0, %v196
    %198 = vmatmul.f32.gmra.mxu0 %v171
    %v199 = vpop.f32.mrf.mxu0
    %v200 = vadd.f32 0.0, %v199
    %201 = vmatmul.f32.gmra.mxu0 %v174
    %v202 = vpop.f32.mrf.mxu0
    %v203 = vadd.f32 0.0, %v202
    %204 = vmatmul.f32.gmra.mxu0 %v177
    %v205 = vpop.f32.mrf.mxu0
    %v206 = vadd.f32 0.0, %v205
    %207 = vdwg.mxu0
    %v209 = vsel %vm129, %v154, 0
    %v212 = vsel %vm129, %v155, 0
    %v215 = vsel %vm129, %v156, 0
    %v218 = vsel %vm129, %v157, 0
    %220 = vmatpush.msra.mxu0 0.0
    %221 = vmatpush.msra.mxu0 0.0
    %222 = vmatpush.msra.mxu0 0.0
    %223 = vmatpush.msra.mxu0 0.0
    %224 = vmatpush.msra.mxu0 0.0
    %225 = vmatpush.msra.mxu0 0.0
    %226 = vmatpush.msra.mxu0 0.0
    %227 = vmatpush.msra.mxu0 0.0
    %228 = vmatpush.msra.mxu0 0.0
    %229 = vmatpush.msra.mxu0 0.0
    %230 = vmatpush.msra.mxu0 0.0
    %231 = vmatpush.msra.mxu0 0.0
    %232 = vmatpush.msra.mxu0 0.0
    %233 = vmatpush.msra.mxu0 0.0
    %234 = vmatpush.msra.mxu0 %v159
    %235 = vmatpush.msra.mxu0 %v158
    %236 = vmatmul.f32.gmra.mxu0 %v209
    %v237 = vpop.f32.mrf.mxu0
    %v238 = vadd.f32 %v197, %v237
    %239 = vmatmul.f32.gmra.mxu0 %v212
    %v240 = vpop.f32.mrf.mxu0
    %v241 = vadd.f32 %v200, %v240
    %242 = vmatmul.f32.gmra.mxu0 %v215
    %v243 = vpop.f32.mrf.mxu0
    %v244 = vadd.f32 %v203, %v243
    %245 = vmatmul.f32.gmra.mxu0 %v218
    %v246 = vpop.f32.mrf.mxu0
    %v247 = vadd.f32 %v206, %v246
    %248 = vdwg.mxu0
    %v249 = vld [vmem:[#allocation2 + $0x9] sm:$0xff]
    %v250 = vld [vmem:[#allocation2 + $0x11] sm:$0xff]
    %v251 = vld [vmem:[#allocation2 + $0x29] sm:$0xff]
    %v252 = vld [vmem:[#allocation2 + $0x31] sm:$0xff]
    %s253 = scalar_lea.vmem %s1, 32
    %v254 = vld [vmem:[%s253] sm:$0xff]
    %v255 = vld [vmem:[%s253 + $0x8] sm:$0xff]
    %v257 = vsel %vm129, %v249, 0
    %v260 = vsel %vm129, %v250, 0
    %v263 = vsel %vm129, %v251, 0
    %v266 = vsel %vm129, %v252, 0
    %268 = vmatpush.msra.mxu0 0.0
    %269 = vmatpush.msra.mxu0 0.0
    %270 = vmatpush.msra.mxu0 0.0
    %271 = vmatpush.msra.mxu0 0.0
    %272 = vmatpush.msra.mxu0 0.0
    %273 = vmatpush.msra.mxu0 0.0
    %274 = vmatpush.msra.mxu0 0.0
    %275 = vmatpush.msra.mxu0 0.0
    %276 = vmatpush.msra.mxu0 0.0
    %277 = vmatpush.msra.mxu0 0.0
    %278 = vmatpush.msra.mxu0 0.0
    %279 = vmatpush.msra.mxu0 0.0
    %280 = vmatpush.msra.mxu0 0.0
    %281 = vmatpush.msra.mxu0 0.0
    %282 = vmatpush.msra.mxu0 %v255
    %283 = vmatpush.msra.mxu0 %v254
    %284 = vmatmul.f32.gmra.mxu0 %v257
    %v285 = vpop.f32.mrf.mxu0
    %v286 = vadd.f32 0.0, %v285
    %287 = vmatmul.f32.gmra.mxu0 %v260
    %v288 = vpop.f32.mrf.mxu0
    %v289 = vadd.f32 0.0, %v288
    %290 = vmatmul.f32.gmra.mxu0 %v263
    %v291 = vpop.f32.mrf.mxu0
    %v292 = vadd.f32 0.0, %v291
    %293 = vmatmul.f32.gmra.mxu0 %v266
    %v294 = vpop.f32.mrf.mxu0
    %v295 = vadd.f32 0.0, %v294
    %296 = vdwg.mxu0
    %v297 = vadd.f32 %v238, %v286
    %v298 = vadd.f32 %v241, %v289
    %v299 = vadd.f32 %v244, %v292
    %v300 = vadd.f32 %v247, %v295
    %v301 = vld [vmem:[#allocation4] sm:$0x1]
    %v303 = vperm.slane %v301, 0
    %v305 = vadd.f32 %v297, %v303
    %v306 = vadd.f32 %v298, %v303
    %v307 = vadd.f32 %v299, %v303
    %v308 = vadd.f32 %v300, %v303
    %v309 = vsel %vm129, %v305, 0.0
    %310 = vadd.xlane.f32.xlu0 %v309
    %v311 = vpop.xlane.xlu0 %310
    %v312 = vsel %vm129, %v306, 0.0
    %313 = vadd.xlane.f32.xlu0 %v312
    %v314 = vpop.xlane.xlu0 %313
    %v315 = vsel %vm129, %v307, 0.0
    %316 = vadd.xlane.f32.xlu0 %v315
    %v317 = vpop.xlane.xlu0 %316
    %v318 = vsel %vm129, %v308, 0.0
    %319 = vadd.xlane.f32.xlu0 %v318
    %v320 = vpop.xlane.xlu0 %319
    %v321 = vrcp.pop 16.0
    %v322 = vmul.f32 16.0, %v321
    %v323 = vsub.f32 1.0, %v322
    %v324 = vmul.f32 %v321, %v323
    %v325 = vadd.f32 %v321, %v324
    %vm326 = vweird.f32 %v321
    %v327 = vsel %vm326, %v321, %v325
    %v328 = vmul.f32 %v311, %v327
    %v329 = vmul.f32 %v314, %v327
    %v330 = vmul.f32 %v317, %v327
    %v331 = vmul.f32 %v320, %v327
    %v332 = vsub.f32 %v305, %v328
    %v333 = vsub.f32 %v306, %v329
    %v334 = vsub.f32 %v307, %v330
    %v335 = vsub.f32 %v308, %v331
    %v336 = vmul.f32 %v332, %v332
    %v337 = vmul.f32 %v333, %v333
    %v338 = vmul.f32 %v334, %v334
    %v339 = vmul.f32 %v335, %v335
    %v340 = vsel %vm129, %v336, 0.0
    %341 = vadd.xlane.f32.xlu0 %v340
    %v342 = vpop.xlane.xlu0 %341
    %v343 = vsel %vm129, %v337, 0.0
    %344 = vadd.xlane.f32.xlu0 %v343
    %v345 = vpop.xlane.xlu0 %344
    %v346 = vsel %vm129, %v338, 0.0
    %347 = vadd.xlane.f32.xlu0 %v346
    %v348 = vpop.xlane.xlu0 %347
    %v349 = vsel %vm129, %v339, 0.0
    %350 = vadd.xlane.f32.xlu0 %v349
    %v351 = vpop.xlane.xlu0 %350
    %v352 = vmul.f32 %v342, %v327
    %v353 = vmul.f32 %v345, %v327
    %v354 = vmul.f32 %v348, %v327
    %v355 = vmul.f32 %v351, %v327
    %v356 = vadd.f32 %v352, 1e-05
    %v357 = vadd.f32 %v353, 1e-05
    %v358 = vadd.f32 %v354, 1e-05
    %v359 = vadd.f32 %v355, 1e-05
    %v360 = vrsqrt.pop %v356
    %v361 = vmul.f32 %v360, %v356
    %v362 = vmul.f32 %v361, %v360
    %v363 = vmul.f32 0.5, %v362
    %v364 = vsub.f32 1.5, %v363
    %v365 = vmul.f32 %v360, %v364
    %vm366 = vweird.f32 %v356
    %vm367 = vweird.f32 %v360
    %vm368 = vmor %vm366, %vm367
    %v369 = vsel %vm368, %v360, %v365
    %v370 = vrsqrt.pop %v357
    %v371 = vmul.f32 %v370, %v357
    %v372 = vmul.f32 %v371, %v370
    %v373 = vmul.f32 0.5, %v372
    %v374 = vsub.f32 1.5, %v373
    %v375 = vmul.f32 %v370, %v374
    %vm376 = vweird.f32 %v357
    %vm377 = vweird.f32 %v370
    %vm378 = vmor %vm376, %vm377
    %v379 = vsel %vm378, %v370, %v375
    %v380 = vrsqrt.pop %v358
    %v381 = vmul.f32 %v380, %v358
    %v382 = vmul.f32 %v381, %v380
    %v383 = vmul.f32 0.5, %v382
    %v384 = vsub.f32 1.5, %v383
    %v385 = vmul.f32 %v380, %v384
    %vm386 = vweird.f32 %v358
    %vm387 = vweird.f32 %v380
    %vm388 = vmor %vm386, %vm387
    %v389 = vsel %vm388, %v380, %v385
    %v390 = vrsqrt.pop %v359
    %v391 = vmul.f32 %v390, %v359
    %v392 = vmul.f32 %v391, %v390
    %v393 = vmul.f32 0.5, %v392
    %v394 = vsub.f32 1.5, %v393
    %v395 = vmul.f32 %v390, %v394
    %vm396 = vweird.f32 %v359
    %vm397 = vweird.f32 %v390
    %vm398 = vmor %vm396, %vm397
    %v399 = vsel %vm398, %v390, %v395
    %v400 = vmul.f32 %v332, %v369
    %v401 = vmul.f32 %v333, %v379
    %v402 = vmul.f32 %v334, %v389
    %v403 = vmul.f32 %v335, %v399
    %v404 = vld [vmem:[#allocation6] sm:$0x1]
    %v406 = vperm.slane %v404, 0
    %v408 = vmul.f32 %v400, %v406
    %v409 = vmul.f32 %v401, %v406
    %v410 = vmul.f32 %v402, %v406
    %v411 = vmul.f32 %v403, %v406
    %v412 = vld [vmem:[#allocation8] sm:$0x1]
    %v414 = vperm.slane %v412, 0
    %v416 = vadd.f32 %v408, %v414
    %v417 = vadd.f32 %v409, %v414
    %v418 = vadd.f32 %v410, %v414
    %v419 = vadd.f32 %v411, %v414
    %v420 = vmax.f32 %v416, 0.0
    %v421 = vmax.f32 %v417, 0.0
    %v422 = vmax.f32 %v418, 0.0
    %v423 = vmax.f32 %v419, 0.0
    %424 = vst.msk [vmem:[#allocation3 + $0x8] sm:$0xff] %vm129, %v420
    %425 = vst.msk [vmem:[#allocation3 + $0x10] sm:$0xff] %vm129, %v421
    %426 = vst.msk [vmem:[#allocation3 + $0x28] sm:$0xff] %vm129, %v422
    %427 = vst.msk [vmem:[#allocation3 + $0x30] sm:$0xff] %vm129, %v423
    %v428 = vld [vmem:[#allocation3 + $0x7] sm:$0xff]
    %v429 = vld [vmem:[#allocation3 + $0xf] sm:$0xff]
    %v430 = vld [vmem:[#allocation3 + $0x27] sm:$0xff]
    %v431 = vld [vmem:[#allocation3 + $0x2f] sm:$0xff]
    %v432 = vld [vmem:[#allocation9] sm:$0xff]
    %v433 = vld [vmem:[#allocation9 + $0x8] sm:$0xff]
    %v434 = vld [vmem:[#allocation3 + $0x8] sm:$0xff]
    %v435 = vld [vmem:[#allocation3 + $0x10] sm:$0xff]
    %v436 = vld [vmem:[#allocation3 + $0x28] sm:$0xff]
    %v437 = vld [vmem:[#allocation3 + $0x30] sm:$0xff]
    %s438 = scalar_lea.vmem [#allocation9], 16
    %v439 = vld [vmem:[%s438] sm:$0xff]
    %v440 = vld [vmem:[%s438 + $0x8] sm:$0xff]
    %v442 = vsel %vm129, %v434, 0
    %v445 = vsel %vm129, %v435, 0
    %v448 = vsel %vm129, %v436, 0
    %v451 = vsel %vm129, %v437, 0
    %453 = vmatpush.msra.mxu0 0.0
    %454 = vmatpush.msra.mxu0 0.0
    %455 = vmatpush.msra.mxu0 0.0
    %456 = vmatpush.msra.mxu0 0.0
    %457 = vmatpush.msra.mxu0 0.0
    %458 = vmatpush.msra.mxu0 0.0
    %459 = vmatpush.msra.mxu0 0.0
    %460 = vmatpush.msra.mxu0 0.0
    %461 = vmatpush.msra.mxu0 0.0
    %462 = vmatpush.msra.mxu0 0.0
    %463 = vmatpush.msra.mxu0 0.0
    %464 = vmatpush.msra.mxu0 0.0
    %465 = vmatpush.msra.mxu0 0.0
    %466 = vmatpush.msra.mxu0 0.0
    %467 = vmatpush.msra.mxu0 %v440
    %468 = vmatpush.msra.mxu0 %v439
    %469 = vmatmul.f32.gmra.mxu0 %v442
    %v470 = vpop.f32.mrf.mxu0
    %v471 = vadd.f32 0.0, %v470
    %472 = vmatmul.f32.gmra.mxu0 %v445
    %v473 = vpop.f32.mrf.mxu0
    %v474 = vadd.f32 0.0, %v473
    %475 = vmatmul.f32.gmra.mxu0 %v448
    %v476 = vpop.f32.mrf.mxu0
    %v477 = vadd.f32 0.0, %v476
    %478 = vmatmul.f32.gmra.mxu0 %v451
    %v479 = vpop.f32.mrf.mxu0
    %v480 = vadd.f32 0.0, %v479
    %481 = vdwg.mxu0
    %v483 = vsel %vm129, %v428, 0
    %v486 = vsel %vm129, %v429, 0
    %v489 = vsel %vm129, %v430, 0
    %v492 = vsel %vm129, %v431, 0
    %494 = vmatpush.msra.mxu0 0.0
    %495 = vmatpush.msra.mxu0 0.0
    %496 = vmatpush.msra.mxu0 0.0
    %497 = vmatpush.msra.mxu0 0.0
    %498 = vmatpush.msra.mxu0 0.0
    %499 = vmatpush.msra.mxu0 0.0
    %500 = vmatpush.msra.mxu0 0.0
    %501 = vmatpush.msra.mxu0 0.0
    %502 = vmatpush.msra.mxu0 0.0
    %503 = vmatpush.msra.mxu0 0.0
    %504 = vmatpush.msra.mxu0 0.0
    %505 = vmatpush.msra.mxu0 0.0
    %506 = vmatpush.msra.mxu0 0.0
    %507 = vmatpush.msra.mxu0 0.0
    %508 = vmatpush.msra.mxu0 %v433
    %509 = vmatpush.msra.mxu0 %v432
    %510 = vmatmul.f32.gmra.mxu0 %v483
    %v511 = vpop.f32.mrf.mxu0
    %v512 = vadd.f32 %v471, %v511
    %513 = vmatmul.f32.gmra.mxu0 %v486
    %v514 = vpop.f32.mrf.mxu0
    %v515 = vadd.f32 %v474, %v514
    %516 = vmatmul.f32.gmra.mxu0 %v489
    %v517 = vpop.f32.mrf.mxu0
    %v518 = vadd.f32 %v477, %v517
    %519 = vmatmul.f32.gmra.mxu0 %v492
    %v520 = vpop.f32.mrf.mxu0
    %v521 = vadd.f32 %v480, %v520
    %522 = vdwg.mxu0
    %v523 = vld [vmem:[#allocation3 + $0x9] sm:$0xff]
    %v524 = vld [vmem:[#allocation3 + $0x11] sm:$0xff]
    %v525 = vld [vmem:[#allocation3 + $0x29] sm:$0xff]
    %v526 = vld [vmem:[#allocation3 + $0x31] sm:$0xff]
    %s527 = scalar_lea.vmem [#allocation9], 32
    %v528 = vld [vmem:[%s527] sm:$0xff]
    %v529 = vld [vmem:[%s527 + $0x8] sm:$0xff]
    %v531 = vsel %vm129, %v523, 0
    %v534 = vsel %vm129, %v524, 0
    %v537 = vsel %vm129, %v525, 0
    %v540 = vsel %vm129, %v526, 0
    %542 = vmatpush.msra.mxu0 0.0
    %543 = vmatpush.msra.mxu0 0.0
    %544 = vmatpush.msra.mxu0 0.0
    %545 = vmatpush.msra.mxu0 0.0
    %546 = vmatpush.msra.mxu0 0.0
    %547 = vmatpush.msra.mxu0 0.0
    %548 = vmatpush.msra.mxu0 0.0
    %549 = vmatpush.msra.mxu0 0.0
    %550 = vmatpush.msra.mxu0 0.0
    %551 = vmatpush.msra.mxu0 0.0
    %552 = vmatpush.msra.mxu0 0.0
    %553 = vmatpush.msra.mxu0 0.0
    %554 = vmatpush.msra.mxu0 0.0
    %555 = vmatpush.msra.mxu0 0.0
    %556 = vmatpush.msra.mxu0 %v529
    %557 = vmatpush.msra.mxu0 %v528
    %558 = vmatmul.f32.gmra.mxu0 %v531
    %v559 = vpop.f32.mrf.mxu0
    %v560 = vadd.f32 0.0, %v559
    %561 = vmatmul.f32.gmra.mxu0 %v534
    %v562 = vpop.f32.mrf.mxu0
    %v563 = vadd.f32 0.0, %v562
    %564 = vmatmul.f32.gmra.mxu0 %v537
    %v565 = vpop.f32.mrf.mxu0
    %v566 = vadd.f32 0.0, %v565
    %567 = vmatmul.f32.gmra.mxu0 %v540
    %v568 = vpop.f32.mrf.mxu0
    %v569 = vadd.f32 0.0, %v568
    %570 = vdwg.mxu0
    %v571 = vadd.f32 %v512, %v560
    %v572 = vadd.f32 %v515, %v563
    %v573 = vadd.f32 %v518, %v566
    %v574 = vadd.f32 %v521, %v569
    %v575 = vld [vmem:[#allocation11] sm:$0x1]
    %v577 = vperm.slane %v575, 0
    %v579 = vadd.f32 %v571, %v577
    %v580 = vadd.f32 %v572, %v577
    %v581 = vadd.f32 %v573, %v577
    %v582 = vadd.f32 %v574, %v577
    %v583 = vsel %vm129, %v579, 0.0
    %584 = vadd.xlane.f32.xlu0 %v583
    %v585 = vpop.xlane.xlu0 %584
    %v586 = vsel %vm129, %v580, 0.0
    %587 = vadd.xlane.f32.xlu0 %v586
    %v588 = vpop.xlane.xlu0 %587
    %v589 = vsel %vm129, %v581, 0.0
    %590 = vadd.xlane.f32.xlu0 %v589
    %v591 = vpop.xlane.xlu0 %590
    %v592 = vsel %vm129, %v582, 0.0
    %593 = vadd.xlane.f32.xlu0 %v592
    %v594 = vpop.xlane.xlu0 %593
    %v595 = vmul.f32 %v585, %v327
    %v596 = vmul.f32 %v588, %v327
    %v597 = vmul.f32 %v591, %v327
    %v598 = vmul.f32 %v594, %v327
    %v599 = vsub.f32 %v579, %v595
    %v600 = vsub.f32 %v580, %v596
    %v601 = vsub.f32 %v581, %v597
    %v602 = vsub.f32 %v582, %v598
    %v603 = vmul.f32 %v599, %v599
    %v604 = vmul.f32 %v600, %v600
    %v605 = vmul.f32 %v601, %v601
    %v606 = vmul.f32 %v602, %v602
    %v607 = vsel %vm129, %v603, 0.0
    %608 = vadd.xlane.f32.xlu0 %v607
    %v609 = vpop.xlane.xlu0 %608
    %v610 = vsel %vm129, %v604, 0.0
    %611 = vadd.xlane.f32.xlu0 %v610
    %v612 = vpop.xlane.xlu0 %611
    %v613 = vsel %vm129, %v605, 0.0
    %614 = vadd.xlane.f32.xlu0 %v613
    %v615 = vpop.xlane.xlu0 %614
    %v616 = vsel %vm129, %v606, 0.0
    %617 = vadd.xlane.f32.xlu0 %v616
    %v618 = vpop.xlane.xlu0 %617
    %v619 = vmul.f32 %v609, %v327
    %v620 = vmul.f32 %v612, %v327
    %v621 = vmul.f32 %v615, %v327
    %v622 = vmul.f32 %v618, %v327
    %v623 = vadd.f32 %v619, 1e-05
    %v624 = vadd.f32 %v620, 1e-05
    %v625 = vadd.f32 %v621, 1e-05
    %v626 = vadd.f32 %v622, 1e-05
    %v627 = vrsqrt.pop %v623
    %v628 = vmul.f32 %v627, %v623
    %v629 = vmul.f32 %v628, %v627
    %v630 = vmul.f32 0.5, %v629
    %v631 = vsub.f32 1.5, %v630
    %v632 = vmul.f32 %v627, %v631
    %vm633 = vweird.f32 %v623
    %vm634 = vweird.f32 %v627
    %vm635 = vmor %vm633, %vm634
    %v636 = vsel %vm635, %v627, %v632
    %v637 = vrsqrt.pop %v624
    %v638 = vmul.f32 %v637, %v624
    %v639 = vmul.f32 %v638, %v637
    %v640 = vmul.f32 0.5, %v639
    %v641 = vsub.f32 1.5, %v640
    %v642 = vmul.f32 %v637, %v641
    %vm643 = vweird.f32 %v624
    %vm644 = vweird.f32 %v637
    %vm645 = vmor %vm643, %vm644
    %v646 = vsel %vm645, %v637, %v642
    %v647 = vrsqrt.pop %v625
    %v648 = vmul.f32 %v647, %v625
    %v649 = vmul.f32 %v648, %v647
    %v650 = vmul.f32 0.5, %v649
    %v651 = vsub.f32 1.5, %v650
    %v652 = vmul.f32 %v647, %v651
    %vm653 = vweird.f32 %v625
    %vm654 = vweird.f32 %v647
    %vm655 = vmor %vm653, %vm654
    %v656 = vsel %vm655, %v647, %v652
    %v657 = vrsqrt.pop %v626
    %v658 = vmul.f32 %v657, %v626
    %v659 = vmul.f32 %v658, %v657
    %v660 = vmul.f32 0.5, %v659
    %v661 = vsub.f32 1.5, %v660
    %v662 = vmul.f32 %v657, %v661
    %vm663 = vweird.f32 %v626
    %vm664 = vweird.f32 %v657
    %vm665 = vmor %vm663, %vm664
    %v666 = vsel %vm665, %v657, %v662
    %v667 = vmul.f32 %v599, %v636
    %v668 = vmul.f32 %v600, %v646
    %v669 = vmul.f32 %v601, %v656
    %v670 = vmul.f32 %v602, %v666
    %v671 = vld [vmem:[#allocation12] sm:$0x1]
    %v673 = vperm.slane %v671, 0
    %v675 = vmul.f32 %v667, %v673
    %v676 = vmul.f32 %v668, %v673
    %v677 = vmul.f32 %v669, %v673
    %v678 = vmul.f32 %v670, %v673
    %v679 = vld [vmem:[#allocation14] sm:$0x1]
    %v681 = vperm.slane %v679, 0
    %v683 = vadd.f32 %v675, %v681
    %v684 = vadd.f32 %v676, %v681
    %v685 = vadd.f32 %v677, %v681
    %v686 = vadd.f32 %v678, %v681
    %v687 = vadd.f32 %v683, %v146
    %v688 = vadd.f32 %v684, %v147
    %v689 = vadd.f32 %v685, %v148
    %v690 = vadd.f32 %v686, %v149
    %v691 = vmax.f32 %v687, 0.0
    %v692 = vmax.f32 %v688, 0.0
    %v693 = vmax.f32 %v689, 0.0
    %v694 = vmax.f32 %v690, 0.0
    %695 = vst.msk [vmem:[%s9] sm:$0xff] %vm129, %v691
    %696 = vst.msk [vmem:[%s9 + $0x8] sm:$0xff] %vm129, %v692
    %697 = vst.msk [vmem:[%s9 + $0x10] sm:$0xff] %vm129, %v693
    %698 = vst.msk [vmem:[%s9 + $0x18] sm:$0xff] %vm129, %v694
    // Predicated region
    $region66: #{hyper_resnet_forward.3} parent=1 // pred_check
      _
    $region67: #{hyper_resnet_forward.3} parent=1 // pred_check_branch
      %700 = sbr.rel (0) target = $region69
    $region68: #{hyper_resnet_forward.3} parent=1 // pred_region
      _
    $region69: #{hyper_resnet_forward.3} parent=1 // pred_fallthru
      _
    // Predicated region
    $region70: #{hyper_resnet_forward.3} parent=1 // pred_check
      _
    $region71: #{hyper_resnet_forward.3} parent=1 // pred_check_branch
      %702 = sbr.rel (0) target = $region73
    $region72: #{hyper_resnet_forward.3} parent=1 // pred_region
      _
    $region73: #{hyper_resnet_forward.3} parent=1 // pred_fallthru
      _
    %703 = vsyncpa [#allocation5], 1
    %704 = vsyncpa [#allocation7], 1
    %705 = vsyncpa [#allocation10], 1
    %706 = vsyncpa [#allocation13], 1

// kernel: hyper_resnet_forward.4
$region0: #{hyper_resnet_forward.4}
  #allocation0 [shape = 'u32[]', space=smem, size = 0x4, offset = 0x4, fixed_abs, tag = 'smem constant byte address 0x4 - core index']
  #allocation1 [shape = 'u32[72,128]{1,0:T(1,128)}', space=vmem, size = 0x9000, scoped, tag = 'internal scratch']
  #allocation2 [shape = 'f32[2,32,16]{2,1,0:T(8,128)}', space=vmem, size = 0x8000, scoped, tag = 'scratch operand']
  #allocation3 [shape = 'f32[2,32,32]{2,1,0:T(8,128)}', space=vmem, size = 0x8000, scoped, tag = 'scratch operand']
  %s0 = inlined_call_operand.vmem [shape: f32[2,16,16], index: 0, kind: input, shape index: {}]
  %s1 = inlined_call_operand.hbm [shape: f32[3,16,32], index: 1, kind: input, shape index: {}]
  %s2 = inlined_call_operand.hbm [shape: f32[1,32], index: 2, kind: input, shape index: {}]
  %s3 = inlined_call_operand.hbm [shape: f32[1,32], index: 3, kind: input, shape index: {}]
  %s4 = inlined_call_operand.hbm [shape: f32[1,32], index: 4, kind: input, shape index: {}]
  %s5 = inlined_call_operand.vmem [shape: f32[3,32,32], index: 5, kind: input, shape index: {}]
  %s6 = inlined_call_operand.hbm [shape: f32[1,32], index: 6, kind: input, shape index: {}]
  %s7 = inlined_call_operand.hbm [shape: f32[1,32], index: 7, kind: input, shape index: {}]
  %s8 = inlined_call_operand.hbm [shape: f32[1,32], index: 8, kind: input, shape index: {}]
  %s9 = inlined_call_operand.hbm [shape: f32[3,32,32], index: 9, kind: input, shape index: {}]
  %s10 = inlined_call_operand.hbm [shape: f32[1,32], index: 10, kind: input, shape index: {}]
  %s11 = inlined_call_operand.hbm [shape: f32[1,32], index: 11, kind: input, shape index: {}]
  %s12 = inlined_call_operand.hbm [shape: f32[1,32], index: 12, kind: input, shape index: {}]
  %s13 = inlined_call_operand.hbm [shape: f32[2,16,32], index: 13, kind: output, shape index: {0}]
  %s14 = inlined_call_operand.vmem [shape: f32[2,32], index: 14, kind: output, shape index: {1}]
  %15 = xla_tuple %s13, %s14
  %s16 = sld [smem:[#allocation0]]
  $region114: #{hyper_resnet_forward.4} parent=0
    _
  %s18 = ssub.s32 1, %s16
  %s19 = scalar_select 0, %s18, %s16
  $region1: #{hyper_resnet_forward.4} parent=0
    #allocation4 [shape = 'u8[24576]{0}', space=vmem, size = 0x6000, scoped, tag = 'input window, operand 1, single buffered']
    #allocation5 [shape = 's32[1]{0}', space=sflag, size = 0x4, scoped, tag = 'scoped memory for hyper_resnet_forward.4']
    #allocation6 [shape = 's32[1]{0}', space=sflag, size = 0x4, scoped, tag = 'scoped memory for hyper_resnet_forward.4']
    #allocation7 [shape = 'u8[512]{0}', space=vmem, size = 0x400, scoped, tag = 'input window, operand 2, single buffered']
    #allocation8 [shape = 's32[1]{0}', space=sflag, size = 0x4, scoped, tag = 'scoped memory for hyper_resnet_forward.4']
    #allocation9 [shape = 'u8[512]{0}', space=vmem, size = 0x400, scoped, tag = 'input window, operand 3, single buffered']
    #allocation10 [shape = 'u8[512]{0}', space=vmem, size = 0x400, scoped, tag = 'input window, operand 4, single buffered']
    #allocation11 [shape = 's32[1]{0}', space=sflag, size = 0x4, scoped, tag = 'scoped memory for hyper_resnet_forward.4']
    #allocation12 [shape = 'u8[512]{0}', space=vmem, size = 0x400, scoped, tag = 'input window, operand 6, single buffered']
    #allocation13 [shape = 'u8[512]{0}', space=vmem, size = 0x400, scoped, tag = 'input window, operand 7, single buffered']
    #allocation14 [shape = 's32[1]{0}', space=sflag, size = 0x4, scoped, tag = 'scoped memory for hyper_resnet_forward.4']
    #allocation15 [shape = 'u8[512]{0}', space=vmem, size = 0x400, scoped, tag = 'input window, operand 8, single buffered']
    #allocation16 [shape = 'u8[49152]{0}', space=vmem, size = 0xc000, scoped, tag = 'input window, operand 9, single buffered']
    #allocation17 [shape = 's32[1]{0}', space=sflag, size = 0x4, scoped, tag = 'scoped memory for hyper_resnet_forward.4']
    #allocation18 [shape = 'u8[512]{0}', space=vmem, size = 0x400, scoped, tag = 'input window, operand 10, single buffered']
    #allocation19 [shape = 'u8[512]{0}', space=vmem, size = 0x400, scoped, tag = 'input window, operand 11, single buffered']
    #allocation20 [shape = 's32[1]{0}', space=sflag, size = 0x4, scoped, tag = 'scoped memory for hyper_resnet_forward.4']
    #allocation21 [shape = 'u8[512]{0}', space=vmem, size = 0x400, scoped, tag = 'input window, operand 12, single buffered']
    #allocation22 [shape = 'u8[16384]{0}', space=vmem, size = 0x4000, scoped, tag = 'output window, operand 0, single buffered']
    %20 = vsyncpa [#allocation5], 0
    %21 = vsyncpa [#allocation8], 0
    %22 = vsyncpa [#allocation11], 0
    %23 = vsyncpa [#allocation14], 0
    %24 = vsyncpa [#allocation17], 0
    %25 = vsyncpa [#allocation20], 0
    %26 = vsyncpa [#allocation6], 0
    // Predicated region
    $region2: #{hyper_resnet_forward.4} parent=1 // pred_check
      _
    $region3: #{hyper_resnet_forward.4} parent=1 // pred_check_branch
      %28 = sbr.rel (0) target = $region5
    $region4: #{hyper_resnet_forward.4} parent=1 // pred_region
      _
    $region5: #{hyper_resnet_forward.4} parent=1 // pred_fallthru
      _
    // Predicated region
    $region6: #{hyper_resnet_forward.4} parent=1 // pred_check
      _
    $region7: #{hyper_resnet_forward.4} parent=1 // pred_check_branch
      %30 = sbr.rel (0) target = $region9
    $region8: #{hyper_resnet_forward.4} parent=1 // pred_region
      %32 = vsyncadd [#allocation5], 0
      %s33 = sshll.u32 %s1, 4
      %s34 = int_to_ptr.hbm [resolvable:$true] %s33
      %s35 = sshll.u32 [#allocation4], 4
      %s36 = int_to_ptr.vmem [resolvable:$true] %s35
      %41 = dma.hbm_to_vmem [thread:$0]  %s34, 768, %s36, [#allocation5], 128, 128, 8
    $region9: #{hyper_resnet_forward.4} parent=1 // pred_fallthru
      _
    // Predicated region
    $region10: #{hyper_resnet_forward.4} parent=1 // pred_check
      _
    $region11: #{hyper_resnet_forward.4} parent=1 // pred_check_branch
      %43 = sbr.rel (0) target = $region13
    $region12: #{hyper_resnet_forward.4} parent=1 // pred_region
      %45 = vsyncadd [#allocation8], 0
      %s47 = sshll.u32 %s2, 4
      %s48 = int_to_ptr.hbm [resolvable:$true] %s47
      %s49 = sshll.u32 [#allocation7], 4
      %s50 = int_to_ptr.vmem [resolvable:$true] %s49
      %52 = dma.hbm_to_vmem [thread:$0]  %s48, 16, %s50, [#allocation8]
    $region13: #{hyper_resnet_forward.4} parent=1 // pred_fallthru
      _
    // Predicated region
    $region14: #{hyper_resnet_forward.4} parent=1 // pred_check
      _
    $region15: #{hyper_resnet_forward.4} parent=1 // pred_check_branch
      %54 = sbr.rel (0) target = $region17
    $region16: #{hyper_resnet_forward.4} parent=1 // pred_region
      %56 = vsyncadd [#allocation8], 0
      %s58 = sshll.u32 %s3, 4
      %s59 = int_to_ptr.hbm [resolvable:$true] %s58
      %s60 = sshll.u32 [#allocation9], 4
      %s61 = int_to_ptr.vmem [resolvable:$true] %s60
      %63 = dma.hbm_to_vmem [thread:$0]  %s59, 16, %s61, [#allocation8]
    $region17: #{hyper_resnet_forward.4} parent=1 // pred_fallthru
      _
    // Predicated region
    $region18: #{hyper_resnet_forward.4} parent=1 // pred_check
      _
    $region19: #{hyper_resnet_forward.4} parent=1 // pred_check_branch
      %65 = sbr.rel (0) target = $region21
    $region20: #{hyper_resnet_forward.4} parent=1 // pred_region
      %67 = vsyncadd [#allocation11], 0
      %s69 = sshll.u32 %s4, 4
      %s70 = int_to_ptr.hbm [resolvable:$true] %s69
      %s71 = sshll.u32 [#allocation10], 4
      %s72 = int_to_ptr.vmem [resolvable:$true] %s71
      %74 = dma.hbm_to_vmem [thread:$0]  %s70, 16, %s72, [#allocation11]
    $region21: #{hyper_resnet_forward.4} parent=1 // pred_fallthru
      _
    // Predicated region
    $region22: #{hyper_resnet_forward.4} parent=1 // pred_check
      _
    $region23: #{hyper_resnet_forward.4} parent=1 // pred_check_branch
      %76 = sbr.rel (0) target = $region25
    $region24: #{hyper_resnet_forward.4} parent=1 // pred_region
      _
    $region25: #{hyper_resnet_forward.4} parent=1 // pred_fallthru
      _
    // Predicated region
    $region26: #{hyper_resnet_forward.4} parent=1 // pred_check
      _
    $region27: #{hyper_resnet_forward.4} parent=1 // pred_check_branch
      %78 = sbr.rel (0) target = $region29
    $region28: #{hyper_resnet_forward.4} parent=1 // pred_region
      %80 = vsyncadd [#allocation11], 0
      %s82 = sshll.u32 %s6, 4
      %s83 = int_to_ptr.hbm [resolvable:$true] %s82
      %s84 = sshll.u32 [#allocation12], 4
      %s85 = int_to_ptr.vmem [resolvable:$true] %s84
      %87 = dma.hbm_to_vmem [thread:$0]  %s83, 16, %s85, [#allocation11]
    $region29: #{hyper_resnet_forward.4} parent=1 // pred_fallthru
      _
    // Predicated region
    $region30: #{hyper_resnet_forward.4} parent=1 // pred_check
      _
    $region31: #{hyper_resnet_forward.4} parent=1 // pred_check_branch
      %89 = sbr.rel (0) target = $region33
    $region32: #{hyper_resnet_forward.4} parent=1 // pred_region
      %91 = vsyncadd [#allocation14], 0
      %s93 = sshll.u32 %s7, 4
      %s94 = int_to_ptr.hbm [resolvable:$true] %s93
      %s95 = sshll.u32 [#allocation13], 4
      %s96 = int_to_ptr.vmem [resolvable:$true] %s95
      %98 = dma.hbm_to_vmem [thread:$0]  %s94, 16, %s96, [#allocation14]
    $region33: #{hyper_resnet_forward.4} parent=1 // pred_fallthru
      _
    // Predicated region
    $region34: #{hyper_resnet_forward.4} parent=1 // pred_check
      _
    $region35: #{hyper_resnet_forward.4} parent=1 // pred_check_branch
      %100 = sbr.rel (0) target = $region37
    $region36: #{hyper_resnet_forward.4} parent=1 // pred_region
      %102 = vsyncadd [#allocation14], 0
      %s104 = sshll.u32 %s8, 4
      %s105 = int_to_ptr.hbm [resolvable:$true] %s104
      %s106 = sshll.u32 [#allocation15], 4
      %s107 = int_to_ptr.vmem [resolvable:$true] %s106
      %109 = dma.hbm_to_vmem [thread:$0]  %s105, 16, %s107, [#allocation14]
    $region37: #{hyper_resnet_forward.4} parent=1 // pred_fallthru
      _
    // Predicated region
    $region38: #{hyper_resnet_forward.4} parent=1 // pred_check
      _
    $region39: #{hyper_resnet_forward.4} parent=1 // pred_check_branch
      %111 = sbr.rel (0) target = $region41
    $region40: #{hyper_resnet_forward.4} parent=1 // pred_region
      %113 = vsyncadd [#allocation17], 0
      %s114 = sshll.u32 %s9, 4
      %s115 = int_to_ptr.hbm [resolvable:$true] %s114
      %s116 = sshll.u32 [#allocation16], 4
      %s117 = int_to_ptr.vmem [resolvable:$true] %s116
      %122 = dma.hbm_to_vmem [thread:$0]  %s115, 1536, %s117, [#allocation17], 128, 128, 8
    $region41: #{hyper_resnet_forward.4} parent=1 // pred_fallthru
      _
    // Predicated region
    $region42: #{hyper_resnet_forward.4} parent=1 // pred_check
      _
    $region43: #{hyper_resnet_forward.4} parent=1 // pred_check_branch
      %124 = sbr.rel (0) target = $region45
    $region44: #{hyper_resnet_forward.4} parent=1 // pred_region
      %126 = vsyncadd [#allocation17], 0
      %s128 = sshll.u32 %s10, 4
      %s129 = int_to_ptr.hbm [resolvable:$true] %s128
      %s130 = sshll.u32 [#allocation18], 4
      %s131 = int_to_ptr.vmem [resolvable:$true] %s130
      %133 = dma.hbm_to_vmem [thread:$0]  %s129, 16, %s131, [#allocation17]
    $region45: #{hyper_resnet_forward.4} parent=1 // pred_fallthru
      _
    // Predicated region
    $region46: #{hyper_resnet_forward.4} parent=1 // pred_check
      _
    $region47: #{hyper_resnet_forward.4} parent=1 // pred_check_branch
      %135 = sbr.rel (0) target = $region49
    $region48: #{hyper_resnet_forward.4} parent=1 // pred_region
      %137 = vsyncadd [#allocation20], 0
      %s139 = sshll.u32 %s11, 4
      %s140 = int_to_ptr.hbm [resolvable:$true] %s139
      %s141 = sshll.u32 [#allocation19], 4
      %s142 = int_to_ptr.vmem [resolvable:$true] %s141
      %144 = dma.hbm_to_vmem [thread:$0]  %s140, 16, %s142, [#allocation20]
    $region49: #{hyper_resnet_forward.4} parent=1 // pred_fallthru
      _
    // Predicated region
    $region50: #{hyper_resnet_forward.4} parent=1 // pred_check
      _
    $region51: #{hyper_resnet_forward.4} parent=1 // pred_check_branch
      %146 = sbr.rel (0) target = $region53
    $region52: #{hyper_resnet_forward.4} parent=1 // pred_region
      %148 = vsyncadd [#allocation20], 0
      %s150 = sshll.u32 %s12, 4
      %s151 = int_to_ptr.hbm [resolvable:$true] %s150
      %s152 = sshll.u32 [#allocation21], 4
      %s153 = int_to_ptr.vmem [resolvable:$true] %s152
      %155 = dma.hbm_to_vmem [thread:$0]  %s151, 16, %s153, [#allocation20]
    $region53: #{hyper_resnet_forward.4} parent=1 // pred_fallthru
      _
    // Predicated region
    $region54: #{hyper_resnet_forward.4} parent=1 // pred_check
      _
    $region55: #{hyper_resnet_forward.4} parent=1 // pred_check_branch
      %157 = sbr.rel (0) target = $region57
    $region56: #{hyper_resnet_forward.4} parent=1 // pred_region
      %159 = dma.done [#allocation5], 768
    $region57: #{hyper_resnet_forward.4} parent=1 // pred_fallthru
      _
    // Predicated region
    $region58: #{hyper_resnet_forward.4} parent=1 // pred_check
      _
    $region59: #{hyper_resnet_forward.4} parent=1 // pred_check_branch
      %161 = sbr.rel (0) target = $region61
    $region60: #{hyper_resnet_forward.4} parent=1 // pred_region
      %163 = dma.done [#allocation8], 16
    $region61: #{hyper_resnet_forward.4} parent=1 // pred_fallthru
      _
    // Predicated region
    $region62: #{hyper_resnet_forward.4} parent=1 // pred_check
      _
    $region63: #{hyper_resnet_forward.4} parent=1 // pred_check_branch
      %165 = sbr.rel (0) target = $region65
    $region64: #{hyper_resnet_forward.4} parent=1 // pred_region
      %167 = dma.done [#allocation8], 16
    $region65: #{hyper_resnet_forward.4} parent=1 // pred_fallthru
      _
    // Predicated region
    $region66: #{hyper_resnet_forward.4} parent=1 // pred_check
      _
    $region67: #{hyper_resnet_forward.4} parent=1 // pred_check_branch
      %169 = sbr.rel (0) target = $region69
    $region68: #{hyper_resnet_forward.4} parent=1 // pred_region
      %171 = dma.done [#allocation11], 16
    $region69: #{hyper_resnet_forward.4} parent=1 // pred_fallthru
      _
    // Predicated region
    $region70: #{hyper_resnet_forward.4} parent=1 // pred_check
      _
    $region71: #{hyper_resnet_forward.4} parent=1 // pred_check_branch
      %173 = sbr.rel (0) target = $region73
    $region72: #{hyper_resnet_forward.4} parent=1 // pred_region
      %175 = dma.done [#allocation11], 16
    $region73: #{hyper_resnet_forward.4} parent=1 // pred_fallthru
      _
    // Predicated region
    $region74: #{hyper_resnet_forward.4} parent=1 // pred_check
      _
    $region75: #{hyper_resnet_forward.4} parent=1 // pred_check_branch
      %177 = sbr.rel (0) target = $region77
    $region76: #{hyper_resnet_forward.4} parent=1 // pred_region
      %179 = dma.done [#allocation14], 16
    $region77: #{hyper_resnet_forward.4} parent=1 // pred_fallthru
      _
    // Predicated region
    $region78: #{hyper_resnet_forward.4} parent=1 // pred_check
      _
    $region79: #{hyper_resnet_forward.4} parent=1 // pred_check_branch
      %181 = sbr.rel (0) target = $region81
    $region80: #{hyper_resnet_forward.4} parent=1 // pred_region
      %183 = dma.done [#allocation14], 16
    $region81: #{hyper_resnet_forward.4} parent=1 // pred_fallthru
      _
    // Predicated region
    $region82: #{hyper_resnet_forward.4} parent=1 // pred_check
      _
    $region83: #{hyper_resnet_forward.4} parent=1 // pred_check_branch
      %185 = sbr.rel (0) target = $region85
    $region84: #{hyper_resnet_forward.4} parent=1 // pred_region
      %187 = dma.done [#allocation17], 1536
    $region85: #{hyper_resnet_forward.4} parent=1 // pred_fallthru
      _
    // Predicated region
    $region86: #{hyper_resnet_forward.4} parent=1 // pred_check
      _
    $region87: #{hyper_resnet_forward.4} parent=1 // pred_check_branch
      %189 = sbr.rel (0) target = $region89
    $region88: #{hyper_resnet_forward.4} parent=1 // pred_region
      %191 = dma.done [#allocation17], 16
    $region89: #{hyper_resnet_forward.4} parent=1 // pred_fallthru
      _
    // Predicated region
    $region90: #{hyper_resnet_forward.4} parent=1 // pred_check
      _
    $region91: #{hyper_resnet_forward.4} parent=1 // pred_check_branch
      %193 = sbr.rel (0) target = $region93
    $region92: #{hyper_resnet_forward.4} parent=1 // pred_region
      %195 = dma.done [#allocation20], 16
    $region93: #{hyper_resnet_forward.4} parent=1 // pred_fallthru
      _
    // Predicated region
    $region94: #{hyper_resnet_forward.4} parent=1 // pred_check
      _
    $region95: #{hyper_resnet_forward.4} parent=1 // pred_check_branch
      %197 = sbr.rel (0) target = $region97
    $region96: #{hyper_resnet_forward.4} parent=1 // pred_region
      %199 = dma.done [#allocation20], 16
    $region97: #{hyper_resnet_forward.4} parent=1 // pred_fallthru
      _
    %vm200 = vcmask 130048
    %201 = vst.msk [vmem:[#allocation2] sm:$0xff] %vm200, 0.0
    %202 = vst.msk [vmem:[#allocation2 + $0x8] sm:$0xff] %vm200, 0.0
    %203 = vst.msk [vmem:[#allocation2 + $0x10] sm:$0xff] %vm200, 0.0
    %204 = vst.msk [vmem:[#allocation2 + $0x18] sm:$0xff] %vm200, 0.0
    %205 = vst.msk [vmem:[#allocation2 + $0x20] sm:$0xff] %vm200, 0.0
    %206 = vst.msk [vmem:[#allocation2 + $0x28] sm:$0xff] %vm200, 0.0
    %207 = vst.msk [vmem:[#allocation2 + $0x30] sm:$0xff] %vm200, 0.0
    %208 = vst.msk [vmem:[#allocation2 + $0x38] sm:$0xff] %vm200, 0.0
    %vm209 = vcmask 261120
    %210 = vst.msk [vmem:[#allocation3] sm:$0xff] %vm209, 0.0
    %211 = vst.msk [vmem:[#allocation3 + $0x8] sm:$0xff] %vm209, 0.0
    %212 = vst.msk [vmem:[#allocation3 + $0x10] sm:$0xff] %vm209, 0.0
    %213 = vst.msk [vmem:[#allocation3 + $0x18] sm:$0xff] %vm209, 0.0
    %214 = vst.msk [vmem:[#allocation3 + $0x20] sm:$0xff] %vm209, 0.0
    %215 = vst.msk [vmem:[#allocation3 + $0x28] sm:$0xff] %vm209, 0.0
    %216 = vst.msk [vmem:[#allocation3 + $0x30] sm:$0xff] %vm209, 0.0
    %217 = vst.msk [vmem:[#allocation3 + $0x38] sm:$0xff] %vm209, 0.0
    %v218 = vld [vmem:[%s0] sm:$0xff]
    %v219 = vld [vmem:[%s0 + $0x8] sm:$0xff]
    %v220 = vld [vmem:[%s0 + $0x10] sm:$0xff]
    %v221 = vld [vmem:[%s0 + $0x18] sm:$0xff]
    %222 = vst.msk [vmem:[#allocation2 + $0x8] sm:$0xff] %vm200, %v218
    %223 = vst.msk [vmem:[#allocation2 + $0x10] sm:$0xff] %vm200, %v219
    %224 = vst.msk [vmem:[#allocation2 + $0x28] sm:$0xff] %vm200, %v220
    %225 = vst.msk [vmem:[#allocation2 + $0x30] sm:$0xff] %vm200, %v221
    %v226 = vld [vmem:[#allocation2 + $0x7] sm:$0xff]
    %v227 = vld [vmem:[#allocation2 + $0xf] sm:$0xff]
    %v228 = vld [vmem:[#allocation2 + $0x27] sm:$0xff]
    %v229 = vld [vmem:[#allocation2 + $0x2f] sm:$0xff]
    %v230 = vld [vmem:[#allocation4] sm:$0xff]
    %v231 = vld [vmem:[#allocation4 + $0x8] sm:$0xff]
    %v232 = vld [vmem:[#allocation2 + $0x8] sm:$0xff]
    %v233 = vld [vmem:[#allocation2 + $0x10] sm:$0xff]
    %v234 = vld [vmem:[#allocation2 + $0x28] sm:$0xff]
    %v235 = vld [vmem:[#allocation2 + $0x30] sm:$0xff]
    %s236 = scalar_lea.vmem [#allocation4], 16
    %v237 = vld [vmem:[%s236] sm:$0xff]
    %v238 = vld [vmem:[%s236 + $0x8] sm:$0xff]
    %v240 = vsel %vm200, %v232, 0
    %v243 = vsel %vm200, %v233, 0
    %v246 = vsel %vm200, %v234, 0
    %v249 = vsel %vm200, %v235, 0
    %251 = vmatpush.msra.mxu0 0.0
    %252 = vmatpush.msra.mxu0 0.0
    %253 = vmatpush.msra.mxu0 0.0
    %254 = vmatpush.msra.mxu0 0.0
    %255 = vmatpush.msra.mxu0 0.0
    %256 = vmatpush.msra.mxu0 0.0
    %257 = vmatpush.msra.mxu0 0.0
    %258 = vmatpush.msra.mxu0 0.0
    %259 = vmatpush.msra.mxu0 0.0
    %260 = vmatpush.msra.mxu0 0.0
    %261 = vmatpush.msra.mxu0 0.0
    %262 = vmatpush.msra.mxu0 0.0
    %263 = vmatpush.msra.mxu0 0.0
    %264 = vmatpush.msra.mxu0 0.0
    %265 = vmatpush.msra.mxu0 %v238
    %266 = vmatpush.msra.mxu0 %v237
    %267 = vmatmul.f32.gmra.mxu0 %v240
    %v268 = vpop.f32.mrf.mxu0
    %v269 = vadd.f32 0.0, %v268
    %270 = vmatmul.f32.gmra.mxu0 %v243
    %v271 = vpop.f32.mrf.mxu0
    %v272 = vadd.f32 0.0, %v271
    %273 = vmatmul.f32.gmra.mxu0 %v246
    %v274 = vpop.f32.mrf.mxu0
    %v275 = vadd.f32 0.0, %v274
    %276 = vmatmul.f32.gmra.mxu0 %v249
    %v277 = vpop.f32.mrf.mxu0
    %v278 = vadd.f32 0.0, %v277
    %279 = vdwg.mxu0
    %v281 = vsel %vm200, %v226, 0
    %v284 = vsel %vm200, %v227, 0
    %v287 = vsel %vm200, %v228, 0
    %v290 = vsel %vm200, %v229, 0
    %292 = vmatpush.msra.mxu0 0.0
    %293 = vmatpush.msra.mxu0 0.0
    %294 = vmatpush.msra.mxu0 0.0
    %295 = vmatpush.msra.mxu0 0.0
    %296 = vmatpush.msra.mxu0 0.0
    %297 = vmatpush.msra.mxu0 0.0
    %298 = vmatpush.msra.mxu0 0.0
    %299 = vmatpush.msra.mxu0 0.0
    %300 = vmatpush.msra.mxu0 0.0
    %301 = vmatpush.msra.mxu0 0.0
    %302 = vmatpush.msra.mxu0 0.0
    %303 = vmatpush.msra.mxu0 0.0
    %304 = vmatpush.msra.mxu0 0.0
    %305 = vmatpush.msra.mxu0 0.0
    %306 = vmatpush.msra.mxu0 %v231
    %307 = vmatpush.msra.mxu0 %v230
    %308 = vmatmul.f32.gmra.mxu0 %v281
    %v309 = vpop.f32.mrf.mxu0
    %v310 = vadd.f32 %v269, %v309
    %311 = vmatmul.f32.gmra.mxu0 %v284
    %v312 = vpop.f32.mrf.mxu0
    %v313 = vadd.f32 %v272, %v312
    %314 = vmatmul.f32.gmra.mxu0 %v287
    %v315 = vpop.f32.mrf.mxu0
    %v316 = vadd.f32 %v275, %v315
    %317 = vmatmul.f32.gmra.mxu0 %v290
    %v318 = vpop.f32.mrf.mxu0
    %v319 = vadd.f32 %v278, %v318
    %320 = vdwg.mxu0
    %v321 = vld [vmem:[#allocation2 + $0x9] sm:$0xff]
    %v322 = vld [vmem:[#allocation2 + $0x11] sm:$0xff]
    %v323 = vld [vmem:[#allocation2 + $0x29] sm:$0xff]
    %v324 = vld [vmem:[#allocation2 + $0x31] sm:$0xff]
    %s325 = scalar_lea.vmem [#allocation4], 32
    %v326 = vld [vmem:[%s325] sm:$0xff]
    %v327 = vld [vmem:[%s325 + $0x8] sm:$0xff]
    %v329 = vsel %vm200, %v321, 0
    %v332 = vsel %vm200, %v322, 0
    %v335 = vsel %vm200, %v323, 0
    %v338 = vsel %vm200, %v324, 0
    %340 = vmatpush.msra.mxu0 0.0
    %341 = vmatpush.msra.mxu0 0.0
    %342 = vmatpush.msra.mxu0 0.0
    %343 = vmatpush.msra.mxu0 0.0
    %344 = vmatpush.msra.mxu0 0.0
    %345 = vmatpush.msra.mxu0 0.0
    %346 = vmatpush.msra.mxu0 0.0
    %347 = vmatpush.msra.mxu0 0.0
    %348 = vmatpush.msra.mxu0 0.0
    %349 = vmatpush.msra.mxu0 0.0
    %350 = vmatpush.msra.mxu0 0.0
    %351 = vmatpush.msra.mxu0 0.0
    %352 = vmatpush.msra.mxu0 0.0
    %353 = vmatpush.msra.mxu0 0.0
    %354 = vmatpush.msra.mxu0 %v327
    %355 = vmatpush.msra.mxu0 %v326
    %356 = vmatmul.f32.gmra.mxu0 %v329
    %v357 = vpop.f32.mrf.mxu0
    %v358 = vadd.f32 0.0, %v357
    %359 = vmatmul.f32.gmra.mxu0 %v332
    %v360 = vpop.f32.mrf.mxu0
    %v361 = vadd.f32 0.0, %v360
    %362 = vmatmul.f32.gmra.mxu0 %v335
    %v363 = vpop.f32.mrf.mxu0
    %v364 = vadd.f32 0.0, %v363
    %365 = vmatmul.f32.gmra.mxu0 %v338
    %v366 = vpop.f32.mrf.mxu0
    %v367 = vadd.f32 0.0, %v366
    %368 = vdwg.mxu0
    %v369 = vadd.f32 %v310, %v358
    %v370 = vadd.f32 %v313, %v361
    %v371 = vadd.f32 %v316, %v364
    %v372 = vadd.f32 %v319, %v367
    %v373 = vld [vmem:[#allocation7] sm:$0x1]
    %v375 = vperm.slane %v373, 0
    %v377 = vadd.f32 %v369, %v375
    %v378 = vadd.f32 %v370, %v375
    %v379 = vadd.f32 %v371, %v375
    %v380 = vadd.f32 %v372, %v375
    %v381 = vsel %vm209, %v377, 0.0
    %382 = vadd.xlane.f32.xlu0 %v381
    %v383 = vpop.xlane.xlu0 %382
    %v384 = vsel %vm209, %v378, 0.0
    %385 = vadd.xlane.f32.xlu0 %v384
    %v386 = vpop.xlane.xlu0 %385
    %v387 = vsel %vm209, %v379, 0.0
    %388 = vadd.xlane.f32.xlu0 %v387
    %v389 = vpop.xlane.xlu0 %388
    %v390 = vsel %vm209, %v380, 0.0
    %391 = vadd.xlane.f32.xlu0 %v390
    %v392 = vpop.xlane.xlu0 %391
    %v393 = vrcp.pop 32.0
    %v394 = vmul.f32 32.0, %v393
    %v395 = vsub.f32 1.0, %v394
    %v396 = vmul.f32 %v393, %v395
    %v397 = vadd.f32 %v393, %v396
    %vm398 = vweird.f32 %v393
    %v399 = vsel %vm398, %v393, %v397
    %v400 = vmul.f32 %v383, %v399
    %v401 = vmul.f32 %v386, %v399
    %v402 = vmul.f32 %v389, %v399
    %v403 = vmul.f32 %v392, %v399
    %v404 = vsub.f32 %v377, %v400
    %v405 = vsub.f32 %v378, %v401
    %v406 = vsub.f32 %v379, %v402
    %v407 = vsub.f32 %v380, %v403
    %v408 = vmul.f32 %v404, %v404
    %v409 = vmul.f32 %v405, %v405
    %v410 = vmul.f32 %v406, %v406
    %v411 = vmul.f32 %v407, %v407
    %v412 = vsel %vm209, %v408, 0.0
    %413 = vadd.xlane.f32.xlu0 %v412
    %v414 = vpop.xlane.xlu0 %413
    %v415 = vsel %vm209, %v409, 0.0
    %416 = vadd.xlane.f32.xlu0 %v415
    %v417 = vpop.xlane.xlu0 %416
    %v418 = vsel %vm209, %v410, 0.0
    %419 = vadd.xlane.f32.xlu0 %v418
    %v420 = vpop.xlane.xlu0 %419
    %v421 = vsel %vm209, %v411, 0.0
    %422 = vadd.xlane.f32.xlu0 %v421
    %v423 = vpop.xlane.xlu0 %422
    %v424 = vmul.f32 %v414, %v399
    %v425 = vmul.f32 %v417, %v399
    %v426 = vmul.f32 %v420, %v399
    %v427 = vmul.f32 %v423, %v399
    %v428 = vadd.f32 %v424, 1e-05
    %v429 = vadd.f32 %v425, 1e-05
    %v430 = vadd.f32 %v426, 1e-05
    %v431 = vadd.f32 %v427, 1e-05
    %v432 = vrsqrt.pop %v428
    %v433 = vmul.f32 %v432, %v428
    %v434 = vmul.f32 %v433, %v432
    %v435 = vmul.f32 0.5, %v434
    %v436 = vsub.f32 1.5, %v435
    %v437 = vmul.f32 %v432, %v436
    %vm438 = vweird.f32 %v428
    %vm439 = vweird.f32 %v432
    %vm440 = vmor %vm438, %vm439
    %v441 = vsel %vm440, %v432, %v437
    %v442 = vrsqrt.pop %v429
    %v443 = vmul.f32 %v442, %v429
    %v444 = vmul.f32 %v443, %v442
    %v445 = vmul.f32 0.5, %v444
    %v446 = vsub.f32 1.5, %v445
    %v447 = vmul.f32 %v442, %v446
    %vm448 = vweird.f32 %v429
    %vm449 = vweird.f32 %v442
    %vm450 = vmor %vm448, %vm449
    %v451 = vsel %vm450, %v442, %v447
    %v452 = vrsqrt.pop %v430
    %v453 = vmul.f32 %v452, %v430
    %v454 = vmul.f32 %v453, %v452
    %v455 = vmul.f32 0.5, %v454
    %v456 = vsub.f32 1.5, %v455
    %v457 = vmul.f32 %v452, %v456
    %vm458 = vweird.f32 %v430
    %vm459 = vweird.f32 %v452
    %vm460 = vmor %vm458, %vm459
    %v461 = vsel %vm460, %v452, %v457
    %v462 = vrsqrt.pop %v431
    %v463 = vmul.f32 %v462, %v431
    %v464 = vmul.f32 %v463, %v462
    %v465 = vmul.f32 0.5, %v464
    %v466 = vsub.f32 1.5, %v465
    %v467 = vmul.f32 %v462, %v466
    %vm468 = vweird.f32 %v431
    %vm469 = vweird.f32 %v462
    %vm470 = vmor %vm468, %vm469
    %v471 = vsel %vm470, %v462, %v467
    %v472 = vmul.f32 %v404, %v441
    %v473 = vmul.f32 %v405, %v451
    %v474 = vmul.f32 %v406, %v461
    %v475 = vmul.f32 %v407, %v471
    %v476 = vld [vmem:[#allocation9] sm:$0x1]
    %v478 = vperm.slane %v476, 0
    %v480 = vmul.f32 %v472, %v478
    %v481 = vmul.f32 %v473, %v478
    %v482 = vmul.f32 %v474, %v478
    %v483 = vmul.f32 %v475, %v478
    %v484 = vld [vmem:[#allocation10] sm:$0x1]
    %v486 = vperm.slane %v484, 0
    %v488 = vadd.f32 %v480, %v486
    %v489 = vadd.f32 %v481, %v486
    %v490 = vadd.f32 %v482, %v486
    %v491 = vadd.f32 %v483, %v486
    %492 = vst.msk [vmem:[#allocation3 + $0x8] sm:$0xff] %vm209, %v488
    %493 = vst.msk [vmem:[#allocation3 + $0x10] sm:$0xff] %vm209, %v489
    %494 = vst.msk [vmem:[#allocation3 + $0x28] sm:$0xff] %vm209, %v490
    %495 = vst.msk [vmem:[#allocation3 + $0x30] sm:$0xff] %vm209, %v491
    %v496 = vld [vmem:[#allocation3 + $0x7] sm:$0xff]
    %v497 = vld [vmem:[#allocation3 + $0xf] sm:$0xff]
    %v498 = vld [vmem:[#allocation3 + $0x27] sm:$0xff]
    %v499 = vld [vmem:[#allocation3 + $0x2f] sm:$0xff]
    %v500 = vld [vmem:[%s5] sm:$0xff]
    %v501 = vld [vmem:[%s5 + $0x8] sm:$0xff]
    %v502 = vld [vmem:[%s5 + $0x10] sm:$0xff]
    %v503 = vld [vmem:[%s5 + $0x18] sm:$0xff]
    %v504 = vld [vmem:[#allocation3 + $0x8] sm:$0xff]
    %v505 = vld [vmem:[#allocation3 + $0x10] sm:$0xff]
    %v506 = vld [vmem:[#allocation3 + $0x28] sm:$0xff]
    %v507 = vld [vmem:[#allocation3 + $0x30] sm:$0xff]
    %s508 = scalar_lea.vmem %s5, 32
    %v509 = vld [vmem:[%s508] sm:$0xff]
    %v510 = vld [vmem:[%s508 + $0x8] sm:$0xff]
    %v511 = vld [vmem:[%s508 + $0x10] sm:$0xff]
    %v512 = vld [vmem:[%s508 + $0x18] sm:$0xff]
    %v514 = vsel %vm209, %v504, 0
    %v517 = vsel %vm209, %v505, 0
    %v520 = vsel %vm209, %v506, 0
    %v523 = vsel %vm209, %v507, 0
    %525 = vmatpush.msra.mxu0 0.0
    %526 = vmatpush.msra.mxu0 0.0
    %527 = vmatpush.msra.mxu0 0.0
    %528 = vmatpush.msra.mxu0 0.0
    %529 = vmatpush.msra.mxu0 0.0
    %530 = vmatpush.msra.mxu0 0.0
    %531 = vmatpush.msra.mxu0 0.0
    %532 = vmatpush.msra.mxu0 0.0
    %533 = vmatpush.msra.mxu0 0.0
    %534 = vmatpush.msra.mxu0 0.0
    %535 = vmatpush.msra.mxu0 0.0
    %536 = vmatpush.msra.mxu0 0.0
    %537 = vmatpush.msra.mxu0 %v512
    %538 = vmatpush.msra.mxu0 %v511
    %539 = vmatpush.msra.mxu0 %v510
    %540 = vmatpush.msra.mxu0 %v509
    %541 = vmatmul.f32.gmra.mxu0 %v514
    %v542 = vpop.f32.mrf.mxu0
    %v543 = vadd.f32 0.0, %v542
    %544 = vmatmul.f32.gmra.mxu0 %v517
    %v545 = vpop.f32.mrf.mxu0
    %v546 = vadd.f32 0.0, %v545
    %547 = vmatmul.f32.gmra.mxu0 %v520
    %v548 = vpop.f32.mrf.mxu0
    %v549 = vadd.f32 0.0, %v548
    %550 = vmatmul.f32.gmra.mxu0 %v523
    %v551 = vpop.f32.mrf.mxu0
    %v552 = vadd.f32 0.0, %v551
    %553 = vdwg.mxu0
    %v555 = vsel %vm209, %v496, 0
    %v558 = vsel %vm209, %v497, 0
    %v561 = vsel %vm209, %v498, 0
    %v564 = vsel %vm209, %v499, 0
    %566 = vmatpush.msra.mxu0 0.0
    %567 = vmatpush.msra.mxu0 0.0
    %568 = vmatpush.msra.mxu0 0.0
    %569 = vmatpush.msra.mxu0 0.0
    %570 = vmatpush.msra.mxu0 0.0
    %571 = vmatpush.msra.mxu0 0.0
    %572 = vmatpush.msra.mxu0 0.0
    %573 = vmatpush.msra.mxu0 0.0
    %574 = vmatpush.msra.mxu0 0.0
    %575 = vmatpush.msra.mxu0 0.0
    %576 = vmatpush.msra.mxu0 0.0
    %577 = vmatpush.msra.mxu0 0.0
    %578 = vmatpush.msra.mxu0 %v503
    %579 = vmatpush.msra.mxu0 %v502
    %580 = vmatpush.msra.mxu0 %v501
    %581 = vmatpush.msra.mxu0 %v500
    %582 = vmatmul.f32.gmra.mxu0 %v555
    %v583 = vpop.f32.mrf.mxu0
    %v584 = vadd.f32 %v543, %v583
    %585 = vmatmul.f32.gmra.mxu0 %v558
    %v586 = vpop.f32.mrf.mxu0
    %v587 = vadd.f32 %v546, %v586
    %588 = vmatmul.f32.gmra.mxu0 %v561
    %v589 = vpop.f32.mrf.mxu0
    %v590 = vadd.f32 %v549, %v589
    %591 = vmatmul.f32.gmra.mxu0 %v564
    %v592 = vpop.f32.mrf.mxu0
    %v593 = vadd.f32 %v552, %v592
    %594 = vdwg.mxu0
    %v595 = vld [vmem:[#allocation3 + $0x9] sm:$0xff]
    %v596 = vld [vmem:[#allocation3 + $0x11] sm:$0xff]
    %v597 = vld [vmem:[#allocation3 + $0x29] sm:$0xff]
    %v598 = vld [vmem:[#allocation3 + $0x31] sm:$0xff]
    %s599 = scalar_lea.vmem %s5, 64
    %v600 = vld [vmem:[%s599] sm:$0xff]
    %v601 = vld [vmem:[%s599 + $0x8] sm:$0xff]
    %v602 = vld [vmem:[%s599 + $0x10] sm:$0xff]
    %v603 = vld [vmem:[%s599 + $0x18] sm:$0xff]
    %v605 = vsel %vm209, %v595, 0
    %v608 = vsel %vm209, %v596, 0
    %v611 = vsel %vm209, %v597, 0
    %v614 = vsel %vm209, %v598, 0
    %616 = vmatpush.msra.mxu0 0.0
    %617 = vmatpush.msra.mxu0 0.0
    %618 = vmatpush.msra.mxu0 0.0
    %619 = vmatpush.msra.mxu0 0.0
    %620 = vmatpush.msra.mxu0 0.0
    %621 = vmatpush.msra.mxu0 0.0
    %622 = vmatpush.msra.mxu0 0.0
    %623 = vmatpush.msra.mxu0 0.0
    %624 = vmatpush.msra.mxu0 0.0
    %625 = vmatpush.msra.mxu0 0.0
    %626 = vmatpush.msra.mxu0 0.0
    %627 = vmatpush.msra.mxu0 0.0
    %628 = vmatpush.msra.mxu0 %v603
    %629 = vmatpush.msra.mxu0 %v602
    %630 = vmatpush.msra.mxu0 %v601
    %631 = vmatpush.msra.mxu0 %v600
    %632 = vmatmul.f32.gmra.mxu0 %v605
    %v633 = vpop.f32.mrf.mxu0
    %v634 = vadd.f32 0.0, %v633
    %635 = vmatmul.f32.gmra.mxu0 %v608
    %v636 = vpop.f32.mrf.mxu0
    %v637 = vadd.f32 0.0, %v636
    %638 = vmatmul.f32.gmra.mxu0 %v611
    %v639 = vpop.f32.mrf.mxu0
    %v640 = vadd.f32 0.0, %v639
    %641 = vmatmul.f32.gmra.mxu0 %v614
    %v642 = vpop.f32.mrf.mxu0
    %v643 = vadd.f32 0.0, %v642
    %644 = vdwg.mxu0
    %v645 = vadd.f32 %v584, %v634
    %v646 = vadd.f32 %v587, %v637
    %v647 = vadd.f32 %v590, %v640
    %v648 = vadd.f32 %v593, %v643
    %v649 = vld [vmem:[#allocation12] sm:$0x1]
    %v651 = vperm.slane %v649, 0
    %v653 = vadd.f32 %v645, %v651
    %v654 = vadd.f32 %v646, %v651
    %v655 = vadd.f32 %v647, %v651
    %v656 = vadd.f32 %v648, %v651
    %v657 = vsel %vm209, %v653, 0.0
    %658 = vadd.xlane.f32.xlu0 %v657
    %v659 = vpop.xlane.xlu0 %658
    %v660 = vsel %vm209, %v654, 0.0
    %661 = vadd.xlane.f32.xlu0 %v660
    %v662 = vpop.xlane.xlu0 %661
    %v663 = vsel %vm209, %v655, 0.0
    %664 = vadd.xlane.f32.xlu0 %v663
    %v665 = vpop.xlane.xlu0 %664
    %v666 = vsel %vm209, %v656, 0.0
    %667 = vadd.xlane.f32.xlu0 %v666
    %v668 = vpop.xlane.xlu0 %667
    %v669 = vmul.f32 %v659, %v399
    %v670 = vmul.f32 %v662, %v399
    %v671 = vmul.f32 %v665, %v399
    %v672 = vmul.f32 %v668, %v399
    %v673 = vsub.f32 %v653, %v669
    %v674 = vsub.f32 %v654, %v670
    %v675 = vsub.f32 %v655, %v671
    %v676 = vsub.f32 %v656, %v672
    %v677 = vmul.f32 %v673, %v673
    %v678 = vmul.f32 %v674, %v674
    %v679 = vmul.f32 %v675, %v675
    %v680 = vmul.f32 %v676, %v676
    %v681 = vsel %vm209, %v677, 0.0
    %682 = vadd.xlane.f32.xlu0 %v681
    %v683 = vpop.xlane.xlu0 %682
    %v684 = vsel %vm209, %v678, 0.0
    %685 = vadd.xlane.f32.xlu0 %v684
    %v686 = vpop.xlane.xlu0 %685
    %v687 = vsel %vm209, %v679, 0.0
    %688 = vadd.xlane.f32.xlu0 %v687
    %v689 = vpop.xlane.xlu0 %688
    %v690 = vsel %vm209, %v680, 0.0
    %691 = vadd.xlane.f32.xlu0 %v690
    %v692 = vpop.xlane.xlu0 %691
    %v693 = vmul.f32 %v683, %v399
    %v694 = vmul.f32 %v686, %v399
    %v695 = vmul.f32 %v689, %v399
    %v696 = vmul.f32 %v692, %v399
    %v697 = vadd.f32 %v693, 1e-05
    %v698 = vadd.f32 %v694, 1e-05
    %v699 = vadd.f32 %v695, 1e-05
    %v700 = vadd.f32 %v696, 1e-05
    %v701 = vrsqrt.pop %v697
    %v702 = vmul.f32 %v701, %v697
    %v703 = vmul.f32 %v702, %v701
    %v704 = vmul.f32 0.5, %v703
    %v705 = vsub.f32 1.5, %v704
    %v706 = vmul.f32 %v701, %v705
    %vm707 = vweird.f32 %v697
    %vm708 = vweird.f32 %v701
    %vm709 = vmor %vm707, %vm708
    %v710 = vsel %vm709, %v701, %v706
    %v711 = vrsqrt.pop %v698
    %v712 = vmul.f32 %v711, %v698
    %v713 = vmul.f32 %v712, %v711
    %v714 = vmul.f32 0.5, %v713
    %v715 = vsub.f32 1.5, %v714
    %v716 = vmul.f32 %v711, %v715
    %vm717 = vweird.f32 %v698
    %vm718 = vweird.f32 %v711
    %vm719 = vmor %vm717, %vm718
    %v720 = vsel %vm719, %v711, %v716
    %v721 = vrsqrt.pop %v699
    %v722 = vmul.f32 %v721, %v699
    %v723 = vmul.f32 %v722, %v721
    %v724 = vmul.f32 0.5, %v723
    %v725 = vsub.f32 1.5, %v724
    %v726 = vmul.f32 %v721, %v725
    %vm727 = vweird.f32 %v699
    %vm728 = vweird.f32 %v721
    %vm729 = vmor %vm727, %vm728
    %v730 = vsel %vm729, %v721, %v726
    %v731 = vrsqrt.pop %v700
    %v732 = vmul.f32 %v731, %v700
    %v733 = vmul.f32 %v732, %v731
    %v734 = vmul.f32 0.5, %v733
    %v735 = vsub.f32 1.5, %v734
    %v736 = vmul.f32 %v731, %v735
    %vm737 = vweird.f32 %v700
    %vm738 = vweird.f32 %v731
    %vm739 = vmor %vm737, %vm738
    %v740 = vsel %vm739, %v731, %v736
    %v741 = vmul.f32 %v673, %v710
    %v742 = vmul.f32 %v674, %v720
    %v743 = vmul.f32 %v675, %v730
    %v744 = vmul.f32 %v676, %v740
    %v745 = vld [vmem:[#allocation13] sm:$0x1]
    %v747 = vperm.slane %v745, 0
    %v749 = vmul.f32 %v741, %v747
    %v750 = vmul.f32 %v742, %v747
    %v751 = vmul.f32 %v743, %v747
    %v752 = vmul.f32 %v744, %v747
    %v753 = vld [vmem:[#allocation15] sm:$0x1]
    %v755 = vperm.slane %v753, 0
    %v757 = vadd.f32 %v749, %v755
    %v758 = vadd.f32 %v750, %v755
    %v759 = vadd.f32 %v751, %v755
    %v760 = vadd.f32 %v752, %v755
    %v761 = vmax.f32 %v757, 0.0
    %v762 = vmax.f32 %v758, 0.0
    %v763 = vmax.f32 %v759, 0.0
    %v764 = vmax.f32 %v760, 0.0
    %765 = vst.msk [vmem:[#allocation3 + $0x8] sm:$0xff] %vm209, %v761
    %766 = vst.msk [vmem:[#allocation3 + $0x10] sm:$0xff] %vm209, %v762
    %767 = vst.msk [vmem:[#allocation3 + $0x28] sm:$0xff] %vm209, %v763
    %768 = vst.msk [vmem:[#allocation3 + $0x30] sm:$0xff] %vm209, %v764
    %v769 = vld [vmem:[#allocation3 + $0x7] sm:$0xff]
    %v770 = vld [vmem:[#allocation3 + $0xf] sm:$0xff]
    %v771 = vld [vmem:[#allocation3 + $0x27] sm:$0xff]
    %v772 = vld [vmem:[#allocation3 + $0x2f] sm:$0xff]
    %v773 = vld [vmem:[#allocation16] sm:$0xff]
    %v774 = vld [vmem:[#allocation16 + $0x8] sm:$0xff]
    %v775 = vld [vmem:[#allocation16 + $0x10] sm:$0xff]
    %v776 = vld [vmem:[#allocation16 + $0x18] sm:$0xff]
    %v777 = vld [vmem:[#allocation3 + $0x8] sm:$0xff]
    %v778 = vld [vmem:[#allocation3 + $0x10] sm:$0xff]
    %v779 = vld [vmem:[#allocation3 + $0x28] sm:$0xff]
    %v780 = vld [vmem:[#allocation3 + $0x30] sm:$0xff]
    %s781 = scalar_lea.vmem [#allocation16], 32
    %v782 = vld [vmem:[%s781] sm:$0xff]
    %v783 = vld [vmem:[%s781 + $0x8] sm:$0xff]
    %v784 = vld [vmem:[%s781 + $0x10] sm:$0xff]
    %v785 = vld [vmem:[%s781 + $0x18] sm:$0xff]
    %v787 = vsel %vm209, %v777, 0
    %v790 = vsel %vm209, %v778, 0
    %v793 = vsel %vm209, %v779, 0
    %v796 = vsel %vm209, %v780, 0
    %798 = vmatpush.msra.mxu0 0.0
    %799 = vmatpush.msra.mxu0 0.0
    %800 = vmatpush.msra.mxu0 0.0
    %801 = vmatpush.msra.mxu0 0.0
    %802 = vmatpush.msra.mxu0 0.0
    %803 = vmatpush.msra.mxu0 0.0
    %804 = vmatpush.msra.mxu0 0.0
    %805 = vmatpush.msra.mxu0 0.0
    %806 = vmatpush.msra.mxu0 0.0
    %807 = vmatpush.msra.mxu0 0.0
    %808 = vmatpush.msra.mxu0 0.0
    %809 = vmatpush.msra.mxu0 0.0
    %810 = vmatpush.msra.mxu0 %v785
    %811 = vmatpush.msra.mxu0 %v784
    %812 = vmatpush.msra.mxu0 %v783
    %813 = vmatpush.msra.mxu0 %v782
    %814 = vmatmul.f32.gmra.mxu0 %v787
    %v815 = vpop.f32.mrf.mxu0
    %v816 = vadd.f32 0.0, %v815
    %817 = vmatmul.f32.gmra.mxu0 %v790
    %v818 = vpop.f32.mrf.mxu0
    %v819 = vadd.f32 0.0, %v818
    %820 = vmatmul.f32.gmra.mxu0 %v793
    %v821 = vpop.f32.mrf.mxu0
    %v822 = vadd.f32 0.0, %v821
    %823 = vmatmul.f32.gmra.mxu0 %v796
    %v824 = vpop.f32.mrf.mxu0
    %v825 = vadd.f32 0.0, %v824
    %826 = vdwg.mxu0
    %v828 = vsel %vm209, %v769, 0
    %v831 = vsel %vm209, %v770, 0
    %v834 = vsel %vm209, %v771, 0
    %v837 = vsel %vm209, %v772, 0
    %839 = vmatpush.msra.mxu0 0.0
    %840 = vmatpush.msra.mxu0 0.0
    %841 = vmatpush.msra.mxu0 0.0
    %842 = vmatpush.msra.mxu0 0.0
    %843 = vmatpush.msra.mxu0 0.0
    %844 = vmatpush.msra.mxu0 0.0
    %845 = vmatpush.msra.mxu0 0.0
    %846 = vmatpush.msra.mxu0 0.0
    %847 = vmatpush.msra.mxu0 0.0
    %848 = vmatpush.msra.mxu0 0.0
    %849 = vmatpush.msra.mxu0 0.0
    %850 = vmatpush.msra.mxu0 0.0
    %851 = vmatpush.msra.mxu0 %v776
    %852 = vmatpush.msra.mxu0 %v775
    %853 = vmatpush.msra.mxu0 %v774
    %854 = vmatpush.msra.mxu0 %v773
    %855 = vmatmul.f32.gmra.mxu0 %v828
    %v856 = vpop.f32.mrf.mxu0
    %v857 = vadd.f32 %v816, %v856
    %858 = vmatmul.f32.gmra.mxu0 %v831
    %v859 = vpop.f32.mrf.mxu0
    %v860 = vadd.f32 %v819, %v859
    %861 = vmatmul.f32.gmra.mxu0 %v834
    %v862 = vpop.f32.mrf.mxu0
    %v863 = vadd.f32 %v822, %v862
    %864 = vmatmul.f32.gmra.mxu0 %v837
    %v865 = vpop.f32.mrf.mxu0
    %v866 = vadd.f32 %v825, %v865
    %867 = vdwg.mxu0
    %v868 = vld [vmem:[#allocation3 + $0x9] sm:$0xff]
    %v869 = vld [vmem:[#allocation3 + $0x11] sm:$0xff]
    %v870 = vld [vmem:[#allocation3 + $0x29] sm:$0xff]
    %v871 = vld [vmem:[#allocation3 + $0x31] sm:$0xff]
    %s872 = scalar_lea.vmem [#allocation16], 64
    %v873 = vld [vmem:[%s872] sm:$0xff]
    %v874 = vld [vmem:[%s872 + $0x8] sm:$0xff]
    %v875 = vld [vmem:[%s872 + $0x10] sm:$0xff]
    %v876 = vld [vmem:[%s872 + $0x18] sm:$0xff]
    %v878 = vsel %vm209, %v868, 0
    %v881 = vsel %vm209, %v869, 0
    %v884 = vsel %vm209, %v870, 0
    %v887 = vsel %vm209, %v871, 0
    %889 = vmatpush.msra.mxu0 0.0
    %890 = vmatpush.msra.mxu0 0.0
    %891 = vmatpush.msra.mxu0 0.0
    %892 = vmatpush.msra.mxu0 0.0
    %893 = vmatpush.msra.mxu0 0.0
    %894 = vmatpush.msra.mxu0 0.0
    %895 = vmatpush.msra.mxu0 0.0
    %896 = vmatpush.msra.mxu0 0.0
    %897 = vmatpush.msra.mxu0 0.0
    %898 = vmatpush.msra.mxu0 0.0
    %899 = vmatpush.msra.mxu0 0.0
    %900 = vmatpush.msra.mxu0 0.0
    %901 = vmatpush.msra.mxu0 %v876
    %902 = vmatpush.msra.mxu0 %v875
    %903 = vmatpush.msra.mxu0 %v874
    %904 = vmatpush.msra.mxu0 %v873
    %905 = vmatmul.f32.gmra.mxu0 %v878
    %v906 = vpop.f32.mrf.mxu0
    %v907 = vadd.f32 0.0, %v906
    %908 = vmatmul.f32.gmra.mxu0 %v881
    %v909 = vpop.f32.mrf.mxu0
    %v910 = vadd.f32 0.0, %v909
    %911 = vmatmul.f32.gmra.mxu0 %v884
    %v912 = vpop.f32.mrf.mxu0
    %v913 = vadd.f32 0.0, %v912
    %914 = vmatmul.f32.gmra.mxu0 %v887
    %v915 = vpop.f32.mrf.mxu0
    %v916 = vadd.f32 0.0, %v915
    %917 = vdwg.mxu0
    %v918 = vadd.f32 %v857, %v907
    %v919 = vadd.f32 %v860, %v910
    %v920 = vadd.f32 %v863, %v913
    %v921 = vadd.f32 %v866, %v916
    %v922 = vld [vmem:[#allocation18] sm:$0x1]
    %v924 = vperm.slane %v922, 0
    %v926 = vadd.f32 %v918, %v924
    %v927 = vadd.f32 %v919, %v924
    %v928 = vadd.f32 %v920, %v924
    %v929 = vadd.f32 %v921, %v924
    %v930 = vsel %vm209, %v926, 0.0
    %931 = vadd.xlane.f32.xlu0 %v930
    %v932 = vpop.xlane.xlu0 %931
    %v933 = vsel %vm209, %v927, 0.0
    %934 = vadd.xlane.f32.xlu0 %v933
    %v935 = vpop.xlane.xlu0 %934
    %v936 = vsel %vm209, %v928, 0.0
    %937 = vadd.xlane.f32.xlu0 %v936
    %v938 = vpop.xlane.xlu0 %937
    %v939 = vsel %vm209, %v929, 0.0
    %940 = vadd.xlane.f32.xlu0 %v939
    %v941 = vpop.xlane.xlu0 %940
    %v942 = vmul.f32 %v932, %v399
    %v943 = vmul.f32 %v935, %v399
    %v944 = vmul.f32 %v938, %v399
    %v945 = vmul.f32 %v941, %v399
    %v946 = vsub.f32 %v926, %v942
    %v947 = vsub.f32 %v927, %v943
    %v948 = vsub.f32 %v928, %v944
    %v949 = vsub.f32 %v929, %v945
    %v950 = vmul.f32 %v946, %v946
    %v951 = vmul.f32 %v947, %v947
    %v952 = vmul.f32 %v948, %v948
    %v953 = vmul.f32 %v949, %v949
    %v954 = vsel %vm209, %v950, 0.0
    %955 = vadd.xlane.f32.xlu0 %v954
    %v956 = vpop.xlane.xlu0 %955
    %v957 = vsel %vm209, %v951, 0.0
    %958 = vadd.xlane.f32.xlu0 %v957
    %v959 = vpop.xlane.xlu0 %958
    %v960 = vsel %vm209, %v952, 0.0
    %961 = vadd.xlane.f32.xlu0 %v960
    %v962 = vpop.xlane.xlu0 %961
    %v963 = vsel %vm209, %v953, 0.0
    %964 = vadd.xlane.f32.xlu0 %v963
    %v965 = vpop.xlane.xlu0 %964
    %v966 = vmul.f32 %v956, %v399
    %v967 = vmul.f32 %v959, %v399
    %v968 = vmul.f32 %v962, %v399
    %v969 = vmul.f32 %v965, %v399
    %v970 = vadd.f32 %v966, 1e-05
    %v971 = vadd.f32 %v967, 1e-05
    %v972 = vadd.f32 %v968, 1e-05
    %v973 = vadd.f32 %v969, 1e-05
    %v974 = vrsqrt.pop %v970
    %v975 = vmul.f32 %v974, %v970
    %v976 = vmul.f32 %v975, %v974
    %v977 = vmul.f32 0.5, %v976
    %v978 = vsub.f32 1.5, %v977
    %v979 = vmul.f32 %v974, %v978
    %vm980 = vweird.f32 %v970
    %vm981 = vweird.f32 %v974
    %vm982 = vmor %vm980, %vm981
    %v983 = vsel %vm982, %v974, %v979
    %v984 = vrsqrt.pop %v971
    %v985 = vmul.f32 %v984, %v971
    %v986 = vmul.f32 %v985, %v984
    %v987 = vmul.f32 0.5, %v986
    %v988 = vsub.f32 1.5, %v987
    %v989 = vmul.f32 %v984, %v988
    %vm990 = vweird.f32 %v971
    %vm991 = vweird.f32 %v984
    %vm992 = vmor %vm990, %vm991
    %v993 = vsel %vm992, %v984, %v989
    %v994 = vrsqrt.pop %v972
    %v995 = vmul.f32 %v994, %v972
    %v996 = vmul.f32 %v995, %v994
    %v997 = vmul.f32 0.5, %v996
    %v998 = vsub.f32 1.5, %v997
    %v999 = vmul.f32 %v994, %v998
    %vm1000 = vweird.f32 %v972
    %vm1001 = vweird.f32 %v994
    %vm1002 = vmor %vm1000, %vm1001
    %v1003 = vsel %vm1002, %v994, %v999
    %v1004 = vrsqrt.pop %v973
    %v1005 = vmul.f32 %v1004, %v973
    %v1006 = vmul.f32 %v1005, %v1004
    %v1007 = vmul.f32 0.5, %v1006
    %v1008 = vsub.f32 1.5, %v1007
    %v1009 = vmul.f32 %v1004, %v1008
    %vm1010 = vweird.f32 %v973
    %vm1011 = vweird.f32 %v1004
    %vm1012 = vmor %vm1010, %vm1011
    %v1013 = vsel %vm1012, %v1004, %v1009
    %v1014 = vmul.f32 %v946, %v983
    %v1015 = vmul.f32 %v947, %v993
    %v1016 = vmul.f32 %v948, %v1003
    %v1017 = vmul.f32 %v949, %v1013
    %v1018 = vld [vmem:[#allocation19] sm:$0x1]
    %v1020 = vperm.slane %v1018, 0
    %v1022 = vmul.f32 %v1014, %v1020
    %v1023 = vmul.f32 %v1015, %v1020
    %v1024 = vmul.f32 %v1016, %v1020
    %v1025 = vmul.f32 %v1017, %v1020
    %v1026 = vld [vmem:[#allocation21] sm:$0x1]
    %v1028 = vperm.slane %v1026, 0
    %v1030 = vadd.f32 %v1022, %v1028
    %v1031 = vadd.f32 %v1023, %v1028
    %v1032 = vadd.f32 %v1024, %v1028
    %v1033 = vadd.f32 %v1025, %v1028
    %v1034 = vadd.f32 %v1030, %v488
    %v1035 = vadd.f32 %v1031, %v489
    %v1036 = vadd.f32 %v1032, %v490
    %v1037 = vadd.f32 %v1033, %v491
    %v1038 = vmax.f32 %v1034, 0.0
    %v1039 = vmax.f32 %v1035, 0.0
    %v1040 = vmax.f32 %v1036, 0.0
    %v1041 = vmax.f32 %v1037, 0.0
    %1042 = vst.msk [vmem:[#allocation22] sm:$0xff] %vm209, %v1038
    %1043 = vst.msk [vmem:[#allocation22 + $0x8] sm:$0xff] %vm209, %v1039
    %1044 = vst.msk [vmem:[#allocation22 + $0x10] sm:$0xff] %vm209, %v1040
    %1045 = vst.msk [vmem:[#allocation22 + $0x18] sm:$0xff] %vm209, %v1041
    %v1046 = vsel %vm209, %v1038, 0.0
    %v1047 = vsel %vm209, %v1039, 0.0
    %v1048 = vadd.f32 %v1046, %v1047
    %v1049 = vrot.slane %v1048, 4
    %v1050 = vadd.f32 %v1048, %v1049
    %v1051 = vrot.slane %v1050, 2
    %v1052 = vadd.f32 %v1050, %v1051
    %v1053 = vrot.slane %v1052, 1
    %v1054 = vadd.f32 %v1052, %v1053
    %v1055 = vsel %vm209, %v1040, 0.0
    %v1056 = vsel %vm209, %v1041, 0.0
    %v1057 = vadd.f32 %v1055, %v1056
    %v1058 = vrot.slane %v1057, 4
    %v1059 = vadd.f32 %v1057, %v1058
    %v1060 = vrot.slane %v1059, 2
    %v1061 = vadd.f32 %v1059, %v1060
    %v1062 = vrot.slane %v1061, 1
    %v1063 = vadd.f32 %v1061, %v1062
    %v1064 = vrcp.pop 16.0
    %v1065 = vmul.f32 16.0, %v1064
    %v1066 = vsub.f32 1.0, %v1065
    %v1067 = vmul.f32 %v1064, %v1066
    %v1068 = vadd.f32 %v1064, %v1067
    %vm1069 = vweird.f32 %v1064
    %v1070 = vsel %vm1069, %v1064, %v1068
    %v1071 = vmul.f32 %v1054, %v1070
    %v1072 = vmul.f32 %v1063, %v1070
    %vm1075 = vcmask 1041409
    %v1076 = vsel %vm1075, %v1072, %v1071
    %vm1078 = vcmask 254976
    %1079 = vst.msk [vmem:[%s14] sm:$0x3] %vm1078, %v1076
    // Predicated region
    $region98: #{hyper_resnet_forward.4} parent=1 // pred_check
      _
    $region99: #{hyper_resnet_forward.4} parent=1 // pred_check_branch
      %1081 = sbr.rel (0) target = $region101
    $region100: #{hyper_resnet_forward.4} parent=1 // pred_region
      %1083 = vsyncadd [#allocation6], 0
      %s1084 = sshll.u32 [#allocation22], 4
      %s1085 = int_to_ptr.vmem [resolvable:$true] %s1084
      %s1086 = sshll.u32 %s13, 4
      %s1087 = int_to_ptr.hbm [resolvable:$true] %s1086
      %1092 = dma.vmem_to_hbm [thread:$0]  %s1085, 512, %s1087, [#allocation6], 128, 128, 8
    $region101: #{hyper_resnet_forward.4} parent=1 // pred_fallthru
      _
    // Predicated region
    $region102: #{hyper_resnet_forward.4} parent=1 // pred_check
      _
    $region103: #{hyper_resnet_forward.4} parent=1 // pred_check_branch
      %1094 = sbr.rel (0) target = $region105
    $region104: #{hyper_resnet_forward.4} parent=1 // pred_region
      _
    $region105: #{hyper_resnet_forward.4} parent=1 // pred_fallthru
      _
    // Predicated region
    $region106: #{hyper_resnet_forward.4} parent=1 // pred_check
      _
    $region107: #{hyper_resnet_forward.4} parent=1 // pred_check_branch
      %1096 = sbr.rel (0) target = $region109
    $region108: #{hyper_resnet_forward.4} parent=1 // pred_region
      %1098 = dma.done [#allocation6], 512
    $region109: #{hyper_resnet_forward.4} parent=1 // pred_fallthru
      _
    // Predicated region
    $region110: #{hyper_resnet_forward.4} parent=1 // pred_check
      _
    $region111: #{hyper_resnet_forward.4} parent=1 // pred_check_branch
      %1100 = sbr.rel (0) target = $region113
    $region112: #{hyper_resnet_forward.4} parent=1 // pred_region
      _
    $region113: #{hyper_resnet_forward.4} parent=1 // pred_fallthru
      _
    %1101 = vsyncpa [#allocation5], 1
    %1102 = vsyncpa [#allocation8], 1
    %1103 = vsyncpa [#allocation11], 1
    %1104 = vsyncpa [#allocation14], 1
    %1105 = vsyncpa [#allocation17], 1
    %1106 = vsyncpa [#allocation20], 1
    %1107 = vsyncpa [#allocation6], 1

</llo_original>
